<compile_context>
chip_gen: v7x
topology: tpu7x:2x2x1
jax: 0.10.0
libtpu: 0.0.40
codegen_flags: <defaults>
</compile_context>

<pallas_src>
import jax
import jax.numpy as jnp
from jax.experimental import pallas as pl
from jax.experimental.pallas import tpu as pltpu

# encoder: 784->512->256->128->10->3 (tanh after each)
# decoder: 3->10->128->256->512->784 (tanh after each except last, sigmoid last)
ENC_DIMS = [784, 512, 256, 128, 10, 3]
DEC_DIMS = [3, 10, 128, 256, 512, 784]
LAYER_DIMS = list(zip(ENC_DIMS[:-1], ENC_DIMS[1:])) + list(zip(DEC_DIMS[:-1], DEC_DIMS[1:]))
N_LAYERS = len(LAYER_DIMS)  # 10


def _round_up(v, m):
    return -(-v // m) * m


# Packed-bias layout: each layer's bias starts at a 128-aligned (lane-aligned)
# offset inside a single [1, BIAS_TOTAL] f32 array.
BIAS_OFFS = []
_off = 0
for _, _fo in LAYER_DIMS:
    BIAS_OFFS.append(_off)
    _off += _round_up(_fo, 128)
BIAS_TOTAL = _off  # 3072


def autoencoder_kernel(x_ref, *refs):
    # refs = (w0, ..., w9, b_all, enc_out_ref, dec_out_ref)
    w_refs = refs[:N_LAYERS]
    b_ref = refs[N_LAYERS]
    enc_ref = refs[N_LAYERS + 1]
    dec_ref = refs[N_LAYERS + 2]

    h = x_ref[...]  # bf16 batch tile [TB, 784]

    def linear(h, i):
        fo = LAYER_DIMS[i][1]
        off = BIAS_OFFS[i]
        # bf16 operands on the MXU with f32 accumulation; f32 bias add from the
        # packed, lane-aligned bias block.
        return (jnp.dot(h.astype(jnp.bfloat16), w_refs[i][...],
                        preferred_element_type=jnp.float32)
                + b_ref[:, off:off + fo])

    # ---- encoder: 5 x (Linear -> Tanh) ----
    # TODO(synk): layers with K or N in {3, 10} are >90%-idle MXU passes; a VPU
    # broadcast-multiply + lane-reduce would shave the serial chain, but with
    # >=2 in-flight batch tiles the fill/drain bubble is hidden.
    for i in range(5):
        h = jnp.tanh(linear(h, i))
    enc_ref[...] = h.astype(enc_ref.dtype)

    # ---- decoder: 4 x (Linear -> Tanh) + (Linear -> Sigmoid) ----
    for i in range(5, N_LAYERS - 1):
        h = jnp.tanh(linear(h, i))
    z = linear(h, N_LAYERS - 1)
    # sigmoid(z) == 0.5 * (1 + tanh(0.5 * z)) -> single EUP transcendental.
    dec_ref[...] = (0.5 * (1.0 + jnp.tanh(0.5 * z))).astype(dec_ref.dtype)


def _pick_batch_tile(B):
    """Batch-tile size and padded batch.

    Guarantees >= 2 tiles once B >= 32 (so v7x's second TensorCore gets work
    via the "parallel" grid axis) and caps tiles at 512 rows for large B
    (bigger tiles amortize per-step overhead; VMEM stays far below limits).
    Tiles are multiples of 16 so bf16 input blocks are sublane-tile aligned.
    """
    if B >= 1024:
        TB = 512
    elif B >= 32:
        TB = _round_up(_round_up(B, 2) // 2, 16)   # ~B/2 -> exactly 2 tiles
    else:
        TB = _round_up(B, 8)                       # single full-array tile
    return TB, _round_up(B, TB)


@jax.jit
def my_autoencoder(x, params):
    """params: list of (W[in,out] bf16, b[out] f32) for the 10 linear layers.
    Returns (encoder_out [B,3] f32, decoder_out [B,784] f32)."""
    B = x.shape[0]
    TB, padded_B = _pick_batch_tile(B)
    n_tiles = padded_B // TB

    # The kernel feeds the first matmul in bf16 anyway -> cast in the wrapper
    # to halve input HBM traffic (exact same numerics as in-kernel cast).
    x = x.astype(jnp.bfloat16)
    if padded_B != B:
        x = jnp.pad(x, ((0, padded_B - B), (0, 0)))

    # Pack the 10 biases into a single lane-aligned [1, BIAS_TOTAL] f32 array.
    b_all = jnp.zeros((1, BIAS_TOTAL), jnp.float32)
    weights = []
    in_specs = [pl.BlockSpec((TB, ENC_DIMS[0]), lambda i: (i, 0))]
    for (fan_in, fan_out), (w, b), off in zip(LAYER_DIMS, params, BIAS_OFFS):
        weights.append(w)
        b_all = b_all.at[0, off:off + fan_out].set(b.reshape(fan_out))
        # Constant index_map -> weight block DMA'd once, resident across tiles.
        in_specs.append(pl.BlockSpec((fan_in, fan_out), lambda i: (0, 0)))
    in_specs.append(pl.BlockSpec((1, BIAS_TOTAL), lambda i: (0, 0)))

    out_shape = (
        jax.ShapeDtypeStruct((padded_B, ENC_DIMS[-1]), jnp.float32),  # [B, 3]
        jax.ShapeDtypeStruct((padded_B, DEC_DIMS[-1]), jnp.float32),  # [B, 784]
    )
    out_specs = (
        pl.BlockSpec((TB, ENC_DIMS[-1]), lambda i: (i, 0)),
        pl.BlockSpec((TB, DEC_DIMS[-1]), lambda i: (i, 0)),
    )

    # Advisory cost estimate so XLA can schedule around this DMA-bound kernel.
    total_mac = sum(fi * fo for fi, fo in LAYER_DIMS)
    total_act = sum(fo for _, fo in LAYER_DIMS)
    weight_bytes = sum(fi * fo * 2 for fi, fo in LAYER_DIMS) + BIAS_TOTAL * 4
    cost = pl.CostEstimate(
        flops=2 * padded_B * total_mac,
        transcendentals=padded_B * total_act,
        bytes_accessed=weight_bytes + padded_B * (784 * 2 + (3 + 784) * 4),
    )

    enc, dec = pl.pallas_call(
        autoencoder_kernel,
        out_shape=out_shape,
        grid_spec=pltpu.PrefetchScalarGridSpec(
            num_scalar_prefetch=0,
            grid=(n_tiles,),
            in_specs=in_specs,
            out_specs=out_specs,
        ),
        compiler_params=pltpu.CompilerParams(
            # Independent batch tiles -> shardable across v7x's 2 TensorCores.
            dimension_semantics=("parallel",),
            # ~2.3 MB weights + <5 MB double-buffered I/O tiles at TB=512;
            # explicit 32 MiB covers every generation (v5e scoped default is
            # only 16 MiB) and stays below v7x's 64 MiB physical VMEM.
            vmem_limit_bytes=32 << 20,
        ),
        cost_estimate=cost,
    )(x, *weights, b_all)
    return enc[:B], dec[:B]


def init_params(key):
    """torch.nn.Linear default init: U(-1/sqrt(fan_in), +1/sqrt(fan_in)).
    Weights stored bf16 as [in, out] (halves weight DMA); biases kept f32."""
    params = []
    for fan_in, fan_out in LAYER_DIMS:
        key, kw, kb = jax.random.split(key, 3)
        bound = 1.0 / jnp.sqrt(jnp.float32(fan_in))
        w = jax.random.uniform(kw, (fan_in, fan_out), jnp.float32, -bound, bound)
        b = jax.random.uniform(kb, (fan_out,), jnp.float32, -bound, bound)
        params.append((w.astype(jnp.bfloat16), b))
    return params


def reference_forward(x, params):
    """Pure-JAX reference with the same bf16 rounding contract as the kernel."""
    h = x
    enc = None
    for i, (w, b) in enumerate(params):
        z = jnp.dot(h.astype(jnp.bfloat16).astype(jnp.float32),
                    w.astype(jnp.float32)) + b
        h = jax.nn.sigmoid(z) if i == N_LAYERS - 1 else jnp.tanh(z)
        if i == 4:
            enc = h
    return enc, h


if __name__ == "__main__":
    key = jax.random.PRNGKey(0)
    kp, kx = jax.random.split(key)
    params = init_params(kp)

    ok = True
    # Exercise both the single-tile path (B=8) and the multi-tile "parallel"
    # path (B=32 -> two 16-row tiles).
    for batch in (8, 32):
        kx, kb = jax.random.split(kx)
        x = jax.random.uniform(kb, (batch, 784), jnp.float32)  # [0,1] "images"

        enc, dec = my_autoencoder(x, params)
        jax.block_until_ready((enc, dec))

        enc_ref, dec_ref = reference_forward(x, params)
        assert enc.shape == (batch, 3) and dec.shape == (batch, 784)
        # bf16 weights/inputs -> relaxed tolerance vs the f32-math reference.
        ok &= bool(jnp.allclose(enc, enc_ref, atol=1e-2, rtol=1e-2))
        ok &= bool(jnp.allclose(dec, dec_ref, atol=1e-2, rtol=1e-2))

    assert ok
    print("KERNEL_OK")
</pallas_src>

<mosaic_0001>
module attributes {stable_mosaic.version = 11 : i64} {
  func.func @autoencoder_kernel(%arg0: i32, %arg1: memref<8x784xbf16, #tpu.memory_space<vmem>>, %arg2: memref<784x512xbf16, #tpu.memory_space<vmem>>, %arg3: memref<512x256xbf16, #tpu.memory_space<vmem>>, %arg4: memref<256x128xbf16, #tpu.memory_space<vmem>>, %arg5: memref<128x10xbf16, #tpu.memory_space<vmem>>, %arg6: memref<10x3xbf16, #tpu.memory_space<vmem>>, %arg7: memref<3x10xbf16, #tpu.memory_space<vmem>>, %arg8: memref<10x128xbf16, #tpu.memory_space<vmem>>, %arg9: memref<128x256xbf16, #tpu.memory_space<vmem>>, %arg10: memref<256x512xbf16, #tpu.memory_space<vmem>>, %arg11: memref<512x784xbf16, #tpu.memory_space<vmem>>, %arg12: memref<1x3072xf32, #tpu.memory_space<vmem>>, %arg13: memref<8x3xf32, #tpu.memory_space<vmem>>, %arg14: memref<8x784xf32, #tpu.memory_space<vmem>>) attributes {dimension_semantics = [#tpu.dimension_semantics<parallel>], iteration_bounds = array<i64: 1>, scalar_prefetch = 0 : i64, scratch_operands = 0 : i64, tpu.core_type = #tpu.core_type<tc>, window_params = [{transform_indices = @transform_0, window_bounds = array<i64: 8, 784>}, {pipeline_mode = #tpu.pipeline_mode<synchronous>, transform_indices = @transform_1, window_bounds = array<i64: 784, 512>}, {pipeline_mode = #tpu.pipeline_mode<synchronous>, transform_indices = @transform_2, window_bounds = array<i64: 512, 256>}, {pipeline_mode = #tpu.pipeline_mode<synchronous>, transform_indices = @transform_3, window_bounds = array<i64: 256, 128>}, {pipeline_mode = #tpu.pipeline_mode<synchronous>, transform_indices = @transform_4, window_bounds = array<i64: 128, 10>}, {pipeline_mode = #tpu.pipeline_mode<synchronous>, transform_indices = @transform_5, window_bounds = array<i64: 10, 3>}, {pipeline_mode = #tpu.pipeline_mode<synchronous>, transform_indices = @transform_6, window_bounds = array<i64: 3, 10>}, {pipeline_mode = #tpu.pipeline_mode<synchronous>, transform_indices = @transform_7, window_bounds = array<i64: 10, 128>}, {pipeline_mode = #tpu.pipeline_mode<synchronous>, transform_indices = @transform_8, window_bounds = array<i64: 128, 256>}, {pipeline_mode = #tpu.pipeline_mode<synchronous>, transform_indices = @transform_9, window_bounds = array<i64: 256, 512>}, {pipeline_mode = #tpu.pipeline_mode<synchronous>, transform_indices = @transform_10, window_bounds = array<i64: 512, 784>}, {pipeline_mode = #tpu.pipeline_mode<synchronous>, transform_indices = @transform_11, window_bounds = array<i64: 1, 3072>}, {transform_indices = @transform_12, window_bounds = array<i64: 8, 3>}, {transform_indices = @transform_13, window_bounds = array<i64: 8, 784>}]} {
    %c0 = arith.constant 0 : index
    %c0_0 = arith.constant 0 : index
    %0 = vector.load %arg1[%c0, %c0_0] : memref<8x784xbf16, #tpu.memory_space<vmem>>, vector<8x784xbf16>
    %c0_1 = arith.constant 0 : index
    %c0_2 = arith.constant 0 : index
    %1 = vector.load %arg2[%c0_1, %c0_2] : memref<784x512xbf16, #tpu.memory_space<vmem>>, vector<784x512xbf16>
    %cst = arith.constant dense<0.000000e+00> : vector<8x512xf32>
    %2 = tpu.matmul %0, %1, %cst {dimension_numbers = #tpu.dot_dimension_numbers<[1], [0], [0], [1], [0, 0, 1, 1], [], []>} : vector<8x784xbf16>, vector<784x512xbf16>, vector<8x512xf32> -> vector<8x512xf32>
    %c0_3 = arith.constant 0 : index
    %c0_4 = arith.constant 0 : index
    %3 = vector.load %arg12[%c0_3, %c0_4] : memref<1x3072xf32, #tpu.memory_space<vmem>>, vector<1x512xf32>
    %4 = vector.broadcast %3 : vector<1x512xf32> to vector<8x512xf32>
    %5 = arith.addf %2, %4 : vector<8x512xf32>
    %6 = math.tanh %5 : vector<8x512xf32>
    %7 = arith.truncf %6 : vector<8x512xf32> to vector<8x512xbf16>
    %c0_5 = arith.constant 0 : index
    %c0_6 = arith.constant 0 : index
    %8 = vector.load %arg3[%c0_5, %c0_6] : memref<512x256xbf16, #tpu.memory_space<vmem>>, vector<512x256xbf16>
    %cst_7 = arith.constant dense<0.000000e+00> : vector<8x256xf32>
    %9 = tpu.matmul %7, %8, %cst_7 {dimension_numbers = #tpu.dot_dimension_numbers<[1], [0], [0], [1], [0, 0, 1, 1], [], []>} : vector<8x512xbf16>, vector<512x256xbf16>, vector<8x256xf32> -> vector<8x256xf32>
    %c0_8 = arith.constant 0 : index
    %c512 = arith.constant 512 : index
    %10 = vector.load %arg12[%c0_8, %c512] : memref<1x3072xf32, #tpu.memory_space<vmem>>, vector<1x256xf32>
    %11 = vector.broadcast %10 : vector<1x256xf32> to vector<8x256xf32>
    %12 = arith.addf %9, %11 : vector<8x256xf32>
    %13 = math.tanh %12 : vector<8x256xf32>
    %14 = arith.truncf %13 : vector<8x256xf32> to vector<8x256xbf16>
    %c0_9 = arith.constant 0 : index
    %c0_10 = arith.constant 0 : index
    %15 = vector.load %arg4[%c0_9, %c0_10] : memref<256x128xbf16, #tpu.memory_space<vmem>>, vector<256x128xbf16>
    %cst_11 = arith.constant dense<0.000000e+00> : vector<8x128xf32>
    %16 = tpu.matmul %14, %15, %cst_11 {dimension_numbers = #tpu.dot_dimension_numbers<[1], [0], [0], [1], [0, 0, 1, 1], [], []>} : vector<8x256xbf16>, vector<256x128xbf16>, vector<8x128xf32> -> vector<8x128xf32>
    %c0_12 = arith.constant 0 : index
    %c768 = arith.constant 768 : index
    %17 = vector.load %arg12[%c0_12, %c768] : memref<1x3072xf32, #tpu.memory_space<vmem>>, vector<1x128xf32>
    %18 = vector.broadcast %17 : vector<1x128xf32> to vector<8x128xf32>
    %19 = arith.addf %16, %18 : vector<8x128xf32>
    %20 = math.tanh %19 : vector<8x128xf32>
    %21 = arith.truncf %20 : vector<8x128xf32> to vector<8x128xbf16>
    %c0_13 = arith.constant 0 : index
    %c0_14 = arith.constant 0 : index
    %22 = vector.load %arg5[%c0_13, %c0_14] : memref<128x10xbf16, #tpu.memory_space<vmem>>, vector<128x10xbf16>
    %cst_15 = arith.constant dense<0.000000e+00> : vector<8x10xf32>
    %23 = tpu.matmul %21, %22, %cst_15 {dimension_numbers = #tpu.dot_dimension_numbers<[1], [0], [0], [1], [0, 0, 1, 1], [], []>} : vector<8x128xbf16>, vector<128x10xbf16>, vector<8x10xf32> -> vector<8x10xf32>
    %c0_16 = arith.constant 0 : index
    %c896 = arith.constant 896 : index
    %24 = vector.load %arg12[%c0_16, %c896] : memref<1x3072xf32, #tpu.memory_space<vmem>>, vector<1x10xf32>
    %25 = vector.broadcast %24 : vector<1x10xf32> to vector<8x10xf32>
    %26 = arith.addf %23, %25 : vector<8x10xf32>
    %27 = math.tanh %26 : vector<8x10xf32>
    %28 = arith.truncf %27 : vector<8x10xf32> to vector<8x10xbf16>
    %c0_17 = arith.constant 0 : index
    %c0_18 = arith.constant 0 : index
    %29 = vector.load %arg6[%c0_17, %c0_18] : memref<10x3xbf16, #tpu.memory_space<vmem>>, vector<10x3xbf16>
    %cst_19 = arith.constant dense<0.000000e+00> : vector<8x3xf32>
    %30 = tpu.matmul %28, %29, %cst_19 {dimension_numbers = #tpu.dot_dimension_numbers<[1], [0], [0], [1], [0, 0, 1, 1], [], []>} : vector<8x10xbf16>, vector<10x3xbf16>, vector<8x3xf32> -> vector<8x3xf32>
    %c0_20 = arith.constant 0 : index
    %c1024 = arith.constant 1024 : index
    %31 = vector.load %arg12[%c0_20, %c1024] : memref<1x3072xf32, #tpu.memory_space<vmem>>, vector<1x3xf32>
    %32 = vector.broadcast %31 : vector<1x3xf32> to vector<8x3xf32>
    %33 = arith.addf %30, %32 : vector<8x3xf32>
    %34 = math.tanh %33 : vector<8x3xf32>
    %c0_21 = arith.constant 0 : index
    %c0_22 = arith.constant 0 : index
    %35 = vector.load %arg13[%c0_21, %c0_22] : memref<8x3xf32, #tpu.memory_space<vmem>>, vector<8x3xf32>
    tpu.vector_store %arg13[%c0_21, %c0_22], %34 {strides = array<i32>} : memref<8x3xf32, #tpu.memory_space<vmem>>, vector<8x3xf32>,
    %36 = arith.truncf %34 : vector<8x3xf32> to vector<8x3xbf16>
    %c0_23 = arith.constant 0 : index
    %c0_24 = arith.constant 0 : index
    %37 = vector.load %arg7[%c0_23, %c0_24] : memref<3x10xbf16, #tpu.memory_space<vmem>>, vector<3x10xbf16>
    %cst_25 = arith.constant dense<0.000000e+00> : vector<8x10xf32>
    %38 = tpu.matmul %36, %37, %cst_25 {dimension_numbers = #tpu.dot_dimension_numbers<[1], [0], [0], [1], [0, 0, 1, 1], [], []>} : vector<8x3xbf16>, vector<3x10xbf16>, vector<8x10xf32> -> vector<8x10xf32>
    %c0_26 = arith.constant 0 : index
    %c1152 = arith.constant 1152 : index
    %39 = vector.load %arg12[%c0_26, %c1152] : memref<1x3072xf32, #tpu.memory_space<vmem>>, vector<1x10xf32>
    %40 = vector.broadcast %39 : vector<1x10xf32> to vector<8x10xf32>
    %41 = arith.addf %38, %40 : vector<8x10xf32>
    %42 = math.tanh %41 : vector<8x10xf32>
    %43 = arith.truncf %42 : vector<8x10xf32> to vector<8x10xbf16>
    %c0_27 = arith.constant 0 : index
    %c0_28 = arith.constant 0 : index
    %44 = vector.load %arg8[%c0_27, %c0_28] : memref<10x128xbf16, #tpu.memory_space<vmem>>, vector<10x128xbf16>
    %cst_29 = arith.constant dense<0.000000e+00> : vector<8x128xf32>
    %45 = tpu.matmul %43, %44, %cst_29 {dimension_numbers = #tpu.dot_dimension_numbers<[1], [0], [0], [1], [0, 0, 1, 1], [], []>} : vector<8x10xbf16>, vector<10x128xbf16>, vector<8x128xf32> -> vector<8x128xf32>
    %c0_30 = arith.constant 0 : index
    %c1280 = arith.constant 1280 : index
    %46 = vector.load %arg12[%c0_30, %c1280] : memref<1x3072xf32, #tpu.memory_space<vmem>>, vector<1x128xf32>
    %47 = vector.broadcast %46 : vector<1x128xf32> to vector<8x128xf32>
    %48 = arith.addf %45, %47 : vector<8x128xf32>
    %49 = math.tanh %48 : vector<8x128xf32>
    %50 = arith.truncf %49 : vector<8x128xf32> to vector<8x128xbf16>
    %c0_31 = arith.constant 0 : index
    %c0_32 = arith.constant 0 : index
    %51 = vector.load %arg9[%c0_31, %c0_32] : memref<128x256xbf16, #tpu.memory_space<vmem>>, vector<128x256xbf16>
    %cst_33 = arith.constant dense<0.000000e+00> : vector<8x256xf32>
    %52 = tpu.matmul %50, %51, %cst_33 {dimension_numbers = #tpu.dot_dimension_numbers<[1], [0], [0], [1], [0, 0, 1, 1], [], []>} : vector<8x128xbf16>, vector<128x256xbf16>, vector<8x256xf32> -> vector<8x256xf32>
    %c0_34 = arith.constant 0 : index
    %c1408 = arith.constant 1408 : index
    %53 = vector.load %arg12[%c0_34, %c1408] : memref<1x3072xf32, #tpu.memory_space<vmem>>, vector<1x256xf32>
    %54 = vector.broadcast %53 : vector<1x256xf32> to vector<8x256xf32>
    %55 = arith.addf %52, %54 : vector<8x256xf32>
    %56 = math.tanh %55 : vector<8x256xf32>
    %57 = arith.truncf %56 : vector<8x256xf32> to vector<8x256xbf16>
    %c0_35 = arith.constant 0 : index
    %c0_36 = arith.constant 0 : index
    %58 = vector.load %arg10[%c0_35, %c0_36] : memref<256x512xbf16, #tpu.memory_space<vmem>>, vector<256x512xbf16>
    %cst_37 = arith.constant dense<0.000000e+00> : vector<8x512xf32>
    %59 = tpu.matmul %57, %58, %cst_37 {dimension_numbers = #tpu.dot_dimension_numbers<[1], [0], [0], [1], [0, 0, 1, 1], [], []>} : vector<8x256xbf16>, vector<256x512xbf16>, vector<8x512xf32> -> vector<8x512xf32>
    %c0_38 = arith.constant 0 : index
    %c1664 = arith.constant 1664 : index
    %60 = vector.load %arg12[%c0_38, %c1664] : memref<1x3072xf32, #tpu.memory_space<vmem>>, vector<1x512xf32>
    %61 = vector.broadcast %60 : vector<1x512xf32> to vector<8x512xf32>
    %62 = arith.addf %59, %61 : vector<8x512xf32>
    %63 = math.tanh %62 : vector<8x512xf32>
    %64 = arith.truncf %63 : vector<8x512xf32> to vector<8x512xbf16>
    %c0_39 = arith.constant 0 : index
    %c0_40 = arith.constant 0 : index
    %65 = vector.load %arg11[%c0_39, %c0_40] : memref<512x784xbf16, #tpu.memory_space<vmem>>, vector<512x784xbf16>
    %cst_41 = arith.constant dense<0.000000e+00> : vector<8x784xf32>
    %66 = tpu.matmul %64, %65, %cst_41 {dimension_numbers = #tpu.dot_dimension_numbers<[1], [0], [0], [1], [0, 0, 1, 1], [], []>} : vector<8x512xbf16>, vector<512x784xbf16>, vector<8x784xf32> -> vector<8x784xf32>
    %c0_42 = arith.constant 0 : index
    %c2176 = arith.constant 2176 : index
    %67 = vector.load %arg12[%c0_42, %c2176] : memref<1x3072xf32, #tpu.memory_space<vmem>>, vector<1x784xf32>
    %68 = vector.broadcast %67 : vector<1x784xf32> to vector<8x784xf32>
    %69 = arith.addf %66, %68 : vector<8x784xf32>
    %cst_43 = arith.constant 5.000000e-01 : f32
    %70 = vector.broadcast %cst_43 : f32 to vector<8x784xf32>
    %71 = arith.mulf %70, %69 : vector<8x784xf32>
    %72 = math.tanh %71 : vector<8x784xf32>
    %cst_44 = arith.constant 1.000000e+00 : f32
    %73 = vector.broadcast %cst_44 : f32 to vector<8x784xf32>
    %74 = arith.addf %73, %72 : vector<8x784xf32>
    %cst_45 = arith.constant 5.000000e-01 : f32
    %75 = vector.broadcast %cst_45 : f32 to vector<8x784xf32>
    %76 = arith.mulf %75, %74 : vector<8x784xf32>
    %c0_46 = arith.constant 0 : index
    %c0_47 = arith.constant 0 : index
    %77 = vector.load %arg14[%c0_46, %c0_47] : memref<8x784xf32, #tpu.memory_space<vmem>>, vector<8x784xf32>
    tpu.vector_store %arg14[%c0_46, %c0_47], %76 {strides = array<i32>} : memref<8x784xf32, #tpu.memory_space<vmem>>, vector<8x784xf32>,
    return
  }
  func.func @transform_0(%arg0: i32) -> (i32, i32) {
    %c0_i32 = arith.constant 0 : i32
    %c0_i32_0 = arith.constant 0 : i32
    return %arg0, %c0_i32 : i32, i32
  }
  func.func @transform_1(%arg0: i32) -> (i32, i32) {
    %c0_i32 = arith.constant 0 : i32
    %c0_i32_0 = arith.constant 0 : i32
    %c0_i32_1 = arith.constant 0 : i32
    return %c0_i32, %c0_i32_0 : i32, i32
  }
  func.func @transform_2(%arg0: i32) -> (i32, i32) {
    %c0_i32 = arith.constant 0 : i32
    %c0_i32_0 = arith.constant 0 : i32
    %c0_i32_1 = arith.constant 0 : i32
    return %c0_i32, %c0_i32_0 : i32, i32
  }
  func.func @transform_3(%arg0: i32) -> (i32, i32) {
    %c0_i32 = arith.constant 0 : i32
    %c0_i32_0 = arith.constant 0 : i32
    %c0_i32_1 = arith.constant 0 : i32
    return %c0_i32, %c0_i32_0 : i32, i32
  }
  func.func @transform_4(%arg0: i32) -> (i32, i32) {
    %c0_i32 = arith.constant 0 : i32
    %c0_i32_0 = arith.constant 0 : i32
    %c0_i32_1 = arith.constant 0 : i32
    return %c0_i32, %c0_i32_0 : i32, i32
  }
  func.func @transform_5(%arg0: i32) -> (i32, i32) {
    %c0_i32 = arith.constant 0 : i32
    %c0_i32_0 = arith.constant 0 : i32
    %c0_i32_1 = arith.constant 0 : i32
    return %c0_i32, %c0_i32_0 : i32, i32
  }
  func.func @transform_6(%arg0: i32) -> (i32, i32) {
    %c0_i32 = arith.constant 0 : i32
    %c0_i32_0 = arith.constant 0 : i32
    %c0_i32_1 = arith.constant 0 : i32
    return %c0_i32, %c0_i32_0 : i32, i32
  }
  func.func @transform_7(%arg0: i32) -> (i32, i32) {
    %c0_i32 = arith.constant 0 : i32
    %c0_i32_0 = arith.constant 0 : i32
    %c0_i32_1 = arith.constant 0 : i32
    return %c0_i32, %c0_i32_0 : i32, i32
  }
  func.func @transform_8(%arg0: i32) -> (i32, i32) {
    %c0_i32 = arith.constant 0 : i32
    %c0_i32_0 = arith.constant 0 : i32
    %c0_i32_1 = arith.constant 0 : i32
    return %c0_i32, %c0_i32_0 : i32, i32
  }
  func.func @transform_9(%arg0: i32) -> (i32, i32) {
    %c0_i32 = arith.constant 0 : i32
    %c0_i32_0 = arith.constant 0 : i32
    %c0_i32_1 = arith.constant 0 : i32
    return %c0_i32, %c0_i32_0 : i32, i32
  }
  func.func @transform_10(%arg0: i32) -> (i32, i32) {
    %c0_i32 = arith.constant 0 : i32
    %c0_i32_0 = arith.constant 0 : i32
    %c0_i32_1 = arith.constant 0 : i32
    return %c0_i32, %c0_i32_0 : i32, i32
  }
  func.func @transform_11(%arg0: i32) -> (i32, i32) {
    %c0_i32 = arith.constant 0 : i32
    %c0_i32_0 = arith.constant 0 : i32
    %c0_i32_1 = arith.constant 0 : i32
    return %c0_i32, %c0_i32_0 : i32, i32
  }
  func.func @transform_12(%arg0: i32) -> (i32, i32) {
    %c0_i32 = arith.constant 0 : i32
    %c0_i32_0 = arith.constant 0 : i32
    return %arg0, %c0_i32 : i32, i32
  }
  func.func @transform_13(%arg0: i32) -> (i32, i32) {
    %c0_i32 = arith.constant 0 : i32
    %c0_i32_0 = arith.constant 0 : i32
    return %arg0, %c0_i32 : i32, i32
  }
}

</mosaic_0001>

<llo_original>
// kernel: my_autoencoder.1
$region0: #{my_autoencoder.1}
  #allocation0 [shape = 'u32[]', space=smem, size = 0x4, offset = 0x4, fixed_abs, tag = 'smem constant byte address 0x4 - core index']
  #allocation1 [shape = 'u32[144,128]{1,0:T(1,128)}', space=vmem, size = 0x12000, scoped, tag = 'internal scratch']
  %s0 = inlined_call_operand.vmem [shape: bf16[8,784], index: 0, kind: input, shape index: {}]
  %s1 = inlined_call_operand.vmem [shape: bf16[784,512], index: 1, kind: input, shape index: {}]
  %s2 = inlined_call_operand.vmem [shape: bf16[512,256], index: 2, kind: input, shape index: {}]
  %s3 = inlined_call_operand.vmem [shape: bf16[256,128], index: 3, kind: input, shape index: {}]
  %s4 = inlined_call_operand.vmem [shape: bf16[128,10], index: 4, kind: input, shape index: {}]
  %s5 = inlined_call_operand.vmem [shape: bf16[10,3], index: 5, kind: input, shape index: {}]
  %s6 = inlined_call_operand.vmem [shape: bf16[3,10], index: 6, kind: input, shape index: {}]
  %s7 = inlined_call_operand.vmem [shape: bf16[10,128], index: 7, kind: input, shape index: {}]
  %s8 = inlined_call_operand.vmem [shape: bf16[128,256], index: 8, kind: input, shape index: {}]
  %s9 = inlined_call_operand.vmem [shape: bf16[256,512], index: 9, kind: input, shape index: {}]
  %s10 = inlined_call_operand.vmem [shape: bf16[512,784], index: 10, kind: input, shape index: {}]
  %s11 = inlined_call_operand.vmem [shape: f32[1,3072], index: 11, kind: input, shape index: {}]
  %s12 = inlined_call_operand.vmem [shape: f32[8,3], index: 12, kind: output, shape index: {0}]
  %s13 = inlined_call_operand.hbm [shape: f32[8,784], index: 13, kind: output, shape index: {1}]
  %14 = xla_tuple %s12, %s13
  %s15 = sld [smem:[#allocation0]]
  $region66: #{my_autoencoder.1} parent=0
    _
  %s17 = ssub.s32 1, %s15
  %s18 = scalar_select 0, %s17, %s15
  $region1: #{my_autoencoder.1} parent=0
    #allocation2 [shape = 'u8[28672]{0}', space=vmem, size = 0x7000, scoped, tag = 'output window, operand 1, single buffered']
    #allocation3 [shape = 's32[1]{0}', space=sflag, size = 0x4, scoped, tag = 'scoped memory for my_autoencoder.1']
    %19 = vsyncpa [#allocation3], 0
    // Predicated region
    $region2: #{my_autoencoder.1} parent=1 // pred_check
      _
    $region3: #{my_autoencoder.1} parent=1 // pred_check_branch
      %21 = sbr.rel (0) target = $region5
    $region4: #{my_autoencoder.1} parent=1 // pred_region
      _
    $region5: #{my_autoencoder.1} parent=1 // pred_fallthru
      _
    // Predicated region
    $region6: #{my_autoencoder.1} parent=1 // pred_check
      _
    $region7: #{my_autoencoder.1} parent=1 // pred_check_branch
      %23 = sbr.rel (0) target = $region9
    $region8: #{my_autoencoder.1} parent=1 // pred_region
      _
    $region9: #{my_autoencoder.1} parent=1 // pred_fallthru
      _
    // Predicated region
    $region10: #{my_autoencoder.1} parent=1 // pred_check
      _
    $region11: #{my_autoencoder.1} parent=1 // pred_check_branch
      %25 = sbr.rel (0) target = $region13
    $region12: #{my_autoencoder.1} parent=1 // pred_region
      _
    $region13: #{my_autoencoder.1} parent=1 // pred_fallthru
      _
    // Predicated region
    $region14: #{my_autoencoder.1} parent=1 // pred_check
      _
    $region15: #{my_autoencoder.1} parent=1 // pred_check_branch
      %27 = sbr.rel (0) target = $region17
    $region16: #{my_autoencoder.1} parent=1 // pred_region
      _
    $region17: #{my_autoencoder.1} parent=1 // pred_fallthru
      _
    // Predicated region
    $region18: #{my_autoencoder.1} parent=1 // pred_check
      _
    $region19: #{my_autoencoder.1} parent=1 // pred_check_branch
      %29 = sbr.rel (0) target = $region21
    $region20: #{my_autoencoder.1} parent=1 // pred_region
      _
    $region21: #{my_autoencoder.1} parent=1 // pred_fallthru
      _
    // Predicated region
    $region22: #{my_autoencoder.1} parent=1 // pred_check
      _
    $region23: #{my_autoencoder.1} parent=1 // pred_check_branch
      %31 = sbr.rel (0) target = $region25
    $region24: #{my_autoencoder.1} parent=1 // pred_region
      _
    $region25: #{my_autoencoder.1} parent=1 // pred_fallthru
      _
    // Predicated region
    $region26: #{my_autoencoder.1} parent=1 // pred_check
      _
    $region27: #{my_autoencoder.1} parent=1 // pred_check_branch
      %33 = sbr.rel (0) target = $region29
    $region28: #{my_autoencoder.1} parent=1 // pred_region
      _
    $region29: #{my_autoencoder.1} parent=1 // pred_fallthru
      _
    // Predicated region
    $region30: #{my_autoencoder.1} parent=1 // pred_check
      _
    $region31: #{my_autoencoder.1} parent=1 // pred_check_branch
      %35 = sbr.rel (0) target = $region33
    $region32: #{my_autoencoder.1} parent=1 // pred_region
      _
    $region33: #{my_autoencoder.1} parent=1 // pred_fallthru
      _
    // Predicated region
    $region34: #{my_autoencoder.1} parent=1 // pred_check
      _
    $region35: #{my_autoencoder.1} parent=1 // pred_check_branch
      %37 = sbr.rel (0) target = $region37
    $region36: #{my_autoencoder.1} parent=1 // pred_region
      _
    $region37: #{my_autoencoder.1} parent=1 // pred_fallthru
      _
    // Predicated region
    $region38: #{my_autoencoder.1} parent=1 // pred_check
      _
    $region39: #{my_autoencoder.1} parent=1 // pred_check_branch
      %39 = sbr.rel (0) target = $region41
    $region40: #{my_autoencoder.1} parent=1 // pred_region
      _
    $region41: #{my_autoencoder.1} parent=1 // pred_fallthru
      _
    // Predicated region
    $region42: #{my_autoencoder.1} parent=1 // pred_check
      _
    $region43: #{my_autoencoder.1} parent=1 // pred_check_branch
      %41 = sbr.rel (0) target = $region45
    $region44: #{my_autoencoder.1} parent=1 // pred_region
      _
    $region45: #{my_autoencoder.1} parent=1 // pred_fallthru
      _
    // Predicated region
    $region46: #{my_autoencoder.1} parent=1 // pred_check
      _
    $region47: #{my_autoencoder.1} parent=1 // pred_check_branch
      %43 = sbr.rel (0) target = $region49
    $region48: #{my_autoencoder.1} parent=1 // pred_region
      _
    $region49: #{my_autoencoder.1} parent=1 // pred_fallthru
      _
    %v45 = vld [vmem:[%s0] sm:$0xff]
    %v46 = vld [vmem:[%s0 + $0x8] sm:$0xff]
    %v47 = vld [vmem:[%s0 + $0x10] sm:$0xff]
    %v48 = vld [vmem:[%s0 + $0x18] sm:$0xf]
    %v49 = vld [vmem:[%s1] sm:$0xff]
    %v50 = vld [vmem:[%s1 + $0x8] sm:$0xff]
    %v51 = vld [vmem:[%s1 + $0x10] sm:$0xff]
    %v52 = vld [vmem:[%s1 + $0x18] sm:$0xff]
    %v53 = vld [vmem:[%s1 + $0x20] sm:$0xff]
    %v54 = vld [vmem:[%s1 + $0x28] sm:$0xff]
    %v55 = vld [vmem:[%s1 + $0x30] sm:$0xff]
    %v56 = vld [vmem:[%s1 + $0x38] sm:$0xff]
    %v57 = vld [vmem:[%s1 + $0x40] sm:$0xff]
    %v58 = vld [vmem:[%s1 + $0x48] sm:$0xff]
    %v59 = vld [vmem:[%s1 + $0x50] sm:$0xff]
    %v60 = vld [vmem:[%s1 + $0x58] sm:$0xff]
    %v61 = vld [vmem:[%s1 + $0x60] sm:$0xff]
    %v62 = vld [vmem:[%s1 + $0x68] sm:$0xff]
    %v63 = vld [vmem:[%s1 + $0x70] sm:$0xff]
    %v64 = vld [vmem:[%s1 + $0x78] sm:$0xff]
    %v65 = vld [vmem:[%s1 + $0x80] sm:$0xff]
    %v66 = vld [vmem:[%s1 + $0x88] sm:$0xff]
    %v67 = vld [vmem:[%s1 + $0x90] sm:$0xff]
    %v68 = vld [vmem:[%s1 + $0x98] sm:$0xff]
    %v69 = vld [vmem:[%s1 + $0xa0] sm:$0xff]
    %v70 = vld [vmem:[%s1 + $0xa8] sm:$0xff]
    %v71 = vld [vmem:[%s1 + $0xb0] sm:$0xff]
    %v72 = vld [vmem:[%s1 + $0xb8] sm:$0xff]
    %v73 = vld [vmem:[%s1 + $0xc0] sm:$0xff]
    %v74 = vld [vmem:[%s1 + $0xc8] sm:$0xff]
    %v75 = vld [vmem:[%s1 + $0xd0] sm:$0xff]
    %v76 = vld [vmem:[%s1 + $0xd8] sm:$0xff]
    %v77 = vld [vmem:[%s1 + $0xe0] sm:$0xff]
    %v78 = vld [vmem:[%s1 + $0xe8] sm:$0xff]
    %v79 = vld [vmem:[%s1 + $0xf0] sm:$0xff]
    %v80 = vld [vmem:[%s1 + $0xf8] sm:$0xff]
    %v81 = vld [vmem:[%s1 + $0x100] sm:$0xff]
    %v82 = vld [vmem:[%s1 + $0x108] sm:$0xff]
    %v83 = vld [vmem:[%s1 + $0x110] sm:$0xff]
    %v84 = vld [vmem:[%s1 + $0x118] sm:$0xff]
    %v85 = vld [vmem:[%s1 + $0x120] sm:$0xff]
    %v86 = vld [vmem:[%s1 + $0x128] sm:$0xff]
    %v87 = vld [vmem:[%s1 + $0x130] sm:$0xff]
    %v88 = vld [vmem:[%s1 + $0x138] sm:$0xff]
    %v89 = vld [vmem:[%s1 + $0x140] sm:$0xff]
    %v90 = vld [vmem:[%s1 + $0x148] sm:$0xff]
    %v91 = vld [vmem:[%s1 + $0x150] sm:$0xff]
    %v92 = vld [vmem:[%s1 + $0x158] sm:$0xff]
    %v93 = vld [vmem:[%s1 + $0x160] sm:$0xff]
    %v94 = vld [vmem:[%s1 + $0x168] sm:$0xff]
    %v95 = vld [vmem:[%s1 + $0x170] sm:$0xff]
    %v96 = vld [vmem:[%s1 + $0x178] sm:$0xff]
    %v97 = vld [vmem:[%s1 + $0x180] sm:$0xff]
    %v98 = vld [vmem:[%s1 + $0x188] sm:$0xff]
    %v99 = vld [vmem:[%s1 + $0x190] sm:$0xff]
    %v100 = vld [vmem:[%s1 + $0x198] sm:$0xff]
    %v101 = vld [vmem:[%s1 + $0x1a0] sm:$0xff]
    %v102 = vld [vmem:[%s1 + $0x1a8] sm:$0xff]
    %v103 = vld [vmem:[%s1 + $0x1b0] sm:$0xff]
    %v104 = vld [vmem:[%s1 + $0x1b8] sm:$0xff]
    %v105 = vld [vmem:[%s1 + $0x1c0] sm:$0xff]
    %v106 = vld [vmem:[%s1 + $0x1c8] sm:$0xff]
    %v107 = vld [vmem:[%s1 + $0x1d0] sm:$0xff]
    %v108 = vld [vmem:[%s1 + $0x1d8] sm:$0xff]
    %v109 = vld [vmem:[%s1 + $0x1e0] sm:$0xff]
    %v110 = vld [vmem:[%s1 + $0x1e8] sm:$0xff]
    %v111 = vld [vmem:[%s1 + $0x1f0] sm:$0xff]
    %v112 = vld [vmem:[%s1 + $0x1f8] sm:$0xff]
    %v113 = vld [vmem:[%s1 + $0x200] sm:$0xff]
    %v114 = vld [vmem:[%s1 + $0x208] sm:$0xff]
    %v115 = vld [vmem:[%s1 + $0x210] sm:$0xff]
    %v116 = vld [vmem:[%s1 + $0x218] sm:$0xff]
    %v117 = vld [vmem:[%s1 + $0x220] sm:$0xff]
    %v118 = vld [vmem:[%s1 + $0x228] sm:$0xff]
    %v119 = vld [vmem:[%s1 + $0x230] sm:$0xff]
    %v120 = vld [vmem:[%s1 + $0x238] sm:$0xff]
    %v121 = vld [vmem:[%s1 + $0x240] sm:$0xff]
    %v122 = vld [vmem:[%s1 + $0x248] sm:$0xff]
    %v123 = vld [vmem:[%s1 + $0x250] sm:$0xff]
    %v124 = vld [vmem:[%s1 + $0x258] sm:$0xff]
    %v125 = vld [vmem:[%s1 + $0x260] sm:$0xff]
    %v126 = vld [vmem:[%s1 + $0x268] sm:$0xff]
    %v127 = vld [vmem:[%s1 + $0x270] sm:$0xff]
    %v128 = vld [vmem:[%s1 + $0x278] sm:$0xff]
    %v129 = vld [vmem:[%s1 + $0x280] sm:$0xff]
    %v130 = vld [vmem:[%s1 + $0x288] sm:$0xff]
    %v131 = vld [vmem:[%s1 + $0x290] sm:$0xff]
    %v132 = vld [vmem:[%s1 + $0x298] sm:$0xff]
    %v133 = vld [vmem:[%s1 + $0x2a0] sm:$0xff]
    %v134 = vld [vmem:[%s1 + $0x2a8] sm:$0xff]
    %v135 = vld [vmem:[%s1 + $0x2b0] sm:$0xff]
    %v136 = vld [vmem:[%s1 + $0x2b8] sm:$0xff]
    %v137 = vld [vmem:[%s1 + $0x2c0] sm:$0xff]
    %v138 = vld [vmem:[%s1 + $0x2c8] sm:$0xff]
    %v139 = vld [vmem:[%s1 + $0x2d0] sm:$0xff]
    %v140 = vld [vmem:[%s1 + $0x2d8] sm:$0xff]
    %v141 = vld [vmem:[%s1 + $0x2e0] sm:$0xff]
    %v142 = vld [vmem:[%s1 + $0x2e8] sm:$0xff]
    %v143 = vld [vmem:[%s1 + $0x2f0] sm:$0xff]
    %v144 = vld [vmem:[%s1 + $0x2f8] sm:$0xff]
    %v145 = vld [vmem:[%s1 + $0x300] sm:$0xff]
    %v146 = vld [vmem:[%s1 + $0x308] sm:$0xff]
    %v147 = vld [vmem:[%s1 + $0x310] sm:$0xff]
    %v148 = vld [vmem:[%s1 + $0x318] sm:$0xff]
    %v149 = vld [vmem:[%s1 + $0x320] sm:$0xff]
    %v150 = vld [vmem:[%s1 + $0x328] sm:$0xff]
    %v151 = vld [vmem:[%s1 + $0x330] sm:$0xff]
    %v152 = vld [vmem:[%s1 + $0x338] sm:$0xff]
    %v153 = vld [vmem:[%s1 + $0x340] sm:$0xff]
    %v154 = vld [vmem:[%s1 + $0x348] sm:$0xff]
    %v155 = vld [vmem:[%s1 + $0x350] sm:$0xff]
    %v156 = vld [vmem:[%s1 + $0x358] sm:$0xff]
    %v157 = vld [vmem:[%s1 + $0x360] sm:$0xff]
    %v158 = vld [vmem:[%s1 + $0x368] sm:$0xff]
    %v159 = vld [vmem:[%s1 + $0x370] sm:$0xff]
    %v160 = vld [vmem:[%s1 + $0x378] sm:$0xff]
    %v161 = vld [vmem:[%s1 + $0x380] sm:$0xff]
    %v162 = vld [vmem:[%s1 + $0x388] sm:$0xff]
    %v163 = vld [vmem:[%s1 + $0x390] sm:$0xff]
    %v164 = vld [vmem:[%s1 + $0x398] sm:$0xff]
    %v165 = vld [vmem:[%s1 + $0x3a0] sm:$0xff]
    %v166 = vld [vmem:[%s1 + $0x3a8] sm:$0xff]
    %v167 = vld [vmem:[%s1 + $0x3b0] sm:$0xff]
    %v168 = vld [vmem:[%s1 + $0x3b8] sm:$0xff]
    %v169 = vld [vmem:[%s1 + $0x3c0] sm:$0xff]
    %v170 = vld [vmem:[%s1 + $0x3c8] sm:$0xff]
    %v171 = vld [vmem:[%s1 + $0x3d0] sm:$0xff]
    %v172 = vld [vmem:[%s1 + $0x3d8] sm:$0xff]
    %v173 = vld [vmem:[%s1 + $0x3e0] sm:$0xff]
    %v174 = vld [vmem:[%s1 + $0x3e8] sm:$0xff]
    %v175 = vld [vmem:[%s1 + $0x3f0] sm:$0xff]
    %v176 = vld [vmem:[%s1 + $0x3f8] sm:$0xff]
    %v177 = vld [vmem:[%s1 + $0x400] sm:$0xff]
    %v178 = vld [vmem:[%s1 + $0x408] sm:$0xff]
    %v179 = vld [vmem:[%s1 + $0x410] sm:$0xff]
    %v180 = vld [vmem:[%s1 + $0x418] sm:$0xff]
    %v181 = vld [vmem:[%s1 + $0x420] sm:$0xff]
    %v182 = vld [vmem:[%s1 + $0x428] sm:$0xff]
    %v183 = vld [vmem:[%s1 + $0x430] sm:$0xff]
    %v184 = vld [vmem:[%s1 + $0x438] sm:$0xff]
    %v185 = vld [vmem:[%s1 + $0x440] sm:$0xff]
    %v186 = vld [vmem:[%s1 + $0x448] sm:$0xff]
    %v187 = vld [vmem:[%s1 + $0x450] sm:$0xff]
    %v188 = vld [vmem:[%s1 + $0x458] sm:$0xff]
    %v189 = vld [vmem:[%s1 + $0x460] sm:$0xff]
    %v190 = vld [vmem:[%s1 + $0x468] sm:$0xff]
    %v191 = vld [vmem:[%s1 + $0x470] sm:$0xff]
    %v192 = vld [vmem:[%s1 + $0x478] sm:$0xff]
    %v193 = vld [vmem:[%s1 + $0x480] sm:$0xff]
    %v194 = vld [vmem:[%s1 + $0x488] sm:$0xff]
    %v195 = vld [vmem:[%s1 + $0x490] sm:$0xff]
    %v196 = vld [vmem:[%s1 + $0x498] sm:$0xff]
    %v197 = vld [vmem:[%s1 + $0x4a0] sm:$0xff]
    %v198 = vld [vmem:[%s1 + $0x4a8] sm:$0xff]
    %v199 = vld [vmem:[%s1 + $0x4b0] sm:$0xff]
    %v200 = vld [vmem:[%s1 + $0x4b8] sm:$0xff]
    %v201 = vld [vmem:[%s1 + $0x4c0] sm:$0xff]
    %v202 = vld [vmem:[%s1 + $0x4c8] sm:$0xff]
    %v203 = vld [vmem:[%s1 + $0x4d0] sm:$0xff]
    %v204 = vld [vmem:[%s1 + $0x4d8] sm:$0xff]
    %v205 = vld [vmem:[%s1 + $0x4e0] sm:$0xff]
    %v206 = vld [vmem:[%s1 + $0x4e8] sm:$0xff]
    %v207 = vld [vmem:[%s1 + $0x4f0] sm:$0xff]
    %v208 = vld [vmem:[%s1 + $0x4f8] sm:$0xff]
    %v209 = vld [vmem:[%s1 + $0x500] sm:$0xff]
    %v210 = vld [vmem:[%s1 + $0x508] sm:$0xff]
    %v211 = vld [vmem:[%s1 + $0x510] sm:$0xff]
    %v212 = vld [vmem:[%s1 + $0x518] sm:$0xff]
    %v213 = vld [vmem:[%s1 + $0x520] sm:$0xff]
    %v214 = vld [vmem:[%s1 + $0x528] sm:$0xff]
    %v215 = vld [vmem:[%s1 + $0x530] sm:$0xff]
    %v216 = vld [vmem:[%s1 + $0x538] sm:$0xff]
    %v217 = vld [vmem:[%s1 + $0x540] sm:$0xff]
    %v218 = vld [vmem:[%s1 + $0x548] sm:$0xff]
    %v219 = vld [vmem:[%s1 + $0x550] sm:$0xff]
    %v220 = vld [vmem:[%s1 + $0x558] sm:$0xff]
    %v221 = vld [vmem:[%s1 + $0x560] sm:$0xff]
    %v222 = vld [vmem:[%s1 + $0x568] sm:$0xff]
    %v223 = vld [vmem:[%s1 + $0x570] sm:$0xff]
    %v224 = vld [vmem:[%s1 + $0x578] sm:$0xff]
    %v225 = vld [vmem:[%s1 + $0x580] sm:$0xff]
    %v226 = vld [vmem:[%s1 + $0x588] sm:$0xff]
    %v227 = vld [vmem:[%s1 + $0x590] sm:$0xff]
    %v228 = vld [vmem:[%s1 + $0x598] sm:$0xff]
    %v229 = vld [vmem:[%s1 + $0x5a0] sm:$0xff]
    %v230 = vld [vmem:[%s1 + $0x5a8] sm:$0xff]
    %v231 = vld [vmem:[%s1 + $0x5b0] sm:$0xff]
    %v232 = vld [vmem:[%s1 + $0x5b8] sm:$0xff]
    %v233 = vld [vmem:[%s1 + $0x5c0] sm:$0xff]
    %v234 = vld [vmem:[%s1 + $0x5c8] sm:$0xff]
    %v235 = vld [vmem:[%s1 + $0x5d0] sm:$0xff]
    %v236 = vld [vmem:[%s1 + $0x5d8] sm:$0xff]
    %v237 = vld [vmem:[%s1 + $0x5e0] sm:$0xff]
    %v238 = vld [vmem:[%s1 + $0x5e8] sm:$0xff]
    %v239 = vld [vmem:[%s1 + $0x5f0] sm:$0xff]
    %v240 = vld [vmem:[%s1 + $0x5f8] sm:$0xff]
    %v241 = vld [vmem:[%s1 + $0x600] sm:$0xff]
    %v242 = vld [vmem:[%s1 + $0x608] sm:$0xff]
    %v243 = vld [vmem:[%s1 + $0x610] sm:$0xff]
    %v244 = vld [vmem:[%s1 + $0x618] sm:$0xff]
    %v245 = vld [vmem:[%s11] sm:$0xf]
    %v247 = vlaneseq
    %v248 = vshrl.u32 %v247, 7
    %v249 = vsub.s32 0, %v248
    %v250 = vrot.slane %v245, %v249
    %v251 = vlaneseq
    %v252 = vshrl.u32 %v251, 7
    %v253 = vsub.s32 1, %v252
    %v254 = vrot.slane %v245, %v253
    %v255 = vlaneseq
    %v256 = vshrl.u32 %v255, 7
    %v257 = vsub.s32 2, %v256
    %v258 = vrot.slane %v245, %v257
    %v259 = vlaneseq
    %v260 = vshrl.u32 %v259, 7
    %v261 = vsub.s32 3, %v260
    %v262 = vrot.slane %v245, %v261
    %v271 = vunpack.c.l.b16 %v45
    %v272 = vunpack.c.h.b16 %v45
    %v273 = vunpack.c.l.b16 %v46
    %v274 = vunpack.c.h.b16 %v46
    %v275 = vunpack.c.l.b16 %v47
    %v276 = vunpack.c.h.b16 %v47
    %v277 = vunpack.c.l.b16 %v48
    %v278 = vpack.c.b16 %v271, %v271
    %v279 = vpack.c.b16 %v272, %v272
    %v280 = vpack.c.b16 %v273, %v273
    %v281 = vpack.c.b16 %v274, %v274
    %v282 = vpack.c.b16 %v275, %v275
    %v283 = vpack.c.b16 %v276, %v276
    %v284 = vpack.c.b16 %v277, %v277
    %v487 = vunpack.c.l.b16 %v49
    %v488 = vunpack.c.h.b16 %v49
    %v489 = vunpack.c.l.b16 %v50
    %v490 = vunpack.c.h.b16 %v50
    %v491 = vunpack.c.l.b16 %v51
    %v492 = vunpack.c.h.b16 %v51
    %v493 = vunpack.c.l.b16 %v52
    %v494 = vunpack.c.h.b16 %v52
    %v495 = vunpack.c.l.b16 %v53
    %v496 = vunpack.c.h.b16 %v53
    %v497 = vunpack.c.l.b16 %v54
    %v498 = vunpack.c.h.b16 %v54
    %v499 = vunpack.c.l.b16 %v55
    %v500 = vunpack.c.h.b16 %v55
    %v501 = vunpack.c.l.b16 %v56
    %v502 = vunpack.c.h.b16 %v56
    %v503 = vunpack.c.l.b16 %v57
    %v504 = vunpack.c.h.b16 %v57
    %v505 = vunpack.c.l.b16 %v58
    %v506 = vunpack.c.h.b16 %v58
    %v507 = vunpack.c.l.b16 %v59
    %v508 = vunpack.c.h.b16 %v59
    %v509 = vunpack.c.l.b16 %v60
    %v510 = vunpack.c.h.b16 %v60
    %v511 = vunpack.c.l.b16 %v61
    %v512 = vunpack.c.h.b16 %v61
    %v513 = vunpack.c.l.b16 %v62
    %v514 = vunpack.c.h.b16 %v62
    %v515 = vunpack.c.l.b16 %v63
    %v516 = vunpack.c.h.b16 %v63
    %v517 = vunpack.c.l.b16 %v64
    %v518 = vunpack.c.h.b16 %v64
    %v519 = vunpack.c.l.b16 %v65
    %v520 = vunpack.c.h.b16 %v65
    %v521 = vunpack.c.l.b16 %v66
    %v522 = vunpack.c.h.b16 %v66
    %v523 = vunpack.c.l.b16 %v67
    %v524 = vunpack.c.h.b16 %v67
    %v525 = vunpack.c.l.b16 %v68
    %v526 = vunpack.c.h.b16 %v68
    %v527 = vunpack.c.l.b16 %v69
    %v528 = vunpack.c.h.b16 %v69
    %v529 = vunpack.c.l.b16 %v70
    %v530 = vunpack.c.h.b16 %v70
    %v531 = vunpack.c.l.b16 %v71
    %v532 = vunpack.c.h.b16 %v71
    %v533 = vunpack.c.l.b16 %v72
    %v534 = vunpack.c.h.b16 %v72
    %v535 = vunpack.c.l.b16 %v73
    %v536 = vunpack.c.h.b16 %v73
    %v537 = vunpack.c.l.b16 %v74
    %v538 = vunpack.c.h.b16 %v74
    %v539 = vunpack.c.l.b16 %v75
    %v540 = vunpack.c.h.b16 %v75
    %v541 = vunpack.c.l.b16 %v76
    %v542 = vunpack.c.h.b16 %v76
    %v543 = vunpack.c.l.b16 %v77
    %v544 = vunpack.c.h.b16 %v77
    %v545 = vunpack.c.l.b16 %v78
    %v546 = vunpack.c.h.b16 %v78
    %v547 = vunpack.c.l.b16 %v79
    %v548 = vunpack.c.h.b16 %v79
    %v549 = vunpack.c.l.b16 %v80
    %v550 = vunpack.c.h.b16 %v80
    %v551 = vunpack.c.l.b16 %v81
    %v552 = vunpack.c.h.b16 %v81
    %v553 = vunpack.c.l.b16 %v82
    %v554 = vunpack.c.h.b16 %v82
    %v555 = vunpack.c.l.b16 %v83
    %v556 = vunpack.c.h.b16 %v83
    %v557 = vunpack.c.l.b16 %v84
    %v558 = vunpack.c.h.b16 %v84
    %v559 = vunpack.c.l.b16 %v85
    %v560 = vunpack.c.h.b16 %v85
    %v561 = vunpack.c.l.b16 %v86
    %v562 = vunpack.c.h.b16 %v86
    %v563 = vunpack.c.l.b16 %v87
    %v564 = vunpack.c.h.b16 %v87
    %v565 = vunpack.c.l.b16 %v88
    %v566 = vunpack.c.h.b16 %v88
    %v567 = vunpack.c.l.b16 %v89
    %v568 = vunpack.c.h.b16 %v89
    %v569 = vunpack.c.l.b16 %v90
    %v570 = vunpack.c.h.b16 %v90
    %v571 = vunpack.c.l.b16 %v91
    %v572 = vunpack.c.h.b16 %v91
    %v573 = vunpack.c.l.b16 %v92
    %v574 = vunpack.c.h.b16 %v92
    %v575 = vunpack.c.l.b16 %v93
    %v576 = vunpack.c.h.b16 %v93
    %v577 = vunpack.c.l.b16 %v94
    %v578 = vunpack.c.h.b16 %v94
    %v579 = vunpack.c.l.b16 %v95
    %v580 = vunpack.c.h.b16 %v95
    %v581 = vunpack.c.l.b16 %v96
    %v582 = vunpack.c.h.b16 %v96
    %v583 = vunpack.c.l.b16 %v97
    %v584 = vunpack.c.h.b16 %v97
    %v585 = vunpack.c.l.b16 %v98
    %v586 = vunpack.c.h.b16 %v98
    %v587 = vunpack.c.l.b16 %v99
    %v588 = vunpack.c.h.b16 %v99
    %v589 = vunpack.c.l.b16 %v100
    %v590 = vunpack.c.h.b16 %v100
    %v591 = vunpack.c.l.b16 %v101
    %v592 = vunpack.c.h.b16 %v101
    %v593 = vunpack.c.l.b16 %v102
    %v594 = vunpack.c.h.b16 %v102
    %v595 = vunpack.c.l.b16 %v103
    %v596 = vunpack.c.h.b16 %v103
    %v597 = vunpack.c.l.b16 %v104
    %v598 = vunpack.c.h.b16 %v104
    %v599 = vunpack.c.l.b16 %v105
    %v600 = vunpack.c.h.b16 %v105
    %v601 = vunpack.c.l.b16 %v106
    %v602 = vunpack.c.h.b16 %v106
    %v603 = vunpack.c.l.b16 %v107
    %v604 = vunpack.c.h.b16 %v107
    %v605 = vunpack.c.l.b16 %v108
    %v606 = vunpack.c.h.b16 %v108
    %v607 = vunpack.c.l.b16 %v109
    %v608 = vunpack.c.h.b16 %v109
    %v609 = vunpack.c.l.b16 %v110
    %v610 = vunpack.c.h.b16 %v110
    %v611 = vunpack.c.l.b16 %v111
    %v612 = vunpack.c.h.b16 %v111
    %v613 = vunpack.c.l.b16 %v112
    %v614 = vunpack.c.h.b16 %v112
    %v615 = vunpack.c.l.b16 %v113
    %v616 = vunpack.c.h.b16 %v113
    %v617 = vunpack.c.l.b16 %v114
    %v618 = vunpack.c.h.b16 %v114
    %v619 = vunpack.c.l.b16 %v115
    %v620 = vunpack.c.h.b16 %v115
    %v621 = vunpack.c.l.b16 %v116
    %v622 = vunpack.c.h.b16 %v116
    %v623 = vunpack.c.l.b16 %v117
    %v624 = vunpack.c.h.b16 %v117
    %v625 = vunpack.c.l.b16 %v118
    %v626 = vunpack.c.h.b16 %v118
    %v627 = vunpack.c.l.b16 %v119
    %v628 = vunpack.c.h.b16 %v119
    %v629 = vunpack.c.l.b16 %v120
    %v630 = vunpack.c.h.b16 %v120
    %v631 = vunpack.c.l.b16 %v121
    %v632 = vunpack.c.h.b16 %v121
    %v633 = vunpack.c.l.b16 %v122
    %v634 = vunpack.c.h.b16 %v122
    %v635 = vunpack.c.l.b16 %v123
    %v636 = vunpack.c.h.b16 %v123
    %v637 = vunpack.c.l.b16 %v124
    %v638 = vunpack.c.h.b16 %v124
    %v639 = vunpack.c.l.b16 %v125
    %v640 = vunpack.c.h.b16 %v125
    %v641 = vunpack.c.l.b16 %v126
    %v642 = vunpack.c.h.b16 %v126
    %v643 = vunpack.c.l.b16 %v127
    %v644 = vunpack.c.h.b16 %v127
    %v645 = vunpack.c.l.b16 %v128
    %v646 = vunpack.c.h.b16 %v128
    %v647 = vunpack.c.l.b16 %v129
    %v648 = vunpack.c.h.b16 %v129
    %v649 = vunpack.c.l.b16 %v130
    %v650 = vunpack.c.h.b16 %v130
    %v651 = vunpack.c.l.b16 %v131
    %v652 = vunpack.c.h.b16 %v131
    %v653 = vunpack.c.l.b16 %v132
    %v654 = vunpack.c.h.b16 %v132
    %v655 = vunpack.c.l.b16 %v133
    %v656 = vunpack.c.h.b16 %v133
    %v657 = vunpack.c.l.b16 %v134
    %v658 = vunpack.c.h.b16 %v134
    %v659 = vunpack.c.l.b16 %v135
    %v660 = vunpack.c.h.b16 %v135
    %v661 = vunpack.c.l.b16 %v136
    %v662 = vunpack.c.h.b16 %v136
    %v663 = vunpack.c.l.b16 %v137
    %v664 = vunpack.c.h.b16 %v137
    %v665 = vunpack.c.l.b16 %v138
    %v666 = vunpack.c.h.b16 %v138
    %v667 = vunpack.c.l.b16 %v139
    %v668 = vunpack.c.h.b16 %v139
    %v669 = vunpack.c.l.b16 %v140
    %v670 = vunpack.c.h.b16 %v140
    %v671 = vunpack.c.l.b16 %v141
    %v672 = vunpack.c.h.b16 %v141
    %v673 = vunpack.c.l.b16 %v142
    %v674 = vunpack.c.h.b16 %v142
    %v675 = vunpack.c.l.b16 %v143
    %v676 = vunpack.c.h.b16 %v143
    %v677 = vunpack.c.l.b16 %v144
    %v678 = vunpack.c.h.b16 %v144
    %v679 = vunpack.c.l.b16 %v145
    %v680 = vunpack.c.h.b16 %v145
    %v681 = vunpack.c.l.b16 %v146
    %v682 = vunpack.c.h.b16 %v146
    %v683 = vunpack.c.l.b16 %v147
    %v684 = vunpack.c.h.b16 %v147
    %v685 = vunpack.c.l.b16 %v148
    %v686 = vunpack.c.h.b16 %v148
    %v687 = vunpack.c.l.b16 %v149
    %v688 = vunpack.c.h.b16 %v149
    %v689 = vunpack.c.l.b16 %v150
    %v690 = vunpack.c.h.b16 %v150
    %v691 = vunpack.c.l.b16 %v151
    %v692 = vunpack.c.h.b16 %v151
    %v693 = vunpack.c.l.b16 %v152
    %v694 = vunpack.c.h.b16 %v152
    %v695 = vunpack.c.l.b16 %v153
    %v696 = vunpack.c.h.b16 %v153
    %v697 = vunpack.c.l.b16 %v154
    %v698 = vunpack.c.h.b16 %v154
    %v699 = vunpack.c.l.b16 %v155
    %v700 = vunpack.c.h.b16 %v155
    %v701 = vunpack.c.l.b16 %v156
    %v702 = vunpack.c.h.b16 %v156
    %v703 = vunpack.c.l.b16 %v157
    %v704 = vunpack.c.h.b16 %v157
    %v705 = vunpack.c.l.b16 %v158
    %v706 = vunpack.c.h.b16 %v158
    %v707 = vunpack.c.l.b16 %v159
    %v708 = vunpack.c.h.b16 %v159
    %v709 = vunpack.c.l.b16 %v160
    %v710 = vunpack.c.h.b16 %v160
    %v711 = vunpack.c.l.b16 %v161
    %v712 = vunpack.c.h.b16 %v161
    %v713 = vunpack.c.l.b16 %v162
    %v714 = vunpack.c.h.b16 %v162
    %v715 = vunpack.c.l.b16 %v163
    %v716 = vunpack.c.h.b16 %v163
    %v717 = vunpack.c.l.b16 %v164
    %v718 = vunpack.c.h.b16 %v164
    %v719 = vunpack.c.l.b16 %v165
    %v720 = vunpack.c.h.b16 %v165
    %v721 = vunpack.c.l.b16 %v166
    %v722 = vunpack.c.h.b16 %v166
    %v723 = vunpack.c.l.b16 %v167
    %v724 = vunpack.c.h.b16 %v167
    %v725 = vunpack.c.l.b16 %v168
    %v726 = vunpack.c.h.b16 %v168
    %v727 = vunpack.c.l.b16 %v169
    %v728 = vunpack.c.h.b16 %v169
    %v729 = vunpack.c.l.b16 %v170
    %v730 = vunpack.c.h.b16 %v170
    %v731 = vunpack.c.l.b16 %v171
    %v732 = vunpack.c.h.b16 %v171
    %v733 = vunpack.c.l.b16 %v172
    %v734 = vunpack.c.h.b16 %v172
    %v735 = vunpack.c.l.b16 %v173
    %v736 = vunpack.c.h.b16 %v173
    %v737 = vunpack.c.l.b16 %v174
    %v738 = vunpack.c.h.b16 %v174
    %v739 = vunpack.c.l.b16 %v175
    %v740 = vunpack.c.h.b16 %v175
    %v741 = vunpack.c.l.b16 %v176
    %v742 = vunpack.c.h.b16 %v176
    %v743 = vunpack.c.l.b16 %v177
    %v744 = vunpack.c.h.b16 %v177
    %v745 = vunpack.c.l.b16 %v178
    %v746 = vunpack.c.h.b16 %v178
    %v747 = vunpack.c.l.b16 %v179
    %v748 = vunpack.c.h.b16 %v179
    %v749 = vunpack.c.l.b16 %v180
    %v750 = vunpack.c.h.b16 %v180
    %v751 = vunpack.c.l.b16 %v181
    %v752 = vunpack.c.h.b16 %v181
    %v753 = vunpack.c.l.b16 %v182
    %v754 = vunpack.c.h.b16 %v182
    %v755 = vunpack.c.l.b16 %v183
    %v756 = vunpack.c.h.b16 %v183
    %v757 = vunpack.c.l.b16 %v184
    %v758 = vunpack.c.h.b16 %v184
    %v759 = vunpack.c.l.b16 %v185
    %v760 = vunpack.c.h.b16 %v185
    %v761 = vunpack.c.l.b16 %v186
    %v762 = vunpack.c.h.b16 %v186
    %v763 = vunpack.c.l.b16 %v187
    %v764 = vunpack.c.h.b16 %v187
    %v765 = vunpack.c.l.b16 %v188
    %v766 = vunpack.c.h.b16 %v188
    %v767 = vunpack.c.l.b16 %v189
    %v768 = vunpack.c.h.b16 %v189
    %v769 = vunpack.c.l.b16 %v190
    %v770 = vunpack.c.h.b16 %v190
    %v771 = vunpack.c.l.b16 %v191
    %v772 = vunpack.c.h.b16 %v191
    %v773 = vunpack.c.l.b16 %v192
    %v774 = vunpack.c.h.b16 %v192
    %v775 = vunpack.c.l.b16 %v193
    %v776 = vunpack.c.h.b16 %v193
    %v777 = vunpack.c.l.b16 %v194
    %v778 = vunpack.c.h.b16 %v194
    %v779 = vunpack.c.l.b16 %v195
    %v780 = vunpack.c.h.b16 %v195
    %v781 = vunpack.c.l.b16 %v196
    %v782 = vunpack.c.h.b16 %v196
    %v783 = vunpack.c.l.b16 %v197
    %v784 = vunpack.c.h.b16 %v197
    %v785 = vunpack.c.l.b16 %v198
    %v786 = vunpack.c.h.b16 %v198
    %v787 = vunpack.c.l.b16 %v199
    %v788 = vunpack.c.h.b16 %v199
    %v789 = vunpack.c.l.b16 %v200
    %v790 = vunpack.c.h.b16 %v200
    %v791 = vunpack.c.l.b16 %v201
    %v792 = vunpack.c.h.b16 %v201
    %v793 = vunpack.c.l.b16 %v202
    %v794 = vunpack.c.h.b16 %v202
    %v795 = vunpack.c.l.b16 %v203
    %v796 = vunpack.c.h.b16 %v203
    %v797 = vunpack.c.l.b16 %v204
    %v798 = vunpack.c.h.b16 %v204
    %v799 = vunpack.c.l.b16 %v205
    %v800 = vunpack.c.h.b16 %v205
    %v801 = vunpack.c.l.b16 %v206
    %v802 = vunpack.c.h.b16 %v206
    %v803 = vunpack.c.l.b16 %v207
    %v804 = vunpack.c.h.b16 %v207
    %v805 = vunpack.c.l.b16 %v208
    %v806 = vunpack.c.h.b16 %v208
    %v807 = vunpack.c.l.b16 %v209
    %v808 = vunpack.c.h.b16 %v209
    %v809 = vunpack.c.l.b16 %v210
    %v810 = vunpack.c.h.b16 %v210
    %v811 = vunpack.c.l.b16 %v211
    %v812 = vunpack.c.h.b16 %v211
    %v813 = vunpack.c.l.b16 %v212
    %v814 = vunpack.c.h.b16 %v212
    %v815 = vunpack.c.l.b16 %v213
    %v816 = vunpack.c.h.b16 %v213
    %v817 = vunpack.c.l.b16 %v214
    %v818 = vunpack.c.h.b16 %v214
    %v819 = vunpack.c.l.b16 %v215
    %v820 = vunpack.c.h.b16 %v215
    %v821 = vunpack.c.l.b16 %v216
    %v822 = vunpack.c.h.b16 %v216
    %v823 = vunpack.c.l.b16 %v217
    %v824 = vunpack.c.h.b16 %v217
    %v825 = vunpack.c.l.b16 %v218
    %v826 = vunpack.c.h.b16 %v218
    %v827 = vunpack.c.l.b16 %v219
    %v828 = vunpack.c.h.b16 %v219
    %v829 = vunpack.c.l.b16 %v220
    %v830 = vunpack.c.h.b16 %v220
    %v831 = vunpack.c.l.b16 %v221
    %v832 = vunpack.c.h.b16 %v221
    %v833 = vunpack.c.l.b16 %v222
    %v834 = vunpack.c.h.b16 %v222
    %v835 = vunpack.c.l.b16 %v223
    %v836 = vunpack.c.h.b16 %v223
    %v837 = vunpack.c.l.b16 %v224
    %v838 = vunpack.c.h.b16 %v224
    %v839 = vunpack.c.l.b16 %v225
    %v840 = vunpack.c.h.b16 %v225
    %v841 = vunpack.c.l.b16 %v226
    %v842 = vunpack.c.h.b16 %v226
    %v843 = vunpack.c.l.b16 %v227
    %v844 = vunpack.c.h.b16 %v227
    %v845 = vunpack.c.l.b16 %v228
    %v846 = vunpack.c.h.b16 %v228
    %v847 = vunpack.c.l.b16 %v229
    %v848 = vunpack.c.h.b16 %v229
    %v849 = vunpack.c.l.b16 %v230
    %v850 = vunpack.c.h.b16 %v230
    %v851 = vunpack.c.l.b16 %v231
    %v852 = vunpack.c.h.b16 %v231
    %v853 = vunpack.c.l.b16 %v232
    %v854 = vunpack.c.h.b16 %v232
    %v855 = vunpack.c.l.b16 %v233
    %v856 = vunpack.c.h.b16 %v233
    %v857 = vunpack.c.l.b16 %v234
    %v858 = vunpack.c.h.b16 %v234
    %v859 = vunpack.c.l.b16 %v235
    %v860 = vunpack.c.h.b16 %v235
    %v861 = vunpack.c.l.b16 %v236
    %v862 = vunpack.c.h.b16 %v236
    %v863 = vunpack.c.l.b16 %v237
    %v864 = vunpack.c.h.b16 %v237
    %v865 = vunpack.c.l.b16 %v238
    %v866 = vunpack.c.h.b16 %v238
    %v867 = vunpack.c.l.b16 %v239
    %v868 = vunpack.c.h.b16 %v239
    %v869 = vunpack.c.l.b16 %v240
    %v870 = vunpack.c.h.b16 %v240
    %v871 = vunpack.c.l.b16 %v241
    %v872 = vunpack.c.h.b16 %v241
    %v873 = vunpack.c.l.b16 %v242
    %v874 = vunpack.c.h.b16 %v242
    %v875 = vunpack.c.l.b16 %v243
    %v876 = vunpack.c.h.b16 %v243
    %v877 = vunpack.c.l.b16 %v244
    %v878 = vunpack.c.h.b16 %v244
    %v879 = vpack.c.b16 %v491, %v487
    %v880 = vpack.c.b16 %v492, %v488
    %v881 = vpack.c.b16 %v493, %v489
    %v882 = vpack.c.b16 %v494, %v490
    %v883 = vpack.c.b16 %v499, %v495
    %v884 = vpack.c.b16 %v500, %v496
    %v885 = vpack.c.b16 %v501, %v497
    %v886 = vpack.c.b16 %v502, %v498
    %v887 = vpack.c.b16 %v507, %v503
    %v888 = vpack.c.b16 %v508, %v504
    %v889 = vpack.c.b16 %v509, %v505
    %v890 = vpack.c.b16 %v510, %v506
    %v891 = vpack.c.b16 %v515, %v511
    %v892 = vpack.c.b16 %v516, %v512
    %v893 = vpack.c.b16 %v517, %v513
    %v894 = vpack.c.b16 %v518, %v514
    %v895 = vpack.c.b16 %v523, %v519
    %v896 = vpack.c.b16 %v524, %v520
    %v897 = vpack.c.b16 %v525, %v521
    %v898 = vpack.c.b16 %v526, %v522
    %v899 = vpack.c.b16 %v531, %v527
    %v900 = vpack.c.b16 %v532, %v528
    %v901 = vpack.c.b16 %v533, %v529
    %v902 = vpack.c.b16 %v534, %v530
    %v903 = vpack.c.b16 %v539, %v535
    %v904 = vpack.c.b16 %v540, %v536
    %v905 = vpack.c.b16 %v541, %v537
    %v906 = vpack.c.b16 %v542, %v538
    %v907 = vpack.c.b16 %v547, %v543
    %v908 = vpack.c.b16 %v548, %v544
    %v909 = vpack.c.b16 %v549, %v545
    %v910 = vpack.c.b16 %v550, %v546
    %v911 = vpack.c.b16 %v555, %v551
    %v912 = vpack.c.b16 %v556, %v552
    %v913 = vpack.c.b16 %v557, %v553
    %v914 = vpack.c.b16 %v558, %v554
    %v915 = vpack.c.b16 %v563, %v559
    %v916 = vpack.c.b16 %v564, %v560
    %v917 = vpack.c.b16 %v565, %v561
    %v918 = vpack.c.b16 %v566, %v562
    %v919 = vpack.c.b16 %v571, %v567
    %v920 = vpack.c.b16 %v572, %v568
    %v921 = vpack.c.b16 %v573, %v569
    %v922 = vpack.c.b16 %v574, %v570
    %v923 = vpack.c.b16 %v579, %v575
    %v924 = vpack.c.b16 %v580, %v576
    %v925 = vpack.c.b16 %v581, %v577
    %v926 = vpack.c.b16 %v582, %v578
    %v927 = vpack.c.b16 %v587, %v583
    %v928 = vpack.c.b16 %v588, %v584
    %v929 = vpack.c.b16 %v589, %v585
    %v930 = vpack.c.b16 %v590, %v586
    %v931 = vpack.c.b16 %v595, %v591
    %v932 = vpack.c.b16 %v596, %v592
    %v933 = vpack.c.b16 %v597, %v593
    %v934 = vpack.c.b16 %v598, %v594
    %v935 = vpack.c.b16 %v603, %v599
    %v936 = vpack.c.b16 %v604, %v600
    %v937 = vpack.c.b16 %v605, %v601
    %v938 = vpack.c.b16 %v606, %v602
    %v939 = vpack.c.b16 %v611, %v607
    %v940 = vpack.c.b16 %v612, %v608
    %v941 = vpack.c.b16 %v613, %v609
    %v942 = vpack.c.b16 %v614, %v610
    %v943 = vpack.c.b16 %v619, %v615
    %v944 = vpack.c.b16 %v620, %v616
    %v945 = vpack.c.b16 %v621, %v617
    %v946 = vpack.c.b16 %v622, %v618
    %v947 = vpack.c.b16 %v627, %v623
    %v948 = vpack.c.b16 %v628, %v624
    %v949 = vpack.c.b16 %v629, %v625
    %v950 = vpack.c.b16 %v630, %v626
    %v951 = vpack.c.b16 %v635, %v631
    %v952 = vpack.c.b16 %v636, %v632
    %v953 = vpack.c.b16 %v637, %v633
    %v954 = vpack.c.b16 %v638, %v634
    %v955 = vpack.c.b16 %v643, %v639
    %v956 = vpack.c.b16 %v644, %v640
    %v957 = vpack.c.b16 %v645, %v641
    %v958 = vpack.c.b16 %v646, %v642
    %v959 = vpack.c.b16 %v651, %v647
    %v960 = vpack.c.b16 %v652, %v648
    %v961 = vpack.c.b16 %v653, %v649
    %v962 = vpack.c.b16 %v654, %v650
    %v963 = vpack.c.b16 %v659, %v655
    %v964 = vpack.c.b16 %v660, %v656
    %v965 = vpack.c.b16 %v661, %v657
    %v966 = vpack.c.b16 %v662, %v658
    %v967 = vpack.c.b16 %v667, %v663
    %v968 = vpack.c.b16 %v668, %v664
    %v969 = vpack.c.b16 %v669, %v665
    %v970 = vpack.c.b16 %v670, %v666
    %v971 = vpack.c.b16 %v675, %v671
    %v972 = vpack.c.b16 %v676, %v672
    %v973 = vpack.c.b16 %v677, %v673
    %v974 = vpack.c.b16 %v678, %v674
    %v975 = vpack.c.b16 %v683, %v679
    %v976 = vpack.c.b16 %v684, %v680
    %v977 = vpack.c.b16 %v685, %v681
    %v978 = vpack.c.b16 %v686, %v682
    %v979 = vpack.c.b16 %v691, %v687
    %v980 = vpack.c.b16 %v692, %v688
    %v981 = vpack.c.b16 %v693, %v689
    %v982 = vpack.c.b16 %v694, %v690
    %v983 = vpack.c.b16 %v699, %v695
    %v984 = vpack.c.b16 %v700, %v696
    %v985 = vpack.c.b16 %v701, %v697
    %v986 = vpack.c.b16 %v702, %v698
    %v987 = vpack.c.b16 %v707, %v703
    %v988 = vpack.c.b16 %v708, %v704
    %v989 = vpack.c.b16 %v709, %v705
    %v990 = vpack.c.b16 %v710, %v706
    %v991 = vpack.c.b16 %v715, %v711
    %v992 = vpack.c.b16 %v716, %v712
    %v993 = vpack.c.b16 %v717, %v713
    %v994 = vpack.c.b16 %v718, %v714
    %v995 = vpack.c.b16 %v723, %v719
    %v996 = vpack.c.b16 %v724, %v720
    %v997 = vpack.c.b16 %v725, %v721
    %v998 = vpack.c.b16 %v726, %v722
    %v999 = vpack.c.b16 %v731, %v727
    %v1000 = vpack.c.b16 %v732, %v728
    %v1001 = vpack.c.b16 %v733, %v729
    %v1002 = vpack.c.b16 %v734, %v730
    %v1003 = vpack.c.b16 %v739, %v735
    %v1004 = vpack.c.b16 %v740, %v736
    %v1005 = vpack.c.b16 %v741, %v737
    %v1006 = vpack.c.b16 %v742, %v738
    %v1007 = vpack.c.b16 %v747, %v743
    %v1008 = vpack.c.b16 %v748, %v744
    %v1009 = vpack.c.b16 %v749, %v745
    %v1010 = vpack.c.b16 %v750, %v746
    %v1011 = vpack.c.b16 %v755, %v751
    %v1012 = vpack.c.b16 %v756, %v752
    %v1013 = vpack.c.b16 %v757, %v753
    %v1014 = vpack.c.b16 %v758, %v754
    %v1015 = vpack.c.b16 %v763, %v759
    %v1016 = vpack.c.b16 %v764, %v760
    %v1017 = vpack.c.b16 %v765, %v761
    %v1018 = vpack.c.b16 %v766, %v762
    %v1019 = vpack.c.b16 %v771, %v767
    %v1020 = vpack.c.b16 %v772, %v768
    %v1021 = vpack.c.b16 %v773, %v769
    %v1022 = vpack.c.b16 %v774, %v770
    %v1023 = vpack.c.b16 %v779, %v775
    %v1024 = vpack.c.b16 %v780, %v776
    %v1025 = vpack.c.b16 %v781, %v777
    %v1026 = vpack.c.b16 %v782, %v778
    %v1027 = vpack.c.b16 %v787, %v783
    %v1028 = vpack.c.b16 %v788, %v784
    %v1029 = vpack.c.b16 %v789, %v785
    %v1030 = vpack.c.b16 %v790, %v786
    %v1031 = vpack.c.b16 %v795, %v791
    %v1032 = vpack.c.b16 %v796, %v792
    %v1033 = vpack.c.b16 %v797, %v793
    %v1034 = vpack.c.b16 %v798, %v794
    %v1035 = vpack.c.b16 %v803, %v799
    %v1036 = vpack.c.b16 %v804, %v800
    %v1037 = vpack.c.b16 %v805, %v801
    %v1038 = vpack.c.b16 %v806, %v802
    %v1039 = vpack.c.b16 %v811, %v807
    %v1040 = vpack.c.b16 %v812, %v808
    %v1041 = vpack.c.b16 %v813, %v809
    %v1042 = vpack.c.b16 %v814, %v810
    %v1043 = vpack.c.b16 %v819, %v815
    %v1044 = vpack.c.b16 %v820, %v816
    %v1045 = vpack.c.b16 %v821, %v817
    %v1046 = vpack.c.b16 %v822, %v818
    %v1047 = vpack.c.b16 %v827, %v823
    %v1048 = vpack.c.b16 %v828, %v824
    %v1049 = vpack.c.b16 %v829, %v825
    %v1050 = vpack.c.b16 %v830, %v826
    %v1051 = vpack.c.b16 %v835, %v831
    %v1052 = vpack.c.b16 %v836, %v832
    %v1053 = vpack.c.b16 %v837, %v833
    %v1054 = vpack.c.b16 %v838, %v834
    %v1055 = vpack.c.b16 %v843, %v839
    %v1056 = vpack.c.b16 %v844, %v840
    %v1057 = vpack.c.b16 %v845, %v841
    %v1058 = vpack.c.b16 %v846, %v842
    %v1059 = vpack.c.b16 %v851, %v847
    %v1060 = vpack.c.b16 %v852, %v848
    %v1061 = vpack.c.b16 %v853, %v849
    %v1062 = vpack.c.b16 %v854, %v850
    %v1063 = vpack.c.b16 %v859, %v855
    %v1064 = vpack.c.b16 %v860, %v856
    %v1065 = vpack.c.b16 %v861, %v857
    %v1066 = vpack.c.b16 %v862, %v858
    %v1067 = vpack.c.b16 %v867, %v863
    %v1068 = vpack.c.b16 %v868, %v864
    %v1069 = vpack.c.b16 %v869, %v865
    %v1070 = vpack.c.b16 %v870, %v866
    %v1071 = vpack.c.b16 %v875, %v871
    %v1072 = vpack.c.b16 %v876, %v872
    %v1073 = vpack.c.b16 %v877, %v873
    %v1074 = vpack.c.b16 %v878, %v874
    %vm1271 = vcmask 130048
    %v1273 = vsel %vm1271, %v284, 0
    %1275 = vmatprep.subr.bf16.mxu0 %v880
    %1276 = vmatpush1.bf16.msra.mxu0 %v879
    %1277 = vmatprep.subr.bf16.mxu0 %v884
    %1278 = vmatpush1.bf16.msra.mxu0 %v883
    %1279 = vmatprep.subr.bf16.mxu0 %v888
    %1280 = vmatpush1.bf16.msra.mxu0 %v887
    %1281 = vmatprep.subr.bf16.mxu0 %v892
    %1282 = vmatpush1.bf16.msra.mxu0 %v891
    %1283 = vmatprep.subr.bf16.mxu0 %v896
    %1284 = vmatpush1.bf16.msra.mxu0 %v895
    %1285 = vmatprep.subr.bf16.mxu0 %v900
    %1286 = vmatpush1.bf16.msra.mxu0 %v899
    %1287 = vmatprep.subr.bf16.mxu0 %v904
    %1288 = vmatpush1.bf16.msra.mxu0 %v903
    %1289 = vmatprep.subr.bf16.mxu0 %v908
    %1290 = vmatpush1.bf16.msra.mxu0 %v907
    %1291 = vmatprep.subr.bf16.mxu0 %v912
    %1292 = vmatpush1.bf16.msra.mxu0 %v911
    %1293 = vmatprep.subr.bf16.mxu0 %v916
    %1294 = vmatpush1.bf16.msra.mxu0 %v915
    %1295 = vmatprep.subr.bf16.mxu0 %v920
    %1296 = vmatpush1.bf16.msra.mxu0 %v919
    %1297 = vmatprep.subr.bf16.mxu0 %v924
    %1298 = vmatpush1.bf16.msra.mxu0 %v923
    %1299 = vmatprep.subr.bf16.mxu0 %v928
    %1300 = vmatpush1.bf16.msra.mxu0 %v927
    %1301 = vmatprep.subr.bf16.mxu0 %v932
    %1302 = vmatpush1.bf16.msra.mxu0 %v931
    %1303 = vmatprep.subr.bf16.mxu0 %v936
    %1304 = vmatpush1.bf16.msra.mxu0 %v935
    %1305 = vmatprep.subr.bf16.mxu0 %v940
    %1306 = vmatpush1.bf16.msra.mxu0 %v939
    %1307 = vmatprep.mubr.bf16.mxu0 %v279
    %1308 = vmatmul.mubr.bf16.gmra.mrb[0].mxu0 %v278
    %v1309 = vpop.f32.mrb[0].mxu0
    %v1310 = vadd.f32 %v250, %v1309
    %v1311 = vpop.f32.mrb[0].mxu0
    %v1312 = vadd.f32 %v254, %v1311
    %v1313 = vpop.f32.mrb[0].mxu0
    %v1314 = vpop.f32.mrb[0].mxu0
    %1315 = vdwg.mxu0
    %1316 = vmatprep.subr.bf16.mxu0 %v944
    %1317 = vmatpush1.bf16.msra.mxu0 %v943
    %1318 = vmatprep.subr.bf16.mxu0 %v948
    %1319 = vmatpush1.bf16.msra.mxu0 %v947
    %1320 = vmatprep.subr.bf16.mxu0 %v952
    %1321 = vmatpush1.bf16.msra.mxu0 %v951
    %1322 = vmatprep.subr.bf16.mxu0 %v956
    %1323 = vmatpush1.bf16.msra.mxu0 %v955
    %1324 = vmatprep.subr.bf16.mxu0 %v960
    %1325 = vmatpush1.bf16.msra.mxu0 %v959
    %1326 = vmatprep.subr.bf16.mxu0 %v964
    %1327 = vmatpush1.bf16.msra.mxu0 %v963
    %1328 = vmatprep.subr.bf16.mxu0 %v968
    %1329 = vmatpush1.bf16.msra.mxu0 %v967
    %1330 = vmatprep.subr.bf16.mxu0 %v972
    %1331 = vmatpush1.bf16.msra.mxu0 %v971
    %1332 = vmatprep.subr.bf16.mxu0 %v976
    %1333 = vmatpush1.bf16.msra.mxu0 %v975
    %1334 = vmatprep.subr.bf16.mxu0 %v980
    %1335 = vmatpush1.bf16.msra.mxu0 %v979
    %1336 = vmatprep.subr.bf16.mxu0 %v984
    %1337 = vmatpush1.bf16.msra.mxu0 %v983
    %1338 = vmatprep.subr.bf16.mxu0 %v988
    %1339 = vmatpush1.bf16.msra.mxu0 %v987
    %1340 = vmatprep.subr.bf16.mxu0 %v992
    %1341 = vmatpush1.bf16.msra.mxu0 %v991
    %1342 = vmatprep.subr.bf16.mxu0 %v996
    %1343 = vmatpush1.bf16.msra.mxu0 %v995
    %1344 = vmatprep.subr.bf16.mxu0 %v1000
    %1345 = vmatpush1.bf16.msra.mxu0 %v999
    %1346 = vmatprep.subr.bf16.mxu0 %v1004
    %1347 = vmatpush1.bf16.msra.mxu0 %v1003
    %1348 = vmatprep.mubr.bf16.mxu0 %v281
    %1349 = vmatmul.mubr.bf16.gmra.mrb[0].mxu0 %v280
    %v1350 = vpop.f32.mrb[0].mxu0
    %v1351 = vadd.f32 %v1310, %v1350
    %v1352 = vpop.f32.mrb[0].mxu0
    %v1353 = vadd.f32 %v1312, %v1352
    %v1354 = vpop.f32.mrb[0].mxu0
    %v1355 = vpop.f32.mrb[0].mxu0
    %1356 = vdwg.mxu0
    %1357 = vmatprep.subr.bf16.mxu0 %v1008
    %1358 = vmatpush1.bf16.msra.mxu0 %v1007
    %1359 = vmatprep.subr.bf16.mxu0 %v1012
    %1360 = vmatpush1.bf16.msra.mxu0 %v1011
    %1361 = vmatprep.subr.bf16.mxu0 %v1016
    %1362 = vmatpush1.bf16.msra.mxu0 %v1015
    %1363 = vmatprep.subr.bf16.mxu0 %v1020
    %1364 = vmatpush1.bf16.msra.mxu0 %v1019
    %1365 = vmatprep.subr.bf16.mxu0 %v1024
    %1366 = vmatpush1.bf16.msra.mxu0 %v1023
    %1367 = vmatprep.subr.bf16.mxu0 %v1028
    %1368 = vmatpush1.bf16.msra.mxu0 %v1027
    %1369 = vmatprep.subr.bf16.mxu0 %v1032
    %1370 = vmatpush1.bf16.msra.mxu0 %v1031
    %1371 = vmatprep.subr.bf16.mxu0 %v1036
    %1372 = vmatpush1.bf16.msra.mxu0 %v1035
    %1373 = vmatprep.subr.bf16.mxu0 %v1040
    %1374 = vmatpush1.bf16.msra.mxu0 %v1039
    %1375 = vmatprep.subr.bf16.mxu0 %v1044
    %1376 = vmatpush1.bf16.msra.mxu0 %v1043
    %1377 = vmatprep.subr.bf16.mxu0 %v1048
    %1378 = vmatpush1.bf16.msra.mxu0 %v1047
    %1379 = vmatprep.subr.bf16.mxu0 %v1052
    %1380 = vmatpush1.bf16.msra.mxu0 %v1051
    %1381 = vmatprep.subr.bf16.mxu0 %v1056
    %1382 = vmatpush1.bf16.msra.mxu0 %v1055
    %1383 = vmatprep.subr.bf16.mxu0 %v1060
    %1384 = vmatpush1.bf16.msra.mxu0 %v1059
    %1385 = vmatprep.subr.bf16.mxu0 %v1064
    %1386 = vmatpush1.bf16.msra.mxu0 %v1063
    %1387 = vmatprep.subr.bf16.mxu0 %v1068
    %1388 = vmatpush1.bf16.msra.mxu0 %v1067
    %1389 = vmatprep.mubr.bf16.mxu0 %v283
    %1390 = vmatmul.mubr.bf16.gmra.mrb[0].mxu0 %v282
    %v1391 = vpop.f32.mrb[0].mxu0
    %v1392 = vadd.f32 %v1351, %v1391
    %v1393 = vpop.f32.mrb[0].mxu0
    %v1394 = vadd.f32 %v1353, %v1393
    %v1395 = vpop.f32.mrb[0].mxu0
    %v1396 = vpop.f32.mrb[0].mxu0
    %1397 = vdwg.mxu0
    %1398 = vmatprep.subr.bf16.mxu0 %v1072
    %1399 = vmatpush1.bf16.msra.mxu0 %v1071
    %1400 = vmatprep.subr.bf16.mxu0 0
    %1401 = vmatpush1.bf16.msra.mxu0 0
    %1402 = vmatprep.subr.bf16.mxu0 0
    %1403 = vmatpush1.bf16.msra.mxu0 0
    %1404 = vmatprep.subr.bf16.mxu0 0
    %1405 = vmatpush1.bf16.msra.mxu0 0
    %1406 = vmatprep.subr.bf16.mxu0 0
    %1407 = vmatpush1.bf16.msra.mxu0 0
    %1408 = vmatprep.subr.bf16.mxu0 0
    %1409 = vmatpush1.bf16.msra.mxu0 0
    %1410 = vmatprep.subr.bf16.mxu0 0
    %1411 = vmatpush1.bf16.msra.mxu0 0
    %1412 = vmatprep.subr.bf16.mxu0 0
    %1413 = vmatpush1.bf16.msra.mxu0 0
    %1414 = vmatprep.subr.bf16.mxu0 0
    %1415 = vmatpush1.bf16.msra.mxu0 0
    %1416 = vmatprep.subr.bf16.mxu0 0
    %1417 = vmatpush1.bf16.msra.mxu0 0
    %1418 = vmatprep.subr.bf16.mxu0 0
    %1419 = vmatpush1.bf16.msra.mxu0 0
    %1420 = vmatprep.subr.bf16.mxu0 0
    %1421 = vmatpush1.bf16.msra.mxu0 0
    %1422 = vmatprep.subr.bf16.mxu0 0
    %1423 = vmatpush1.bf16.msra.mxu0 0
    %1424 = vmatprep.subr.bf16.mxu0 0
    %1425 = vmatpush1.bf16.msra.mxu0 0
    %1426 = vmatprep.subr.bf16.mxu0 0
    %1427 = vmatpush1.bf16.msra.mxu0 0
    %1428 = vmatprep.subr.bf16.mxu0 0
    %1429 = vmatpush1.bf16.msra.mxu0 0
    %1430 = vmatprep.mubr.bf16.mxu0 0
    %1431 = vmatmul.mubr.bf16.gmra.mrb[0].mxu0 %v1273
    %v1432 = vpop.f32.mrb[0].mxu0
    %v1433 = vadd.f32 %v1392, %v1432
    %v1434 = vpop.f32.mrb[0].mxu0
    %v1435 = vadd.f32 %v1394, %v1434
    %v1436 = vpop.f32.mrb[0].mxu0
    %v1437 = vpop.f32.mrb[0].mxu0
    %1438 = vdwg.mxu0
    %1439 = vmatprep.subr.bf16.mxu0 %v882
    %1440 = vmatpush1.bf16.msra.mxu0 %v881
    %1441 = vmatprep.subr.bf16.mxu0 %v886
    %1442 = vmatpush1.bf16.msra.mxu0 %v885
    %1443 = vmatprep.subr.bf16.mxu0 %v890
    %1444 = vmatpush1.bf16.msra.mxu0 %v889
    %1445 = vmatprep.subr.bf16.mxu0 %v894
    %1446 = vmatpush1.bf16.msra.mxu0 %v893
    %1447 = vmatprep.subr.bf16.mxu0 %v898
    %1448 = vmatpush1.bf16.msra.mxu0 %v897
    %1449 = vmatprep.subr.bf16.mxu0 %v902
    %1450 = vmatpush1.bf16.msra.mxu0 %v901
    %1451 = vmatprep.subr.bf16.mxu0 %v906
    %1452 = vmatpush1.bf16.msra.mxu0 %v905
    %1453 = vmatprep.subr.bf16.mxu0 %v910
    %1454 = vmatpush1.bf16.msra.mxu0 %v909
    %1455 = vmatprep.subr.bf16.mxu0 %v914
    %1456 = vmatpush1.bf16.msra.mxu0 %v913
    %1457 = vmatprep.subr.bf16.mxu0 %v918
    %1458 = vmatpush1.bf16.msra.mxu0 %v917
    %1459 = vmatprep.subr.bf16.mxu0 %v922
    %1460 = vmatpush1.bf16.msra.mxu0 %v921
    %1461 = vmatprep.subr.bf16.mxu0 %v926
    %1462 = vmatpush1.bf16.msra.mxu0 %v925
    %1463 = vmatprep.subr.bf16.mxu0 %v930
    %1464 = vmatpush1.bf16.msra.mxu0 %v929
    %1465 = vmatprep.subr.bf16.mxu0 %v934
    %1466 = vmatpush1.bf16.msra.mxu0 %v933
    %1467 = vmatprep.subr.bf16.mxu0 %v938
    %1468 = vmatpush1.bf16.msra.mxu0 %v937
    %1469 = vmatprep.subr.bf16.mxu0 %v942
    %1470 = vmatpush1.bf16.msra.mxu0 %v941
    %1471 = vmatprep.mubr.bf16.mxu0 %v279
    %1472 = vmatmul.mubr.bf16.gmra.mrb[0].mxu0 %v278
    %v1473 = vpop.f32.mrb[0].mxu0
    %v1474 = vadd.f32 %v258, %v1473
    %v1475 = vpop.f32.mrb[0].mxu0
    %v1476 = vadd.f32 %v262, %v1475
    %v1477 = vpop.f32.mrb[0].mxu0
    %v1478 = vpop.f32.mrb[0].mxu0
    %1479 = vdwg.mxu0
    %1480 = vmatprep.subr.bf16.mxu0 %v946
    %1481 = vmatpush1.bf16.msra.mxu0 %v945
    %1482 = vmatprep.subr.bf16.mxu0 %v950
    %1483 = vmatpush1.bf16.msra.mxu0 %v949
    %1484 = vmatprep.subr.bf16.mxu0 %v954
    %1485 = vmatpush1.bf16.msra.mxu0 %v953
    %1486 = vmatprep.subr.bf16.mxu0 %v958
    %1487 = vmatpush1.bf16.msra.mxu0 %v957
    %1488 = vmatprep.subr.bf16.mxu0 %v962
    %1489 = vmatpush1.bf16.msra.mxu0 %v961
    %1490 = vmatprep.subr.bf16.mxu0 %v966
    %1491 = vmatpush1.bf16.msra.mxu0 %v965
    %1492 = vmatprep.subr.bf16.mxu0 %v970
    %1493 = vmatpush1.bf16.msra.mxu0 %v969
    %1494 = vmatprep.subr.bf16.mxu0 %v974
    %1495 = vmatpush1.bf16.msra.mxu0 %v973
    %1496 = vmatprep.subr.bf16.mxu0 %v978
    %1497 = vmatpush1.bf16.msra.mxu0 %v977
    %1498 = vmatprep.subr.bf16.mxu0 %v982
    %1499 = vmatpush1.bf16.msra.mxu0 %v981
    %1500 = vmatprep.subr.bf16.mxu0 %v986
    %1501 = vmatpush1.bf16.msra.mxu0 %v985
    %1502 = vmatprep.subr.bf16.mxu0 %v990
    %1503 = vmatpush1.bf16.msra.mxu0 %v989
    %1504 = vmatprep.subr.bf16.mxu0 %v994
    %1505 = vmatpush1.bf16.msra.mxu0 %v993
    %1506 = vmatprep.subr.bf16.mxu0 %v998
    %1507 = vmatpush1.bf16.msra.mxu0 %v997
    %1508 = vmatprep.subr.bf16.mxu0 %v1002
    %1509 = vmatpush1.bf16.msra.mxu0 %v1001
    %1510 = vmatprep.subr.bf16.mxu0 %v1006
    %1511 = vmatpush1.bf16.msra.mxu0 %v1005
    %1512 = vmatprep.mubr.bf16.mxu0 %v281
    %1513 = vmatmul.mubr.bf16.gmra.mrb[0].mxu0 %v280
    %v1514 = vpop.f32.mrb[0].mxu0
    %v1515 = vadd.f32 %v1474, %v1514
    %v1516 = vpop.f32.mrb[0].mxu0
    %v1517 = vadd.f32 %v1476, %v1516
    %v1518 = vpop.f32.mrb[0].mxu0
    %v1519 = vpop.f32.mrb[0].mxu0
    %1520 = vdwg.mxu0
    %1521 = vmatprep.subr.bf16.mxu0 %v1010
    %1522 = vmatpush1.bf16.msra.mxu0 %v1009
    %1523 = vmatprep.subr.bf16.mxu0 %v1014
    %1524 = vmatpush1.bf16.msra.mxu0 %v1013
    %1525 = vmatprep.subr.bf16.mxu0 %v1018
    %1526 = vmatpush1.bf16.msra.mxu0 %v1017
    %1527 = vmatprep.subr.bf16.mxu0 %v1022
    %1528 = vmatpush1.bf16.msra.mxu0 %v1021
    %1529 = vmatprep.subr.bf16.mxu0 %v1026
    %1530 = vmatpush1.bf16.msra.mxu0 %v1025
    %1531 = vmatprep.subr.bf16.mxu0 %v1030
    %1532 = vmatpush1.bf16.msra.mxu0 %v1029
    %1533 = vmatprep.subr.bf16.mxu0 %v1034
    %1534 = vmatpush1.bf16.msra.mxu0 %v1033
    %1535 = vmatprep.subr.bf16.mxu0 %v1038
    %1536 = vmatpush1.bf16.msra.mxu0 %v1037
    %1537 = vmatprep.subr.bf16.mxu0 %v1042
    %1538 = vmatpush1.bf16.msra.mxu0 %v1041
    %1539 = vmatprep.subr.bf16.mxu0 %v1046
    %1540 = vmatpush1.bf16.msra.mxu0 %v1045
    %1541 = vmatprep.subr.bf16.mxu0 %v1050
    %1542 = vmatpush1.bf16.msra.mxu0 %v1049
    %1543 = vmatprep.subr.bf16.mxu0 %v1054
    %1544 = vmatpush1.bf16.msra.mxu0 %v1053
    %1545 = vmatprep.subr.bf16.mxu0 %v1058
    %1546 = vmatpush1.bf16.msra.mxu0 %v1057
    %1547 = vmatprep.subr.bf16.mxu0 %v1062
    %1548 = vmatpush1.bf16.msra.mxu0 %v1061
    %1549 = vmatprep.subr.bf16.mxu0 %v1066
    %1550 = vmatpush1.bf16.msra.mxu0 %v1065
    %1551 = vmatprep.subr.bf16.mxu0 %v1070
    %1552 = vmatpush1.bf16.msra.mxu0 %v1069
    %1553 = vmatprep.mubr.bf16.mxu0 %v283
    %1554 = vmatmul.mubr.bf16.gmra.mrb[0].mxu0 %v282
    %v1555 = vpop.f32.mrb[0].mxu0
    %v1556 = vadd.f32 %v1515, %v1555
    %v1557 = vpop.f32.mrb[0].mxu0
    %v1558 = vadd.f32 %v1517, %v1557
    %v1559 = vpop.f32.mrb[0].mxu0
    %v1560 = vpop.f32.mrb[0].mxu0
    %1561 = vdwg.mxu0
    %1562 = vmatprep.subr.bf16.mxu0 %v1074
    %1563 = vmatpush1.bf16.msra.mxu0 %v1073
    %1564 = vmatprep.subr.bf16.mxu0 0
    %1565 = vmatpush1.bf16.msra.mxu0 0
    %1566 = vmatprep.subr.bf16.mxu0 0
    %1567 = vmatpush1.bf16.msra.mxu0 0
    %1568 = vmatprep.subr.bf16.mxu0 0
    %1569 = vmatpush1.bf16.msra.mxu0 0
    %1570 = vmatprep.subr.bf16.mxu0 0
    %1571 = vmatpush1.bf16.msra.mxu0 0
    %1572 = vmatprep.subr.bf16.mxu0 0
    %1573 = vmatpush1.bf16.msra.mxu0 0
    %1574 = vmatprep.subr.bf16.mxu0 0
    %1575 = vmatpush1.bf16.msra.mxu0 0
    %1576 = vmatprep.subr.bf16.mxu0 0
    %1577 = vmatpush1.bf16.msra.mxu0 0
    %1578 = vmatprep.subr.bf16.mxu0 0
    %1579 = vmatpush1.bf16.msra.mxu0 0
    %1580 = vmatprep.subr.bf16.mxu0 0
    %1581 = vmatpush1.bf16.msra.mxu0 0
    %1582 = vmatprep.subr.bf16.mxu0 0
    %1583 = vmatpush1.bf16.msra.mxu0 0
    %1584 = vmatprep.subr.bf16.mxu0 0
    %1585 = vmatpush1.bf16.msra.mxu0 0
    %1586 = vmatprep.subr.bf16.mxu0 0
    %1587 = vmatpush1.bf16.msra.mxu0 0
    %1588 = vmatprep.subr.bf16.mxu0 0
    %1589 = vmatpush1.bf16.msra.mxu0 0
    %1590 = vmatprep.subr.bf16.mxu0 0
    %1591 = vmatpush1.bf16.msra.mxu0 0
    %1592 = vmatprep.subr.bf16.mxu0 0
    %1593 = vmatpush1.bf16.msra.mxu0 0
    %1594 = vmatprep.mubr.bf16.mxu0 0
    %1595 = vmatmul.mubr.bf16.gmra.mrb[0].mxu0 %v1273
    %v1596 = vpop.f32.mrb[0].mxu0
    %v1597 = vadd.f32 %v1556, %v1596
    %v1598 = vpop.f32.mrb[0].mxu0
    %v1599 = vadd.f32 %v1558, %v1598
    %v1600 = vpop.f32.mrb[0].mxu0
    %v1601 = vpop.f32.mrb[0].mxu0
    %1602 = vdwg.mxu0
    %v1603 = vtanh.pop %v1433
    %v1604 = vtanh.pop %v1435
    %v1605 = vtanh.pop %v1597
    %v1606 = vtanh.pop %v1599
    %v1607 = vpack.c.bf16 %v1603, %v1603
    %v1608 = vpack.c.bf16 %v1604, %v1604
    %v1609 = vpack.c.bf16 %v1605, %v1605
    %v1610 = vpack.c.bf16 %v1606, %v1606
    %v1611 = vld [vmem:[%s2] sm:$0xff]
    %v1612 = vld [vmem:[%s2 + $0x8] sm:$0xff]
    %v1613 = vld [vmem:[%s2 + $0x10] sm:$0xff]
    %v1614 = vld [vmem:[%s2 + $0x18] sm:$0xff]
    %v1615 = vld [vmem:[%s2 + $0x20] sm:$0xff]
    %v1616 = vld [vmem:[%s2 + $0x28] sm:$0xff]
    %v1617 = vld [vmem:[%s2 + $0x30] sm:$0xff]
    %v1618 = vld [vmem:[%s2 + $0x38] sm:$0xff]
    %v1619 = vld [vmem:[%s2 + $0x40] sm:$0xff]
    %v1620 = vld [vmem:[%s2 + $0x48] sm:$0xff]
    %v1621 = vld [vmem:[%s2 + $0x50] sm:$0xff]
    %v1622 = vld [vmem:[%s2 + $0x58] sm:$0xff]
    %v1623 = vld [vmem:[%s2 + $0x60] sm:$0xff]
    %v1624 = vld [vmem:[%s2 + $0x68] sm:$0xff]
    %v1625 = vld [vmem:[%s2 + $0x70] sm:$0xff]
    %v1626 = vld [vmem:[%s2 + $0x78] sm:$0xff]
    %v1627 = vld [vmem:[%s2 + $0x80] sm:$0xff]
    %v1628 = vld [vmem:[%s2 + $0x88] sm:$0xff]
    %v1629 = vld [vmem:[%s2 + $0x90] sm:$0xff]
    %v1630 = vld [vmem:[%s2 + $0x98] sm:$0xff]
    %v1631 = vld [vmem:[%s2 + $0xa0] sm:$0xff]
    %v1632 = vld [vmem:[%s2 + $0xa8] sm:$0xff]
    %v1633 = vld [vmem:[%s2 + $0xb0] sm:$0xff]
    %v1634 = vld [vmem:[%s2 + $0xb8] sm:$0xff]
    %v1635 = vld [vmem:[%s2 + $0xc0] sm:$0xff]
    %v1636 = vld [vmem:[%s2 + $0xc8] sm:$0xff]
    %v1637 = vld [vmem:[%s2 + $0xd0] sm:$0xff]
    %v1638 = vld [vmem:[%s2 + $0xd8] sm:$0xff]
    %v1639 = vld [vmem:[%s2 + $0xe0] sm:$0xff]
    %v1640 = vld [vmem:[%s2 + $0xe8] sm:$0xff]
    %v1641 = vld [vmem:[%s2 + $0xf0] sm:$0xff]
    %v1642 = vld [vmem:[%s2 + $0xf8] sm:$0xff]
    %v1643 = vld [vmem:[%s2 + $0x100] sm:$0xff]
    %v1644 = vld [vmem:[%s2 + $0x108] sm:$0xff]
    %v1645 = vld [vmem:[%s2 + $0x110] sm:$0xff]
    %v1646 = vld [vmem:[%s2 + $0x118] sm:$0xff]
    %v1647 = vld [vmem:[%s2 + $0x120] sm:$0xff]
    %v1648 = vld [vmem:[%s2 + $0x128] sm:$0xff]
    %v1649 = vld [vmem:[%s2 + $0x130] sm:$0xff]
    %v1650 = vld [vmem:[%s2 + $0x138] sm:$0xff]
    %v1651 = vld [vmem:[%s2 + $0x140] sm:$0xff]
    %v1652 = vld [vmem:[%s2 + $0x148] sm:$0xff]
    %v1653 = vld [vmem:[%s2 + $0x150] sm:$0xff]
    %v1654 = vld [vmem:[%s2 + $0x158] sm:$0xff]
    %v1655 = vld [vmem:[%s2 + $0x160] sm:$0xff]
    %v1656 = vld [vmem:[%s2 + $0x168] sm:$0xff]
    %v1657 = vld [vmem:[%s2 + $0x170] sm:$0xff]
    %v1658 = vld [vmem:[%s2 + $0x178] sm:$0xff]
    %v1659 = vld [vmem:[%s2 + $0x180] sm:$0xff]
    %v1660 = vld [vmem:[%s2 + $0x188] sm:$0xff]
    %v1661 = vld [vmem:[%s2 + $0x190] sm:$0xff]
    %v1662 = vld [vmem:[%s2 + $0x198] sm:$0xff]
    %v1663 = vld [vmem:[%s2 + $0x1a0] sm:$0xff]
    %v1664 = vld [vmem:[%s2 + $0x1a8] sm:$0xff]
    %v1665 = vld [vmem:[%s2 + $0x1b0] sm:$0xff]
    %v1666 = vld [vmem:[%s2 + $0x1b8] sm:$0xff]
    %v1667 = vld [vmem:[%s2 + $0x1c0] sm:$0xff]
    %v1668 = vld [vmem:[%s2 + $0x1c8] sm:$0xff]
    %v1669 = vld [vmem:[%s2 + $0x1d0] sm:$0xff]
    %v1670 = vld [vmem:[%s2 + $0x1d8] sm:$0xff]
    %v1671 = vld [vmem:[%s2 + $0x1e0] sm:$0xff]
    %v1672 = vld [vmem:[%s2 + $0x1e8] sm:$0xff]
    %v1673 = vld [vmem:[%s2 + $0x1f0] sm:$0xff]
    %v1674 = vld [vmem:[%s2 + $0x1f8] sm:$0xff]
    %v1675 = vld [vmem:[%s11 + $0x4] sm:$0x3]
    %v1677 = vlaneseq
    %v1678 = vshrl.u32 %v1677, 7
    %v1679 = vsub.s32 0, %v1678
    %v1680 = vrot.slane %v1675, %v1679
    %v1681 = vlaneseq
    %v1682 = vshrl.u32 %v1681, 7
    %v1683 = vsub.s32 1, %v1682
    %v1684 = vrot.slane %v1675, %v1683
    %v1751 = vunpack.c.l.b16 %v1611
    %v1752 = vunpack.c.h.b16 %v1611
    %v1753 = vunpack.c.l.b16 %v1612
    %v1754 = vunpack.c.h.b16 %v1612
    %v1755 = vunpack.c.l.b16 %v1613
    %v1756 = vunpack.c.h.b16 %v1613
    %v1757 = vunpack.c.l.b16 %v1614
    %v1758 = vunpack.c.h.b16 %v1614
    %v1759 = vunpack.c.l.b16 %v1615
    %v1760 = vunpack.c.h.b16 %v1615
    %v1761 = vunpack.c.l.b16 %v1616
    %v1762 = vunpack.c.h.b16 %v1616
    %v1763 = vunpack.c.l.b16 %v1617
    %v1764 = vunpack.c.h.b16 %v1617
    %v1765 = vunpack.c.l.b16 %v1618
    %v1766 = vunpack.c.h.b16 %v1618
    %v1767 = vunpack.c.l.b16 %v1619
    %v1768 = vunpack.c.h.b16 %v1619
    %v1769 = vunpack.c.l.b16 %v1620
    %v1770 = vunpack.c.h.b16 %v1620
    %v1771 = vunpack.c.l.b16 %v1621
    %v1772 = vunpack.c.h.b16 %v1621
    %v1773 = vunpack.c.l.b16 %v1622
    %v1774 = vunpack.c.h.b16 %v1622
    %v1775 = vunpack.c.l.b16 %v1623
    %v1776 = vunpack.c.h.b16 %v1623
    %v1777 = vunpack.c.l.b16 %v1624
    %v1778 = vunpack.c.h.b16 %v1624
    %v1779 = vunpack.c.l.b16 %v1625
    %v1780 = vunpack.c.h.b16 %v1625
    %v1781 = vunpack.c.l.b16 %v1626
    %v1782 = vunpack.c.h.b16 %v1626
    %v1783 = vunpack.c.l.b16 %v1627
    %v1784 = vunpack.c.h.b16 %v1627
    %v1785 = vunpack.c.l.b16 %v1628
    %v1786 = vunpack.c.h.b16 %v1628
    %v1787 = vunpack.c.l.b16 %v1629
    %v1788 = vunpack.c.h.b16 %v1629
    %v1789 = vunpack.c.l.b16 %v1630
    %v1790 = vunpack.c.h.b16 %v1630
    %v1791 = vunpack.c.l.b16 %v1631
    %v1792 = vunpack.c.h.b16 %v1631
    %v1793 = vunpack.c.l.b16 %v1632
    %v1794 = vunpack.c.h.b16 %v1632
    %v1795 = vunpack.c.l.b16 %v1633
    %v1796 = vunpack.c.h.b16 %v1633
    %v1797 = vunpack.c.l.b16 %v1634
    %v1798 = vunpack.c.h.b16 %v1634
    %v1799 = vunpack.c.l.b16 %v1635
    %v1800 = vunpack.c.h.b16 %v1635
    %v1801 = vunpack.c.l.b16 %v1636
    %v1802 = vunpack.c.h.b16 %v1636
    %v1803 = vunpack.c.l.b16 %v1637
    %v1804 = vunpack.c.h.b16 %v1637
    %v1805 = vunpack.c.l.b16 %v1638
    %v1806 = vunpack.c.h.b16 %v1638
    %v1807 = vunpack.c.l.b16 %v1639
    %v1808 = vunpack.c.h.b16 %v1639
    %v1809 = vunpack.c.l.b16 %v1640
    %v1810 = vunpack.c.h.b16 %v1640
    %v1811 = vunpack.c.l.b16 %v1641
    %v1812 = vunpack.c.h.b16 %v1641
    %v1813 = vunpack.c.l.b16 %v1642
    %v1814 = vunpack.c.h.b16 %v1642
    %v1815 = vunpack.c.l.b16 %v1643
    %v1816 = vunpack.c.h.b16 %v1643
    %v1817 = vunpack.c.l.b16 %v1644
    %v1818 = vunpack.c.h.b16 %v1644
    %v1819 = vunpack.c.l.b16 %v1645
    %v1820 = vunpack.c.h.b16 %v1645
    %v1821 = vunpack.c.l.b16 %v1646
    %v1822 = vunpack.c.h.b16 %v1646
    %v1823 = vunpack.c.l.b16 %v1647
    %v1824 = vunpack.c.h.b16 %v1647
    %v1825 = vunpack.c.l.b16 %v1648
    %v1826 = vunpack.c.h.b16 %v1648
    %v1827 = vunpack.c.l.b16 %v1649
    %v1828 = vunpack.c.h.b16 %v1649
    %v1829 = vunpack.c.l.b16 %v1650
    %v1830 = vunpack.c.h.b16 %v1650
    %v1831 = vunpack.c.l.b16 %v1651
    %v1832 = vunpack.c.h.b16 %v1651
    %v1833 = vunpack.c.l.b16 %v1652
    %v1834 = vunpack.c.h.b16 %v1652
    %v1835 = vunpack.c.l.b16 %v1653
    %v1836 = vunpack.c.h.b16 %v1653
    %v1837 = vunpack.c.l.b16 %v1654
    %v1838 = vunpack.c.h.b16 %v1654
    %v1839 = vunpack.c.l.b16 %v1655
    %v1840 = vunpack.c.h.b16 %v1655
    %v1841 = vunpack.c.l.b16 %v1656
    %v1842 = vunpack.c.h.b16 %v1656
    %v1843 = vunpack.c.l.b16 %v1657
    %v1844 = vunpack.c.h.b16 %v1657
    %v1845 = vunpack.c.l.b16 %v1658
    %v1846 = vunpack.c.h.b16 %v1658
    %v1847 = vunpack.c.l.b16 %v1659
    %v1848 = vunpack.c.h.b16 %v1659
    %v1849 = vunpack.c.l.b16 %v1660
    %v1850 = vunpack.c.h.b16 %v1660
    %v1851 = vunpack.c.l.b16 %v1661
    %v1852 = vunpack.c.h.b16 %v1661
    %v1853 = vunpack.c.l.b16 %v1662
    %v1854 = vunpack.c.h.b16 %v1662
    %v1855 = vunpack.c.l.b16 %v1663
    %v1856 = vunpack.c.h.b16 %v1663
    %v1857 = vunpack.c.l.b16 %v1664
    %v1858 = vunpack.c.h.b16 %v1664
    %v1859 = vunpack.c.l.b16 %v1665
    %v1860 = vunpack.c.h.b16 %v1665
    %v1861 = vunpack.c.l.b16 %v1666
    %v1862 = vunpack.c.h.b16 %v1666
    %v1863 = vunpack.c.l.b16 %v1667
    %v1864 = vunpack.c.h.b16 %v1667
    %v1865 = vunpack.c.l.b16 %v1668
    %v1866 = vunpack.c.h.b16 %v1668
    %v1867 = vunpack.c.l.b16 %v1669
    %v1868 = vunpack.c.h.b16 %v1669
    %v1869 = vunpack.c.l.b16 %v1670
    %v1870 = vunpack.c.h.b16 %v1670
    %v1871 = vunpack.c.l.b16 %v1671
    %v1872 = vunpack.c.h.b16 %v1671
    %v1873 = vunpack.c.l.b16 %v1672
    %v1874 = vunpack.c.h.b16 %v1672
    %v1875 = vunpack.c.l.b16 %v1673
    %v1876 = vunpack.c.h.b16 %v1673
    %v1877 = vunpack.c.l.b16 %v1674
    %v1878 = vunpack.c.h.b16 %v1674
    %v1879 = vpack.c.b16 %v1753, %v1751
    %v1880 = vpack.c.b16 %v1754, %v1752
    %v1881 = vpack.c.b16 %v1757, %v1755
    %v1882 = vpack.c.b16 %v1758, %v1756
    %v1883 = vpack.c.b16 %v1761, %v1759
    %v1884 = vpack.c.b16 %v1762, %v1760
    %v1885 = vpack.c.b16 %v1765, %v1763
    %v1886 = vpack.c.b16 %v1766, %v1764
    %v1887 = vpack.c.b16 %v1769, %v1767
    %v1888 = vpack.c.b16 %v1770, %v1768
    %v1889 = vpack.c.b16 %v1773, %v1771
    %v1890 = vpack.c.b16 %v1774, %v1772
    %v1891 = vpack.c.b16 %v1777, %v1775
    %v1892 = vpack.c.b16 %v1778, %v1776
    %v1893 = vpack.c.b16 %v1781, %v1779
    %v1894 = vpack.c.b16 %v1782, %v1780
    %v1895 = vpack.c.b16 %v1785, %v1783
    %v1896 = vpack.c.b16 %v1786, %v1784
    %v1897 = vpack.c.b16 %v1789, %v1787
    %v1898 = vpack.c.b16 %v1790, %v1788
    %v1899 = vpack.c.b16 %v1793, %v1791
    %v1900 = vpack.c.b16 %v1794, %v1792
    %v1901 = vpack.c.b16 %v1797, %v1795
    %v1902 = vpack.c.b16 %v1798, %v1796
    %v1903 = vpack.c.b16 %v1801, %v1799
    %v1904 = vpack.c.b16 %v1802, %v1800
    %v1905 = vpack.c.b16 %v1805, %v1803
    %v1906 = vpack.c.b16 %v1806, %v1804
    %v1907 = vpack.c.b16 %v1809, %v1807
    %v1908 = vpack.c.b16 %v1810, %v1808
    %v1909 = vpack.c.b16 %v1813, %v1811
    %v1910 = vpack.c.b16 %v1814, %v1812
    %v1911 = vpack.c.b16 %v1817, %v1815
    %v1912 = vpack.c.b16 %v1818, %v1816
    %v1913 = vpack.c.b16 %v1821, %v1819
    %v1914 = vpack.c.b16 %v1822, %v1820
    %v1915 = vpack.c.b16 %v1825, %v1823
    %v1916 = vpack.c.b16 %v1826, %v1824
    %v1917 = vpack.c.b16 %v1829, %v1827
    %v1918 = vpack.c.b16 %v1830, %v1828
    %v1919 = vpack.c.b16 %v1833, %v1831
    %v1920 = vpack.c.b16 %v1834, %v1832
    %v1921 = vpack.c.b16 %v1837, %v1835
    %v1922 = vpack.c.b16 %v1838, %v1836
    %v1923 = vpack.c.b16 %v1841, %v1839
    %v1924 = vpack.c.b16 %v1842, %v1840
    %v1925 = vpack.c.b16 %v1845, %v1843
    %v1926 = vpack.c.b16 %v1846, %v1844
    %v1927 = vpack.c.b16 %v1849, %v1847
    %v1928 = vpack.c.b16 %v1850, %v1848
    %v1929 = vpack.c.b16 %v1853, %v1851
    %v1930 = vpack.c.b16 %v1854, %v1852
    %v1931 = vpack.c.b16 %v1857, %v1855
    %v1932 = vpack.c.b16 %v1858, %v1856
    %v1933 = vpack.c.b16 %v1861, %v1859
    %v1934 = vpack.c.b16 %v1862, %v1860
    %v1935 = vpack.c.b16 %v1865, %v1863
    %v1936 = vpack.c.b16 %v1866, %v1864
    %v1937 = vpack.c.b16 %v1869, %v1867
    %v1938 = vpack.c.b16 %v1870, %v1868
    %v1939 = vpack.c.b16 %v1873, %v1871
    %v1940 = vpack.c.b16 %v1874, %v1872
    %v1941 = vpack.c.b16 %v1877, %v1875
    %v1942 = vpack.c.b16 %v1878, %v1876
    %2007 = vmatprep.subr.bf16.mxu0 %v1880
    %2008 = vmatpush1.bf16.msra.mxu0 %v1879
    %2009 = vmatprep.subr.bf16.mxu0 %v1882
    %2010 = vmatpush1.bf16.msra.mxu0 %v1881
    %2011 = vmatprep.subr.bf16.mxu0 %v1884
    %2012 = vmatpush1.bf16.msra.mxu0 %v1883
    %2013 = vmatprep.subr.bf16.mxu0 %v1886
    %2014 = vmatpush1.bf16.msra.mxu0 %v1885
    %2015 = vmatprep.subr.bf16.mxu0 %v1888
    %2016 = vmatpush1.bf16.msra.mxu0 %v1887
    %2017 = vmatprep.subr.bf16.mxu0 %v1890
    %2018 = vmatpush1.bf16.msra.mxu0 %v1889
    %2019 = vmatprep.subr.bf16.mxu0 %v1892
    %2020 = vmatpush1.bf16.msra.mxu0 %v1891
    %2021 = vmatprep.subr.bf16.mxu0 %v1894
    %2022 = vmatpush1.bf16.msra.mxu0 %v1893
    %2023 = vmatprep.subr.bf16.mxu0 %v1896
    %2024 = vmatpush1.bf16.msra.mxu0 %v1895
    %2025 = vmatprep.subr.bf16.mxu0 %v1898
    %2026 = vmatpush1.bf16.msra.mxu0 %v1897
    %2027 = vmatprep.subr.bf16.mxu0 %v1900
    %2028 = vmatpush1.bf16.msra.mxu0 %v1899
    %2029 = vmatprep.subr.bf16.mxu0 %v1902
    %2030 = vmatpush1.bf16.msra.mxu0 %v1901
    %2031 = vmatprep.subr.bf16.mxu0 %v1904
    %2032 = vmatpush1.bf16.msra.mxu0 %v1903
    %2033 = vmatprep.subr.bf16.mxu0 %v1906
    %2034 = vmatpush1.bf16.msra.mxu0 %v1905
    %2035 = vmatprep.subr.bf16.mxu0 %v1908
    %2036 = vmatpush1.bf16.msra.mxu0 %v1907
    %2037 = vmatprep.subr.bf16.mxu0 %v1910
    %2038 = vmatpush1.bf16.msra.mxu0 %v1909
    %2039 = vmatprep.mubr.bf16.mxu0 %v1608
    %2040 = vmatmul.mubr.bf16.gmra.mrb[0].mxu0 %v1607
    %v2041 = vpop.f32.mrb[0].mxu0
    %v2042 = vadd.f32 %v1680, %v2041
    %v2043 = vpop.f32.mrb[0].mxu0
    %v2044 = vadd.f32 %v1684, %v2043
    %v2045 = vpop.f32.mrb[0].mxu0
    %v2046 = vpop.f32.mrb[0].mxu0
    %2047 = vdwg.mxu0
    %2048 = vmatprep.subr.bf16.mxu0 %v1912
    %2049 = vmatpush1.bf16.msra.mxu0 %v1911
    %2050 = vmatprep.subr.bf16.mxu0 %v1914
    %2051 = vmatpush1.bf16.msra.mxu0 %v1913
    %2052 = vmatprep.subr.bf16.mxu0 %v1916
    %2053 = vmatpush1.bf16.msra.mxu0 %v1915
    %2054 = vmatprep.subr.bf16.mxu0 %v1918
    %2055 = vmatpush1.bf16.msra.mxu0 %v1917
    %2056 = vmatprep.subr.bf16.mxu0 %v1920
    %2057 = vmatpush1.bf16.msra.mxu0 %v1919
    %2058 = vmatprep.subr.bf16.mxu0 %v1922
    %2059 = vmatpush1.bf16.msra.mxu0 %v1921
    %2060 = vmatprep.subr.bf16.mxu0 %v1924
    %2061 = vmatpush1.bf16.msra.mxu0 %v1923
    %2062 = vmatprep.subr.bf16.mxu0 %v1926
    %2063 = vmatpush1.bf16.msra.mxu0 %v1925
    %2064 = vmatprep.subr.bf16.mxu0 %v1928
    %2065 = vmatpush1.bf16.msra.mxu0 %v1927
    %2066 = vmatprep.subr.bf16.mxu0 %v1930
    %2067 = vmatpush1.bf16.msra.mxu0 %v1929
    %2068 = vmatprep.subr.bf16.mxu0 %v1932
    %2069 = vmatpush1.bf16.msra.mxu0 %v1931
    %2070 = vmatprep.subr.bf16.mxu0 %v1934
    %2071 = vmatpush1.bf16.msra.mxu0 %v1933
    %2072 = vmatprep.subr.bf16.mxu0 %v1936
    %2073 = vmatpush1.bf16.msra.mxu0 %v1935
    %2074 = vmatprep.subr.bf16.mxu0 %v1938
    %2075 = vmatpush1.bf16.msra.mxu0 %v1937
    %2076 = vmatprep.subr.bf16.mxu0 %v1940
    %2077 = vmatpush1.bf16.msra.mxu0 %v1939
    %2078 = vmatprep.subr.bf16.mxu0 %v1942
    %2079 = vmatpush1.bf16.msra.mxu0 %v1941
    %2080 = vmatprep.mubr.bf16.mxu0 %v1610
    %2081 = vmatmul.mubr.bf16.gmra.mrb[0].mxu0 %v1609
    %v2082 = vpop.f32.mrb[0].mxu0
    %v2083 = vadd.f32 %v2042, %v2082
    %v2084 = vpop.f32.mrb[0].mxu0
    %v2085 = vadd.f32 %v2044, %v2084
    %v2086 = vpop.f32.mrb[0].mxu0
    %v2087 = vpop.f32.mrb[0].mxu0
    %2088 = vdwg.mxu0
    %v2089 = vtanh.pop %v2083
    %v2090 = vtanh.pop %v2085
    %v2091 = vpack.c.bf16 %v2089, %v2089
    %v2092 = vpack.c.bf16 %v2090, %v2090
    %v2093 = vld [vmem:[%s3] sm:$0xf]
    %v2094 = vld [vmem:[%s3 + $0x4] sm:$0xf]
    %v2095 = vld [vmem:[%s3 + $0x8] sm:$0xf]
    %v2096 = vld [vmem:[%s3 + $0xc] sm:$0xf]
    %v2097 = vld [vmem:[%s3 + $0x10] sm:$0xf]
    %v2098 = vld [vmem:[%s3 + $0x14] sm:$0xf]
    %v2099 = vld [vmem:[%s3 + $0x18] sm:$0xf]
    %v2100 = vld [vmem:[%s3 + $0x1c] sm:$0xf]
    %v2101 = vld [vmem:[%s3 + $0x20] sm:$0xf]
    %v2102 = vld [vmem:[%s3 + $0x24] sm:$0xf]
    %v2103 = vld [vmem:[%s3 + $0x28] sm:$0xf]
    %v2104 = vld [vmem:[%s3 + $0x2c] sm:$0xf]
    %v2105 = vld [vmem:[%s3 + $0x30] sm:$0xf]
    %v2106 = vld [vmem:[%s3 + $0x34] sm:$0xf]
    %v2107 = vld [vmem:[%s3 + $0x38] sm:$0xf]
    %v2108 = vld [vmem:[%s3 + $0x3c] sm:$0xf]
    %v2109 = vld [vmem:[%s3 + $0x40] sm:$0xf]
    %v2110 = vld [vmem:[%s3 + $0x44] sm:$0xf]
    %v2111 = vld [vmem:[%s3 + $0x48] sm:$0xf]
    %v2112 = vld [vmem:[%s3 + $0x4c] sm:$0xf]
    %v2113 = vld [vmem:[%s3 + $0x50] sm:$0xf]
    %v2114 = vld [vmem:[%s3 + $0x54] sm:$0xf]
    %v2115 = vld [vmem:[%s3 + $0x58] sm:$0xf]
    %v2116 = vld [vmem:[%s3 + $0x5c] sm:$0xf]
    %v2117 = vld [vmem:[%s3 + $0x60] sm:$0xf]
    %v2118 = vld [vmem:[%s3 + $0x64] sm:$0xf]
    %v2119 = vld [vmem:[%s3 + $0x68] sm:$0xf]
    %v2120 = vld [vmem:[%s3 + $0x6c] sm:$0xf]
    %v2121 = vld [vmem:[%s3 + $0x70] sm:$0xf]
    %v2122 = vld [vmem:[%s3 + $0x74] sm:$0xf]
    %v2123 = vld [vmem:[%s3 + $0x78] sm:$0xf]
    %v2124 = vld [vmem:[%s3 + $0x7c] sm:$0xf]
    %v2125 = vld [vmem:[%s11 + $0x6] sm:$0x1]
    %v2127 = vlaneseq
    %v2128 = vshrl.u32 %v2127, 7
    %v2129 = vsub.s32 0, %v2128
    %v2130 = vrot.slane %v2125, %v2129
    %v2164 = vunpack.c.l.b16 %v2093
    %v2165 = vunpack.c.l.b16 %v2094
    %v2166 = vunpack.c.l.b16 %v2095
    %v2167 = vunpack.c.l.b16 %v2096
    %v2168 = vunpack.c.l.b16 %v2097
    %v2169 = vunpack.c.l.b16 %v2098
    %v2170 = vunpack.c.l.b16 %v2099
    %v2171 = vunpack.c.l.b16 %v2100
    %v2172 = vunpack.c.l.b16 %v2101
    %v2173 = vunpack.c.l.b16 %v2102
    %v2174 = vunpack.c.l.b16 %v2103
    %v2175 = vunpack.c.l.b16 %v2104
    %v2176 = vunpack.c.l.b16 %v2105
    %v2177 = vunpack.c.l.b16 %v2106
    %v2178 = vunpack.c.l.b16 %v2107
    %v2179 = vunpack.c.l.b16 %v2108
    %v2180 = vunpack.c.l.b16 %v2109
    %v2181 = vunpack.c.l.b16 %v2110
    %v2182 = vunpack.c.l.b16 %v2111
    %v2183 = vunpack.c.l.b16 %v2112
    %v2184 = vunpack.c.l.b16 %v2113
    %v2185 = vunpack.c.l.b16 %v2114
    %v2186 = vunpack.c.l.b16 %v2115
    %v2187 = vunpack.c.l.b16 %v2116
    %v2188 = vunpack.c.l.b16 %v2117
    %v2189 = vunpack.c.l.b16 %v2118
    %v2190 = vunpack.c.l.b16 %v2119
    %v2191 = vunpack.c.l.b16 %v2120
    %v2192 = vunpack.c.l.b16 %v2121
    %v2193 = vunpack.c.l.b16 %v2122
    %v2194 = vunpack.c.l.b16 %v2123
    %v2195 = vunpack.c.l.b16 %v2124
    %v2196 = vpack.c.b16 %v2165, %v2164
    %v2197 = vpack.c.b16 %v2167, %v2166
    %v2198 = vpack.c.b16 %v2169, %v2168
    %v2199 = vpack.c.b16 %v2171, %v2170
    %v2200 = vpack.c.b16 %v2173, %v2172
    %v2201 = vpack.c.b16 %v2175, %v2174
    %v2202 = vpack.c.b16 %v2177, %v2176
    %v2203 = vpack.c.b16 %v2179, %v2178
    %v2204 = vpack.c.b16 %v2181, %v2180
    %v2205 = vpack.c.b16 %v2183, %v2182
    %v2206 = vpack.c.b16 %v2185, %v2184
    %v2207 = vpack.c.b16 %v2187, %v2186
    %v2208 = vpack.c.b16 %v2189, %v2188
    %v2209 = vpack.c.b16 %v2191, %v2190
    %v2210 = vpack.c.b16 %v2193, %v2192
    %v2211 = vpack.c.b16 %v2195, %v2194
    %2228 = vmatprep.subr.bf16.mxu0 0
    %2229 = vmatpush1.bf16.msra.mxu0 %v2196
    %2230 = vmatprep.subr.bf16.mxu0 0
    %2231 = vmatpush1.bf16.msra.mxu0 %v2197
    %2232 = vmatprep.subr.bf16.mxu0 0
    %2233 = vmatpush1.bf16.msra.mxu0 %v2198
    %2234 = vmatprep.subr.bf16.mxu0 0
    %2235 = vmatpush1.bf16.msra.mxu0 %v2199
    %2236 = vmatprep.subr.bf16.mxu0 0
    %2237 = vmatpush1.bf16.msra.mxu0 %v2200
    %2238 = vmatprep.subr.bf16.mxu0 0
    %2239 = vmatpush1.bf16.msra.mxu0 %v2201
    %2240 = vmatprep.subr.bf16.mxu0 0
    %2241 = vmatpush1.bf16.msra.mxu0 %v2202
    %2242 = vmatprep.subr.bf16.mxu0 0
    %2243 = vmatpush1.bf16.msra.mxu0 %v2203
    %2244 = vmatprep.subr.bf16.mxu0 0
    %2245 = vmatpush1.bf16.msra.mxu0 %v2204
    %2246 = vmatprep.subr.bf16.mxu0 0
    %2247 = vmatpush1.bf16.msra.mxu0 %v2205
    %2248 = vmatprep.subr.bf16.mxu0 0
    %2249 = vmatpush1.bf16.msra.mxu0 %v2206
    %2250 = vmatprep.subr.bf16.mxu0 0
    %2251 = vmatpush1.bf16.msra.mxu0 %v2207
    %2252 = vmatprep.subr.bf16.mxu0 0
    %2253 = vmatpush1.bf16.msra.mxu0 %v2208
    %2254 = vmatprep.subr.bf16.mxu0 0
    %2255 = vmatpush1.bf16.msra.mxu0 %v2209
    %2256 = vmatprep.subr.bf16.mxu0 0
    %2257 = vmatpush1.bf16.msra.mxu0 %v2210
    %2258 = vmatprep.subr.bf16.mxu0 0
    %2259 = vmatpush1.bf16.msra.mxu0 %v2211
    %2260 = vmatprep.mubr.bf16.mxu0 %v2092
    %2261 = vmatmul.mubr.bf16.gmra.mrb[0].mxu0 %v2091
    %v2262 = vpop.f32.mrb[0].mxu0
    %v2263 = vadd.f32 %v2130, %v2262
    %v2264 = vpop.f32.mrb[0].mxu0
    %v2265 = vpop.f32.mrb[0].mxu0
    %v2266 = vpop.f32.mrb[0].mxu0
    %2267 = vdwg.mxu0
    %v2268 = vtanh.pop %v2263
    %v2269 = vpack.c.bf16 %v2268, %v2268
    %v2270 = vld [vmem:[%s4] sm:$0xf]
    %v2271 = vld [vmem:[%s4 + $0x4] sm:$0xf]
    %v2272 = vld [vmem:[%s4 + $0x8] sm:$0xf]
    %v2273 = vld [vmem:[%s4 + $0xc] sm:$0xf]
    %v2274 = vld [vmem:[%s4 + $0x10] sm:$0xf]
    %v2275 = vld [vmem:[%s4 + $0x14] sm:$0xf]
    %v2276 = vld [vmem:[%s4 + $0x18] sm:$0xf]
    %v2277 = vld [vmem:[%s4 + $0x1c] sm:$0xf]
    %v2278 = vld [vmem:[%s4 + $0x20] sm:$0xf]
    %v2279 = vld [vmem:[%s4 + $0x24] sm:$0xf]
    %v2280 = vld [vmem:[%s4 + $0x28] sm:$0xf]
    %v2281 = vld [vmem:[%s4 + $0x2c] sm:$0xf]
    %v2282 = vld [vmem:[%s4 + $0x30] sm:$0xf]
    %v2283 = vld [vmem:[%s4 + $0x34] sm:$0xf]
    %v2284 = vld [vmem:[%s4 + $0x38] sm:$0xf]
    %v2285 = vld [vmem:[%s4 + $0x3c] sm:$0xf]
    %v2286 = vld [vmem:[%s11 + $0x7] sm:$0x1]
    %v2288 = vlaneseq
    %v2289 = vshrl.u32 %v2288, 7
    %v2290 = vsub.s32 0, %v2289
    %v2291 = vrot.slane %v2286, %v2290
    %v2309 = vunpack.c.l.b16 %v2270
    %v2310 = vunpack.c.l.b16 %v2271
    %v2311 = vunpack.c.l.b16 %v2272
    %v2312 = vunpack.c.l.b16 %v2273
    %v2313 = vunpack.c.l.b16 %v2274
    %v2314 = vunpack.c.l.b16 %v2275
    %v2315 = vunpack.c.l.b16 %v2276
    %v2316 = vunpack.c.l.b16 %v2277
    %v2317 = vunpack.c.l.b16 %v2278
    %v2318 = vunpack.c.l.b16 %v2279
    %v2319 = vunpack.c.l.b16 %v2280
    %v2320 = vunpack.c.l.b16 %v2281
    %v2321 = vunpack.c.l.b16 %v2282
    %v2322 = vunpack.c.l.b16 %v2283
    %v2323 = vunpack.c.l.b16 %v2284
    %v2324 = vunpack.c.l.b16 %v2285
    %v2325 = vpack.c.b16 %v2310, %v2309
    %v2326 = vpack.c.b16 %v2312, %v2311
    %v2327 = vpack.c.b16 %v2314, %v2313
    %v2328 = vpack.c.b16 %v2316, %v2315
    %v2329 = vpack.c.b16 %v2318, %v2317
    %v2330 = vpack.c.b16 %v2320, %v2319
    %v2331 = vpack.c.b16 %v2322, %v2321
    %v2332 = vpack.c.b16 %v2324, %v2323
    %2341 = vmatprep.subr.bf16.mxu0 0
    %2342 = vmatpush1.bf16.msra.mxu0 %v2325
    %2343 = vmatprep.subr.bf16.mxu0 0
    %2344 = vmatpush1.bf16.msra.mxu0 %v2326
    %2345 = vmatprep.subr.bf16.mxu0 0
    %2346 = vmatpush1.bf16.msra.mxu0 %v2327
    %2347 = vmatprep.subr.bf16.mxu0 0
    %2348 = vmatpush1.bf16.msra.mxu0 %v2328
    %2349 = vmatprep.subr.bf16.mxu0 0
    %2350 = vmatpush1.bf16.msra.mxu0 %v2329
    %2351 = vmatprep.subr.bf16.mxu0 0
    %2352 = vmatpush1.bf16.msra.mxu0 %v2330
    %2353 = vmatprep.subr.bf16.mxu0 0
    %2354 = vmatpush1.bf16.msra.mxu0 %v2331
    %2355 = vmatprep.subr.bf16.mxu0 0
    %2356 = vmatpush1.bf16.msra.mxu0 %v2332
    %2357 = vmatprep.subr.bf16.mxu0 0
    %2358 = vmatpush1.bf16.msra.mxu0 0
    %2359 = vmatprep.subr.bf16.mxu0 0
    %2360 = vmatpush1.bf16.msra.mxu0 0
    %2361 = vmatprep.subr.bf16.mxu0 0
    %2362 = vmatpush1.bf16.msra.mxu0 0
    %2363 = vmatprep.subr.bf16.mxu0 0
    %2364 = vmatpush1.bf16.msra.mxu0 0
    %2365 = vmatprep.subr.bf16.mxu0 0
    %2366 = vmatpush1.bf16.msra.mxu0 0
    %2367 = vmatprep.subr.bf16.mxu0 0
    %2368 = vmatpush1.bf16.msra.mxu0 0
    %2369 = vmatprep.subr.bf16.mxu0 0
    %2370 = vmatpush1.bf16.msra.mxu0 0
    %2371 = vmatprep.subr.bf16.mxu0 0
    %2372 = vmatpush1.bf16.msra.mxu0 0
    %2373 = vmatprep.mubr.bf16.mxu0 0
    %2374 = vmatmul.mubr.bf16.gmra.mrb[0].mxu0 %v2269
    %v2375 = vpop.f32.mrb[0].mxu0
    %v2376 = vadd.f32 %v2291, %v2375
    %v2377 = vpop.f32.mrb[0].mxu0
    %v2378 = vpop.f32.mrb[0].mxu0
    %v2379 = vpop.f32.mrb[0].mxu0
    %2380 = vdwg.mxu0
    %v2381 = vtanh.pop %v2376
    %v2382 = vpack.c.bf16 %v2381, %v2381
    %v2383 = vld [vmem:[%s5] sm:$0xf]
    %v2384 = vld [vmem:[%s5 + $0x4] sm:$0x1]
    %v2385 = vld [vmem:[%s11 + $0x8] sm:$0x1]
    %v2387 = vlaneseq
    %v2388 = vshrl.u32 %v2387, 7
    %v2389 = vsub.s32 0, %v2388
    %v2390 = vrot.slane %v2385, %v2389
    %v2394 = vunpack.c.l.b16 %v2383
    %v2395 = vunpack.c.l.b16 %v2384
    %v2396 = vpack.c.b16 %v2395, %v2394
    %vm2397 = vcmask 80896
    %v2399 = vsel %vm2397, %v2382, 0
    %vm2401 = vcmask 1044480
    %v2403 = vsel %vm2401, %v2396, 0
    %2405 = vmatprep.subr.bf16.mxu0 0
    %2406 = vmatpush1.bf16.msra.mxu0 %v2403
    %2407 = vmatprep.subr.bf16.mxu0 0
    %2408 = vmatpush1.bf16.msra.mxu0 0
    %2409 = vmatprep.subr.bf16.mxu0 0
    %2410 = vmatpush1.bf16.msra.mxu0 0
    %2411 = vmatprep.subr.bf16.mxu0 0
    %2412 = vmatpush1.bf16.msra.mxu0 0
    %2413 = vmatprep.subr.bf16.mxu0 0
    %2414 = vmatpush1.bf16.msra.mxu0 0
    %2415 = vmatprep.subr.bf16.mxu0 0
    %2416 = vmatpush1.bf16.msra.mxu0 0
    %2417 = vmatprep.subr.bf16.mxu0 0
    %2418 = vmatpush1.bf16.msra.mxu0 0
    %2419 = vmatprep.subr.bf16.mxu0 0
    %2420 = vmatpush1.bf16.msra.mxu0 0
    %2421 = vmatprep.subr.bf16.mxu0 0
    %2422 = vmatpush1.bf16.msra.mxu0 0
    %2423 = vmatprep.subr.bf16.mxu0 0
    %2424 = vmatpush1.bf16.msra.mxu0 0
    %2425 = vmatprep.subr.bf16.mxu0 0
    %2426 = vmatpush1.bf16.msra.mxu0 0
    %2427 = vmatprep.subr.bf16.mxu0 0
    %2428 = vmatpush1.bf16.msra.mxu0 0
    %2429 = vmatprep.subr.bf16.mxu0 0
    %2430 = vmatpush1.bf16.msra.mxu0 0
    %2431 = vmatprep.subr.bf16.mxu0 0
    %2432 = vmatpush1.bf16.msra.mxu0 0
    %2433 = vmatprep.subr.bf16.mxu0 0
    %2434 = vmatpush1.bf16.msra.mxu0 0
    %2435 = vmatprep.subr.bf16.mxu0 0
    %2436 = vmatpush1.bf16.msra.mxu0 0
    %2437 = vmatprep.mubr.bf16.mxu0 0
    %2438 = vmatmul.mubr.bf16.gmra.mrb[0].mxu0 %v2399
    %v2439 = vpop.f32.mrb[0].mxu0
    %v2440 = vadd.f32 %v2390, %v2439
    %v2441 = vpop.f32.mrb[0].mxu0
    %v2442 = vpop.f32.mrb[0].mxu0
    %v2443 = vpop.f32.mrb[0].mxu0
    %2444 = vdwg.mxu0
    %v2445 = vtanh.pop %v2440
    %vm2446 = vcmask 23552
    %2447 = vst.msk [vmem:[%s12] sm:$0xff] %vm2446, %v2445
    %v2448 = vpack.c.bf16 %v2445, %v2445
    %v2449 = vld [vmem:[%s6] sm:$0x3]
    %v2450 = vld [vmem:[%s11 + $0x9] sm:$0x1]
    %v2452 = vlaneseq
    %v2453 = vshrl.u32 %v2452, 7
    %v2454 = vsub.s32 0, %v2453
    %v2455 = vrot.slane %v2450, %v2454
    %v2458 = vsel %vm2446, %v2448, 0
    %vm2460 = vcmask 1040384
    %vm2461 = vcmask 1041408
    %v2462 = vsel %vm2460, 4294967295, 65535
    %v2463 = vsel %vm2461, %v2462, 0
    %v2465 = vand.u32 %v2449, %v2463
    %2467 = vmatprep.subr.bf16.mxu0 0
    %2468 = vmatpush1.bf16.msra.mxu0 %v2465
    %2469 = vmatprep.subr.bf16.mxu0 0
    %2470 = vmatpush1.bf16.msra.mxu0 0
    %2471 = vmatprep.subr.bf16.mxu0 0
    %2472 = vmatpush1.bf16.msra.mxu0 0
    %2473 = vmatprep.subr.bf16.mxu0 0
    %2474 = vmatpush1.bf16.msra.mxu0 0
    %2475 = vmatprep.subr.bf16.mxu0 0
    %2476 = vmatpush1.bf16.msra.mxu0 0
    %2477 = vmatprep.subr.bf16.mxu0 0
    %2478 = vmatpush1.bf16.msra.mxu0 0
    %2479 = vmatprep.subr.bf16.mxu0 0
    %2480 = vmatpush1.bf16.msra.mxu0 0
    %2481 = vmatprep.subr.bf16.mxu0 0
    %2482 = vmatpush1.bf16.msra.mxu0 0
    %2483 = vmatprep.subr.bf16.mxu0 0
    %2484 = vmatpush1.bf16.msra.mxu0 0
    %2485 = vmatprep.subr.bf16.mxu0 0
    %2486 = vmatpush1.bf16.msra.mxu0 0
    %2487 = vmatprep.subr.bf16.mxu0 0
    %2488 = vmatpush1.bf16.msra.mxu0 0
    %2489 = vmatprep.subr.bf16.mxu0 0
    %2490 = vmatpush1.bf16.msra.mxu0 0
    %2491 = vmatprep.subr.bf16.mxu0 0
    %2492 = vmatpush1.bf16.msra.mxu0 0
    %2493 = vmatprep.subr.bf16.mxu0 0
    %2494 = vmatpush1.bf16.msra.mxu0 0
    %2495 = vmatprep.subr.bf16.mxu0 0
    %2496 = vmatpush1.bf16.msra.mxu0 0
    %2497 = vmatprep.subr.bf16.mxu0 0
    %2498 = vmatpush1.bf16.msra.mxu0 0
    %2499 = vmatprep.mubr.bf16.mxu0 0
    %2500 = vmatmul.mubr.bf16.gmra.mrb[0].mxu0 %v2458
    %v2501 = vpop.f32.mrb[0].mxu0
    %v2502 = vadd.f32 %v2455, %v2501
    %v2503 = vpop.f32.mrb[0].mxu0
    %v2504 = vpop.f32.mrb[0].mxu0
    %v2505 = vpop.f32.mrb[0].mxu0
    %2506 = vdwg.mxu0
    %v2507 = vtanh.pop %v2502
    %v2508 = vpack.c.bf16 %v2507, %v2507
    %v2509 = vld [vmem:[%s7] sm:$0xf]
    %v2510 = vld [vmem:[%s7 + $0x4] sm:$0x1]
    %v2511 = vld [vmem:[%s11 + $0xa] sm:$0x1]
    %v2513 = vlaneseq
    %v2514 = vshrl.u32 %v2513, 7
    %v2515 = vsub.s32 0, %v2514
    %v2516 = vrot.slane %v2511, %v2515
    %v2520 = vunpack.c.l.b16 %v2509
    %v2521 = vunpack.c.l.b16 %v2510
    %v2522 = vpack.c.b16 %v2521, %v2520
    %v2524 = vsel %vm2397, %v2508, 0
    %v2527 = vsel %vm2401, %v2522, 0
    %2529 = vmatprep.subr.bf16.mxu0 0
    %2530 = vmatpush1.bf16.msra.mxu0 %v2527
    %2531 = vmatprep.subr.bf16.mxu0 0
    %2532 = vmatpush1.bf16.msra.mxu0 0
    %2533 = vmatprep.subr.bf16.mxu0 0
    %2534 = vmatpush1.bf16.msra.mxu0 0
    %2535 = vmatprep.subr.bf16.mxu0 0
    %2536 = vmatpush1.bf16.msra.mxu0 0
    %2537 = vmatprep.subr.bf16.mxu0 0
    %2538 = vmatpush1.bf16.msra.mxu0 0
    %2539 = vmatprep.subr.bf16.mxu0 0
    %2540 = vmatpush1.bf16.msra.mxu0 0
    %2541 = vmatprep.subr.bf16.mxu0 0
    %2542 = vmatpush1.bf16.msra.mxu0 0
    %2543 = vmatprep.subr.bf16.mxu0 0
    %2544 = vmatpush1.bf16.msra.mxu0 0
    %2545 = vmatprep.subr.bf16.mxu0 0
    %2546 = vmatpush1.bf16.msra.mxu0 0
    %2547 = vmatprep.subr.bf16.mxu0 0
    %2548 = vmatpush1.bf16.msra.mxu0 0
    %2549 = vmatprep.subr.bf16.mxu0 0
    %2550 = vmatpush1.bf16.msra.mxu0 0
    %2551 = vmatprep.subr.bf16.mxu0 0
    %2552 = vmatpush1.bf16.msra.mxu0 0
    %2553 = vmatprep.subr.bf16.mxu0 0
    %2554 = vmatpush1.bf16.msra.mxu0 0
    %2555 = vmatprep.subr.bf16.mxu0 0
    %2556 = vmatpush1.bf16.msra.mxu0 0
    %2557 = vmatprep.subr.bf16.mxu0 0
    %2558 = vmatpush1.bf16.msra.mxu0 0
    %2559 = vmatprep.subr.bf16.mxu0 0
    %2560 = vmatpush1.bf16.msra.mxu0 0
    %2561 = vmatprep.mubr.bf16.mxu0 0
    %2562 = vmatmul.mubr.bf16.gmra.mrb[0].mxu0 %v2524
    %v2563 = vpop.f32.mrb[0].mxu0
    %v2564 = vadd.f32 %v2516, %v2563
    %v2565 = vpop.f32.mrb[0].mxu0
    %v2566 = vpop.f32.mrb[0].mxu0
    %v2567 = vpop.f32.mrb[0].mxu0
    %2568 = vdwg.mxu0
    %v2569 = vtanh.pop %v2564
    %v2570 = vpack.c.bf16 %v2569, %v2569
    %v2571 = vld [vmem:[%s8] sm:$0xff]
    %v2572 = vld [vmem:[%s8 + $0x8] sm:$0xff]
    %v2573 = vld [vmem:[%s8 + $0x10] sm:$0xff]
    %v2574 = vld [vmem:[%s8 + $0x18] sm:$0xff]
    %v2575 = vld [vmem:[%s8 + $0x20] sm:$0xff]
    %v2576 = vld [vmem:[%s8 + $0x28] sm:$0xff]
    %v2577 = vld [vmem:[%s8 + $0x30] sm:$0xff]
    %v2578 = vld [vmem:[%s8 + $0x38] sm:$0xff]
    %v2579 = vld [vmem:[%s8 + $0x40] sm:$0xff]
    %v2580 = vld [vmem:[%s8 + $0x48] sm:$0xff]
    %v2581 = vld [vmem:[%s8 + $0x50] sm:$0xff]
    %v2582 = vld [vmem:[%s8 + $0x58] sm:$0xff]
    %v2583 = vld [vmem:[%s8 + $0x60] sm:$0xff]
    %v2584 = vld [vmem:[%s8 + $0x68] sm:$0xff]
    %v2585 = vld [vmem:[%s8 + $0x70] sm:$0xff]
    %v2586 = vld [vmem:[%s8 + $0x78] sm:$0xff]
    %v2587 = vld [vmem:[%s11 + $0xb] sm:$0x3]
    %v2589 = vlaneseq
    %v2590 = vshrl.u32 %v2589, 7
    %v2591 = vsub.s32 0, %v2590
    %v2592 = vrot.slane %v2587, %v2591
    %v2593 = vlaneseq
    %v2594 = vshrl.u32 %v2593, 7
    %v2595 = vsub.s32 1, %v2594
    %v2596 = vrot.slane %v2587, %v2595
    %v2615 = vunpack.c.l.b16 %v2571
    %v2616 = vunpack.c.h.b16 %v2571
    %v2617 = vunpack.c.l.b16 %v2572
    %v2618 = vunpack.c.h.b16 %v2572
    %v2619 = vunpack.c.l.b16 %v2573
    %v2620 = vunpack.c.h.b16 %v2573
    %v2621 = vunpack.c.l.b16 %v2574
    %v2622 = vunpack.c.h.b16 %v2574
    %v2623 = vunpack.c.l.b16 %v2575
    %v2624 = vunpack.c.h.b16 %v2575
    %v2625 = vunpack.c.l.b16 %v2576
    %v2626 = vunpack.c.h.b16 %v2576
    %v2627 = vunpack.c.l.b16 %v2577
    %v2628 = vunpack.c.h.b16 %v2577
    %v2629 = vunpack.c.l.b16 %v2578
    %v2630 = vunpack.c.h.b16 %v2578
    %v2631 = vunpack.c.l.b16 %v2579
    %v2632 = vunpack.c.h.b16 %v2579
    %v2633 = vunpack.c.l.b16 %v2580
    %v2634 = vunpack.c.h.b16 %v2580
    %v2635 = vunpack.c.l.b16 %v2581
    %v2636 = vunpack.c.h.b16 %v2581
    %v2637 = vunpack.c.l.b16 %v2582
    %v2638 = vunpack.c.h.b16 %v2582
    %v2639 = vunpack.c.l.b16 %v2583
    %v2640 = vunpack.c.h.b16 %v2583
    %v2641 = vunpack.c.l.b16 %v2584
    %v2642 = vunpack.c.h.b16 %v2584
    %v2643 = vunpack.c.l.b16 %v2585
    %v2644 = vunpack.c.h.b16 %v2585
    %v2645 = vunpack.c.l.b16 %v2586
    %v2646 = vunpack.c.h.b16 %v2586
    %v2647 = vpack.c.b16 %v2617, %v2615
    %v2648 = vpack.c.b16 %v2618, %v2616
    %v2649 = vpack.c.b16 %v2621, %v2619
    %v2650 = vpack.c.b16 %v2622, %v2620
    %v2651 = vpack.c.b16 %v2625, %v2623
    %v2652 = vpack.c.b16 %v2626, %v2624
    %v2653 = vpack.c.b16 %v2629, %v2627
    %v2654 = vpack.c.b16 %v2630, %v2628
    %v2655 = vpack.c.b16 %v2633, %v2631
    %v2656 = vpack.c.b16 %v2634, %v2632
    %v2657 = vpack.c.b16 %v2637, %v2635
    %v2658 = vpack.c.b16 %v2638, %v2636
    %v2659 = vpack.c.b16 %v2641, %v2639
    %v2660 = vpack.c.b16 %v2642, %v2640
    %v2661 = vpack.c.b16 %v2645, %v2643
    %v2662 = vpack.c.b16 %v2646, %v2644
    %2679 = vmatprep.subr.bf16.mxu0 %v2648
    %2680 = vmatpush1.bf16.msra.mxu0 %v2647
    %2681 = vmatprep.subr.bf16.mxu0 %v2650
    %2682 = vmatpush1.bf16.msra.mxu0 %v2649
    %2683 = vmatprep.subr.bf16.mxu0 %v2652
    %2684 = vmatpush1.bf16.msra.mxu0 %v2651
    %2685 = vmatprep.subr.bf16.mxu0 %v2654
    %2686 = vmatpush1.bf16.msra.mxu0 %v2653
    %2687 = vmatprep.subr.bf16.mxu0 %v2656
    %2688 = vmatpush1.bf16.msra.mxu0 %v2655
    %2689 = vmatprep.subr.bf16.mxu0 %v2658
    %2690 = vmatpush1.bf16.msra.mxu0 %v2657
    %2691 = vmatprep.subr.bf16.mxu0 %v2660
    %2692 = vmatpush1.bf16.msra.mxu0 %v2659
    %2693 = vmatprep.subr.bf16.mxu0 %v2662
    %2694 = vmatpush1.bf16.msra.mxu0 %v2661
    %2695 = vmatprep.subr.bf16.mxu0 0
    %2696 = vmatpush1.bf16.msra.mxu0 0
    %2697 = vmatprep.subr.bf16.mxu0 0
    %2698 = vmatpush1.bf16.msra.mxu0 0
    %2699 = vmatprep.subr.bf16.mxu0 0
    %2700 = vmatpush1.bf16.msra.mxu0 0
    %2701 = vmatprep.subr.bf16.mxu0 0
    %2702 = vmatpush1.bf16.msra.mxu0 0
    %2703 = vmatprep.subr.bf16.mxu0 0
    %2704 = vmatpush1.bf16.msra.mxu0 0
    %2705 = vmatprep.subr.bf16.mxu0 0
    %2706 = vmatpush1.bf16.msra.mxu0 0
    %2707 = vmatprep.subr.bf16.mxu0 0
    %2708 = vmatpush1.bf16.msra.mxu0 0
    %2709 = vmatprep.subr.bf16.mxu0 0
    %2710 = vmatpush1.bf16.msra.mxu0 0
    %2711 = vmatprep.mubr.bf16.mxu0 0
    %2712 = vmatmul.mubr.bf16.gmra.mrb[0].mxu0 %v2570
    %v2713 = vpop.f32.mrb[0].mxu0
    %v2714 = vadd.f32 %v2592, %v2713
    %v2715 = vpop.f32.mrb[0].mxu0
    %v2716 = vadd.f32 %v2596, %v2715
    %v2717 = vpop.f32.mrb[0].mxu0
    %v2718 = vpop.f32.mrb[0].mxu0
    %2719 = vdwg.mxu0
    %v2720 = vtanh.pop %v2714
    %v2721 = vtanh.pop %v2716
    %v2722 = vpack.c.bf16 %v2720, %v2720
    %v2723 = vpack.c.bf16 %v2721, %v2721
    %v2724 = vld [vmem:[%s9] sm:$0xff]
    %v2725 = vld [vmem:[%s9 + $0x8] sm:$0xff]
    %v2726 = vld [vmem:[%s9 + $0x10] sm:$0xff]
    %v2727 = vld [vmem:[%s9 + $0x18] sm:$0xff]
    %v2728 = vld [vmem:[%s9 + $0x20] sm:$0xff]
    %v2729 = vld [vmem:[%s9 + $0x28] sm:$0xff]
    %v2730 = vld [vmem:[%s9 + $0x30] sm:$0xff]
    %v2731 = vld [vmem:[%s9 + $0x38] sm:$0xff]
    %v2732 = vld [vmem:[%s9 + $0x40] sm:$0xff]
    %v2733 = vld [vmem:[%s9 + $0x48] sm:$0xff]
    %v2734 = vld [vmem:[%s9 + $0x50] sm:$0xff]
    %v2735 = vld [vmem:[%s9 + $0x58] sm:$0xff]
    %v2736 = vld [vmem:[%s9 + $0x60] sm:$0xff]
    %v2737 = vld [vmem:[%s9 + $0x68] sm:$0xff]
    %v2738 = vld [vmem:[%s9 + $0x70] sm:$0xff]
    %v2739 = vld [vmem:[%s9 + $0x78] sm:$0xff]
    %v2740 = vld [vmem:[%s9 + $0x80] sm:$0xff]
    %v2741 = vld [vmem:[%s9 + $0x88] sm:$0xff]
    %v2742 = vld [vmem:[%s9 + $0x90] sm:$0xff]
    %v2743 = vld [vmem:[%s9 + $0x98] sm:$0xff]
    %v2744 = vld [vmem:[%s9 + $0xa0] sm:$0xff]
    %v2745 = vld [vmem:[%s9 + $0xa8] sm:$0xff]
    %v2746 = vld [vmem:[%s9 + $0xb0] sm:$0xff]
    %v2747 = vld [vmem:[%s9 + $0xb8] sm:$0xff]
    %v2748 = vld [vmem:[%s9 + $0xc0] sm:$0xff]
    %v2749 = vld [vmem:[%s9 + $0xc8] sm:$0xff]
    %v2750 = vld [vmem:[%s9 + $0xd0] sm:$0xff]
    %v2751 = vld [vmem:[%s9 + $0xd8] sm:$0xff]
    %v2752 = vld [vmem:[%s9 + $0xe0] sm:$0xff]
    %v2753 = vld [vmem:[%s9 + $0xe8] sm:$0xff]
    %v2754 = vld [vmem:[%s9 + $0xf0] sm:$0xff]
    %v2755 = vld [vmem:[%s9 + $0xf8] sm:$0xff]
    %v2756 = vld [vmem:[%s9 + $0x100] sm:$0xff]
    %v2757 = vld [vmem:[%s9 + $0x108] sm:$0xff]
    %v2758 = vld [vmem:[%s9 + $0x110] sm:$0xff]
    %v2759 = vld [vmem:[%s9 + $0x118] sm:$0xff]
    %v2760 = vld [vmem:[%s9 + $0x120] sm:$0xff]
    %v2761 = vld [vmem:[%s9 + $0x128] sm:$0xff]
    %v2762 = vld [vmem:[%s9 + $0x130] sm:$0xff]
    %v2763 = vld [vmem:[%s9 + $0x138] sm:$0xff]
    %v2764 = vld [vmem:[%s9 + $0x140] sm:$0xff]
    %v2765 = vld [vmem:[%s9 + $0x148] sm:$0xff]
    %v2766 = vld [vmem:[%s9 + $0x150] sm:$0xff]
    %v2767 = vld [vmem:[%s9 + $0x158] sm:$0xff]
    %v2768 = vld [vmem:[%s9 + $0x160] sm:$0xff]
    %v2769 = vld [vmem:[%s9 + $0x168] sm:$0xff]
    %v2770 = vld [vmem:[%s9 + $0x170] sm:$0xff]
    %v2771 = vld [vmem:[%s9 + $0x178] sm:$0xff]
    %v2772 = vld [vmem:[%s9 + $0x180] sm:$0xff]
    %v2773 = vld [vmem:[%s9 + $0x188] sm:$0xff]
    %v2774 = vld [vmem:[%s9 + $0x190] sm:$0xff]
    %v2775 = vld [vmem:[%s9 + $0x198] sm:$0xff]
    %v2776 = vld [vmem:[%s9 + $0x1a0] sm:$0xff]
    %v2777 = vld [vmem:[%s9 + $0x1a8] sm:$0xff]
    %v2778 = vld [vmem:[%s9 + $0x1b0] sm:$0xff]
    %v2779 = vld [vmem:[%s9 + $0x1b8] sm:$0xff]
    %v2780 = vld [vmem:[%s9 + $0x1c0] sm:$0xff]
    %v2781 = vld [vmem:[%s9 + $0x1c8] sm:$0xff]
    %v2782 = vld [vmem:[%s9 + $0x1d0] sm:$0xff]
    %v2783 = vld [vmem:[%s9 + $0x1d8] sm:$0xff]
    %v2784 = vld [vmem:[%s9 + $0x1e0] sm:$0xff]
    %v2785 = vld [vmem:[%s9 + $0x1e8] sm:$0xff]
    %v2786 = vld [vmem:[%s9 + $0x1f0] sm:$0xff]
    %v2787 = vld [vmem:[%s9 + $0x1f8] sm:$0xff]
    %v2788 = vld [vmem:[%s11 + $0xd] sm:$0xf]
    %v2790 = vlaneseq
    %v2791 = vshrl.u32 %v2790, 7
    %v2792 = vsub.s32 0, %v2791
    %v2793 = vrot.slane %v2788, %v2792
    %v2794 = vlaneseq
    %v2795 = vshrl.u32 %v2794, 7
    %v2796 = vsub.s32 1, %v2795
    %v2797 = vrot.slane %v2788, %v2796
    %v2798 = vlaneseq
    %v2799 = vshrl.u32 %v2798, 7
    %v2800 = vsub.s32 2, %v2799
    %v2801 = vrot.slane %v2788, %v2800
    %v2802 = vlaneseq
    %v2803 = vshrl.u32 %v2802, 7
    %v2804 = vsub.s32 3, %v2803
    %v2805 = vrot.slane %v2788, %v2804
    %v2874 = vunpack.c.l.b16 %v2724
    %v2875 = vunpack.c.h.b16 %v2724
    %v2876 = vunpack.c.l.b16 %v2725
    %v2877 = vunpack.c.h.b16 %v2725
    %v2878 = vunpack.c.l.b16 %v2726
    %v2879 = vunpack.c.h.b16 %v2726
    %v2880 = vunpack.c.l.b16 %v2727
    %v2881 = vunpack.c.h.b16 %v2727
    %v2882 = vunpack.c.l.b16 %v2728
    %v2883 = vunpack.c.h.b16 %v2728
    %v2884 = vunpack.c.l.b16 %v2729
    %v2885 = vunpack.c.h.b16 %v2729
    %v2886 = vunpack.c.l.b16 %v2730
    %v2887 = vunpack.c.h.b16 %v2730
    %v2888 = vunpack.c.l.b16 %v2731
    %v2889 = vunpack.c.h.b16 %v2731
    %v2890 = vunpack.c.l.b16 %v2732
    %v2891 = vunpack.c.h.b16 %v2732
    %v2892 = vunpack.c.l.b16 %v2733
    %v2893 = vunpack.c.h.b16 %v2733
    %v2894 = vunpack.c.l.b16 %v2734
    %v2895 = vunpack.c.h.b16 %v2734
    %v2896 = vunpack.c.l.b16 %v2735
    %v2897 = vunpack.c.h.b16 %v2735
    %v2898 = vunpack.c.l.b16 %v2736
    %v2899 = vunpack.c.h.b16 %v2736
    %v2900 = vunpack.c.l.b16 %v2737
    %v2901 = vunpack.c.h.b16 %v2737
    %v2902 = vunpack.c.l.b16 %v2738
    %v2903 = vunpack.c.h.b16 %v2738
    %v2904 = vunpack.c.l.b16 %v2739
    %v2905 = vunpack.c.h.b16 %v2739
    %v2906 = vunpack.c.l.b16 %v2740
    %v2907 = vunpack.c.h.b16 %v2740
    %v2908 = vunpack.c.l.b16 %v2741
    %v2909 = vunpack.c.h.b16 %v2741
    %v2910 = vunpack.c.l.b16 %v2742
    %v2911 = vunpack.c.h.b16 %v2742
    %v2912 = vunpack.c.l.b16 %v2743
    %v2913 = vunpack.c.h.b16 %v2743
    %v2914 = vunpack.c.l.b16 %v2744
    %v2915 = vunpack.c.h.b16 %v2744
    %v2916 = vunpack.c.l.b16 %v2745
    %v2917 = vunpack.c.h.b16 %v2745
    %v2918 = vunpack.c.l.b16 %v2746
    %v2919 = vunpack.c.h.b16 %v2746
    %v2920 = vunpack.c.l.b16 %v2747
    %v2921 = vunpack.c.h.b16 %v2747
    %v2922 = vunpack.c.l.b16 %v2748
    %v2923 = vunpack.c.h.b16 %v2748
    %v2924 = vunpack.c.l.b16 %v2749
    %v2925 = vunpack.c.h.b16 %v2749
    %v2926 = vunpack.c.l.b16 %v2750
    %v2927 = vunpack.c.h.b16 %v2750
    %v2928 = vunpack.c.l.b16 %v2751
    %v2929 = vunpack.c.h.b16 %v2751
    %v2930 = vunpack.c.l.b16 %v2752
    %v2931 = vunpack.c.h.b16 %v2752
    %v2932 = vunpack.c.l.b16 %v2753
    %v2933 = vunpack.c.h.b16 %v2753
    %v2934 = vunpack.c.l.b16 %v2754
    %v2935 = vunpack.c.h.b16 %v2754
    %v2936 = vunpack.c.l.b16 %v2755
    %v2937 = vunpack.c.h.b16 %v2755
    %v2938 = vunpack.c.l.b16 %v2756
    %v2939 = vunpack.c.h.b16 %v2756
    %v2940 = vunpack.c.l.b16 %v2757
    %v2941 = vunpack.c.h.b16 %v2757
    %v2942 = vunpack.c.l.b16 %v2758
    %v2943 = vunpack.c.h.b16 %v2758
    %v2944 = vunpack.c.l.b16 %v2759
    %v2945 = vunpack.c.h.b16 %v2759
    %v2946 = vunpack.c.l.b16 %v2760
    %v2947 = vunpack.c.h.b16 %v2760
    %v2948 = vunpack.c.l.b16 %v2761
    %v2949 = vunpack.c.h.b16 %v2761
    %v2950 = vunpack.c.l.b16 %v2762
    %v2951 = vunpack.c.h.b16 %v2762
    %v2952 = vunpack.c.l.b16 %v2763
    %v2953 = vunpack.c.h.b16 %v2763
    %v2954 = vunpack.c.l.b16 %v2764
    %v2955 = vunpack.c.h.b16 %v2764
    %v2956 = vunpack.c.l.b16 %v2765
    %v2957 = vunpack.c.h.b16 %v2765
    %v2958 = vunpack.c.l.b16 %v2766
    %v2959 = vunpack.c.h.b16 %v2766
    %v2960 = vunpack.c.l.b16 %v2767
    %v2961 = vunpack.c.h.b16 %v2767
    %v2962 = vunpack.c.l.b16 %v2768
    %v2963 = vunpack.c.h.b16 %v2768
    %v2964 = vunpack.c.l.b16 %v2769
    %v2965 = vunpack.c.h.b16 %v2769
    %v2966 = vunpack.c.l.b16 %v2770
    %v2967 = vunpack.c.h.b16 %v2770
    %v2968 = vunpack.c.l.b16 %v2771
    %v2969 = vunpack.c.h.b16 %v2771
    %v2970 = vunpack.c.l.b16 %v2772
    %v2971 = vunpack.c.h.b16 %v2772
    %v2972 = vunpack.c.l.b16 %v2773
    %v2973 = vunpack.c.h.b16 %v2773
    %v2974 = vunpack.c.l.b16 %v2774
    %v2975 = vunpack.c.h.b16 %v2774
    %v2976 = vunpack.c.l.b16 %v2775
    %v2977 = vunpack.c.h.b16 %v2775
    %v2978 = vunpack.c.l.b16 %v2776
    %v2979 = vunpack.c.h.b16 %v2776
    %v2980 = vunpack.c.l.b16 %v2777
    %v2981 = vunpack.c.h.b16 %v2777
    %v2982 = vunpack.c.l.b16 %v2778
    %v2983 = vunpack.c.h.b16 %v2778
    %v2984 = vunpack.c.l.b16 %v2779
    %v2985 = vunpack.c.h.b16 %v2779
    %v2986 = vunpack.c.l.b16 %v2780
    %v2987 = vunpack.c.h.b16 %v2780
    %v2988 = vunpack.c.l.b16 %v2781
    %v2989 = vunpack.c.h.b16 %v2781
    %v2990 = vunpack.c.l.b16 %v2782
    %v2991 = vunpack.c.h.b16 %v2782
    %v2992 = vunpack.c.l.b16 %v2783
    %v2993 = vunpack.c.h.b16 %v2783
    %v2994 = vunpack.c.l.b16 %v2784
    %v2995 = vunpack.c.h.b16 %v2784
    %v2996 = vunpack.c.l.b16 %v2785
    %v2997 = vunpack.c.h.b16 %v2785
    %v2998 = vunpack.c.l.b16 %v2786
    %v2999 = vunpack.c.h.b16 %v2786
    %v3000 = vunpack.c.l.b16 %v2787
    %v3001 = vunpack.c.h.b16 %v2787
    %v3002 = vpack.c.b16 %v2878, %v2874
    %v3003 = vpack.c.b16 %v2879, %v2875
    %v3004 = vpack.c.b16 %v2880, %v2876
    %v3005 = vpack.c.b16 %v2881, %v2877
    %v3006 = vpack.c.b16 %v2886, %v2882
    %v3007 = vpack.c.b16 %v2887, %v2883
    %v3008 = vpack.c.b16 %v2888, %v2884
    %v3009 = vpack.c.b16 %v2889, %v2885
    %v3010 = vpack.c.b16 %v2894, %v2890
    %v3011 = vpack.c.b16 %v2895, %v2891
    %v3012 = vpack.c.b16 %v2896, %v2892
    %v3013 = vpack.c.b16 %v2897, %v2893
    %v3014 = vpack.c.b16 %v2902, %v2898
    %v3015 = vpack.c.b16 %v2903, %v2899
    %v3016 = vpack.c.b16 %v2904, %v2900
    %v3017 = vpack.c.b16 %v2905, %v2901
    %v3018 = vpack.c.b16 %v2910, %v2906
    %v3019 = vpack.c.b16 %v2911, %v2907
    %v3020 = vpack.c.b16 %v2912, %v2908
    %v3021 = vpack.c.b16 %v2913, %v2909
    %v3022 = vpack.c.b16 %v2918, %v2914
    %v3023 = vpack.c.b16 %v2919, %v2915
    %v3024 = vpack.c.b16 %v2920, %v2916
    %v3025 = vpack.c.b16 %v2921, %v2917
    %v3026 = vpack.c.b16 %v2926, %v2922
    %v3027 = vpack.c.b16 %v2927, %v2923
    %v3028 = vpack.c.b16 %v2928, %v2924
    %v3029 = vpack.c.b16 %v2929, %v2925
    %v3030 = vpack.c.b16 %v2934, %v2930
    %v3031 = vpack.c.b16 %v2935, %v2931
    %v3032 = vpack.c.b16 %v2936, %v2932
    %v3033 = vpack.c.b16 %v2937, %v2933
    %v3034 = vpack.c.b16 %v2942, %v2938
    %v3035 = vpack.c.b16 %v2943, %v2939
    %v3036 = vpack.c.b16 %v2944, %v2940
    %v3037 = vpack.c.b16 %v2945, %v2941
    %v3038 = vpack.c.b16 %v2950, %v2946
    %v3039 = vpack.c.b16 %v2951, %v2947
    %v3040 = vpack.c.b16 %v2952, %v2948
    %v3041 = vpack.c.b16 %v2953, %v2949
    %v3042 = vpack.c.b16 %v2958, %v2954
    %v3043 = vpack.c.b16 %v2959, %v2955
    %v3044 = vpack.c.b16 %v2960, %v2956
    %v3045 = vpack.c.b16 %v2961, %v2957
    %v3046 = vpack.c.b16 %v2966, %v2962
    %v3047 = vpack.c.b16 %v2967, %v2963
    %v3048 = vpack.c.b16 %v2968, %v2964
    %v3049 = vpack.c.b16 %v2969, %v2965
    %v3050 = vpack.c.b16 %v2974, %v2970
    %v3051 = vpack.c.b16 %v2975, %v2971
    %v3052 = vpack.c.b16 %v2976, %v2972
    %v3053 = vpack.c.b16 %v2977, %v2973
    %v3054 = vpack.c.b16 %v2982, %v2978
    %v3055 = vpack.c.b16 %v2983, %v2979
    %v3056 = vpack.c.b16 %v2984, %v2980
    %v3057 = vpack.c.b16 %v2985, %v2981
    %v3058 = vpack.c.b16 %v2990, %v2986
    %v3059 = vpack.c.b16 %v2991, %v2987
    %v3060 = vpack.c.b16 %v2992, %v2988
    %v3061 = vpack.c.b16 %v2993, %v2989
    %v3062 = vpack.c.b16 %v2998, %v2994
    %v3063 = vpack.c.b16 %v2999, %v2995
    %v3064 = vpack.c.b16 %v3000, %v2996
    %v3065 = vpack.c.b16 %v3001, %v2997
    %3130 = vmatprep.subr.bf16.mxu0 %v3003
    %3131 = vmatpush1.bf16.msra.mxu0 %v3002
    %3132 = vmatprep.subr.bf16.mxu0 %v3007
    %3133 = vmatpush1.bf16.msra.mxu0 %v3006
    %3134 = vmatprep.subr.bf16.mxu0 %v3011
    %3135 = vmatpush1.bf16.msra.mxu0 %v3010
    %3136 = vmatprep.subr.bf16.mxu0 %v3015
    %3137 = vmatpush1.bf16.msra.mxu0 %v3014
    %3138 = vmatprep.subr.bf16.mxu0 %v3019
    %3139 = vmatpush1.bf16.msra.mxu0 %v3018
    %3140 = vmatprep.subr.bf16.mxu0 %v3023
    %3141 = vmatpush1.bf16.msra.mxu0 %v3022
    %3142 = vmatprep.subr.bf16.mxu0 %v3027
    %3143 = vmatpush1.bf16.msra.mxu0 %v3026
    %3144 = vmatprep.subr.bf16.mxu0 %v3031
    %3145 = vmatpush1.bf16.msra.mxu0 %v3030
    %3146 = vmatprep.subr.bf16.mxu0 %v3035
    %3147 = vmatpush1.bf16.msra.mxu0 %v3034
    %3148 = vmatprep.subr.bf16.mxu0 %v3039
    %3149 = vmatpush1.bf16.msra.mxu0 %v3038
    %3150 = vmatprep.subr.bf16.mxu0 %v3043
    %3151 = vmatpush1.bf16.msra.mxu0 %v3042
    %3152 = vmatprep.subr.bf16.mxu0 %v3047
    %3153 = vmatpush1.bf16.msra.mxu0 %v3046
    %3154 = vmatprep.subr.bf16.mxu0 %v3051
    %3155 = vmatpush1.bf16.msra.mxu0 %v3050
    %3156 = vmatprep.subr.bf16.mxu0 %v3055
    %3157 = vmatpush1.bf16.msra.mxu0 %v3054
    %3158 = vmatprep.subr.bf16.mxu0 %v3059
    %3159 = vmatpush1.bf16.msra.mxu0 %v3058
    %3160 = vmatprep.subr.bf16.mxu0 %v3063
    %3161 = vmatpush1.bf16.msra.mxu0 %v3062
    %3162 = vmatprep.mubr.bf16.mxu0 %v2723
    %3163 = vmatmul.mubr.bf16.gmra.mrb[0].mxu0 %v2722
    %v3164 = vpop.f32.mrb[0].mxu0
    %v3165 = vadd.f32 %v2793, %v3164
    %v3166 = vpop.f32.mrb[0].mxu0
    %v3167 = vadd.f32 %v2797, %v3166
    %v3168 = vpop.f32.mrb[0].mxu0
    %v3169 = vpop.f32.mrb[0].mxu0
    %3170 = vdwg.mxu0
    %3171 = vmatprep.subr.bf16.mxu0 %v3005
    %3172 = vmatpush1.bf16.msra.mxu0 %v3004
    %3173 = vmatprep.subr.bf16.mxu0 %v3009
    %3174 = vmatpush1.bf16.msra.mxu0 %v3008
    %3175 = vmatprep.subr.bf16.mxu0 %v3013
    %3176 = vmatpush1.bf16.msra.mxu0 %v3012
    %3177 = vmatprep.subr.bf16.mxu0 %v3017
    %3178 = vmatpush1.bf16.msra.mxu0 %v3016
    %3179 = vmatprep.subr.bf16.mxu0 %v3021
    %3180 = vmatpush1.bf16.msra.mxu0 %v3020
    %3181 = vmatprep.subr.bf16.mxu0 %v3025
    %3182 = vmatpush1.bf16.msra.mxu0 %v3024
    %3183 = vmatprep.subr.bf16.mxu0 %v3029
    %3184 = vmatpush1.bf16.msra.mxu0 %v3028
    %3185 = vmatprep.subr.bf16.mxu0 %v3033
    %3186 = vmatpush1.bf16.msra.mxu0 %v3032
    %3187 = vmatprep.subr.bf16.mxu0 %v3037
    %3188 = vmatpush1.bf16.msra.mxu0 %v3036
    %3189 = vmatprep.subr.bf16.mxu0 %v3041
    %3190 = vmatpush1.bf16.msra.mxu0 %v3040
    %3191 = vmatprep.subr.bf16.mxu0 %v3045
    %3192 = vmatpush1.bf16.msra.mxu0 %v3044
    %3193 = vmatprep.subr.bf16.mxu0 %v3049
    %3194 = vmatpush1.bf16.msra.mxu0 %v3048
    %3195 = vmatprep.subr.bf16.mxu0 %v3053
    %3196 = vmatpush1.bf16.msra.mxu0 %v3052
    %3197 = vmatprep.subr.bf16.mxu0 %v3057
    %3198 = vmatpush1.bf16.msra.mxu0 %v3056
    %3199 = vmatprep.subr.bf16.mxu0 %v3061
    %3200 = vmatpush1.bf16.msra.mxu0 %v3060
    %3201 = vmatprep.subr.bf16.mxu0 %v3065
    %3202 = vmatpush1.bf16.msra.mxu0 %v3064
    %3203 = vmatprep.mubr.bf16.mxu0 %v2723
    %3204 = vmatmul.mubr.bf16.gmra.mrb[0].mxu0 %v2722
    %v3205 = vpop.f32.mrb[0].mxu0
    %v3206 = vadd.f32 %v2801, %v3205
    %v3207 = vpop.f32.mrb[0].mxu0
    %v3208 = vadd.f32 %v2805, %v3207
    %v3209 = vpop.f32.mrb[0].mxu0
    %v3210 = vpop.f32.mrb[0].mxu0
    %3211 = vdwg.mxu0
    %v3212 = vtanh.pop %v3165
    %v3213 = vtanh.pop %v3167
    %v3214 = vtanh.pop %v3206
    %v3215 = vtanh.pop %v3208
    %v3216 = vpack.c.bf16 %v3212, %v3212
    %v3217 = vpack.c.bf16 %v3213, %v3213
    %v3218 = vpack.c.bf16 %v3214, %v3214
    %v3219 = vpack.c.bf16 %v3215, %v3215
    %v3220 = vld [vmem:[%s10] sm:$0xff]
    %v3221 = vld [vmem:[%s10 + $0x8] sm:$0xff]
    %v3222 = vld [vmem:[%s10 + $0x10] sm:$0xff]
    %v3223 = vld [vmem:[%s10 + $0x18] sm:$0xf]
    %v3224 = vld [vmem:[%s10 + $0x1c] sm:$0xff]
    %v3225 = vld [vmem:[%s10 + $0x24] sm:$0xff]
    %v3226 = vld [vmem:[%s10 + $0x2c] sm:$0xff]
    %v3227 = vld [vmem:[%s10 + $0x34] sm:$0xf]
    %v3228 = vld [vmem:[%s10 + $0x38] sm:$0xff]
    %v3229 = vld [vmem:[%s10 + $0x40] sm:$0xff]
    %v3230 = vld [vmem:[%s10 + $0x48] sm:$0xff]
    %v3231 = vld [vmem:[%s10 + $0x50] sm:$0xf]
    %v3232 = vld [vmem:[%s10 + $0x54] sm:$0xff]
    %v3233 = vld [vmem:[%s10 + $0x5c] sm:$0xff]
    %v3234 = vld [vmem:[%s10 + $0x64] sm:$0xff]
    %v3235 = vld [vmem:[%s10 + $0x6c] sm:$0xf]
    %v3236 = vld [vmem:[%s10 + $0x70] sm:$0xff]
    %v3237 = vld [vmem:[%s10 + $0x78] sm:$0xff]
    %v3238 = vld [vmem:[%s10 + $0x80] sm:$0xff]
    %v3239 = vld [vmem:[%s10 + $0x88] sm:$0xf]
    %v3240 = vld [vmem:[%s10 + $0x8c] sm:$0xff]
    %v3241 = vld [vmem:[%s10 + $0x94] sm:$0xff]
    %v3242 = vld [vmem:[%s10 + $0x9c] sm:$0xff]
    %v3243 = vld [vmem:[%s10 + $0xa4] sm:$0xf]
    %v3244 = vld [vmem:[%s10 + $0xa8] sm:$0xff]
    %v3245 = vld [vmem:[%s10 + $0xb0] sm:$0xff]
    %v3246 = vld [vmem:[%s10 + $0xb8] sm:$0xff]
    %v3247 = vld [vmem:[%s10 + $0xc0] sm:$0xf]
    %v3248 = vld [vmem:[%s10 + $0xc4] sm:$0xff]
    %v3249 = vld [vmem:[%s10 + $0xcc] sm:$0xff]
    %v3250 = vld [vmem:[%s10 + $0xd4] sm:$0xff]
    %v3251 = vld [vmem:[%s10 + $0xdc] sm:$0xf]
    %v3252 = vld [vmem:[%s10 + $0xe0] sm:$0xff]
    %v3253 = vld [vmem:[%s10 + $0xe8] sm:$0xff]
    %v3254 = vld [vmem:[%s10 + $0xf0] sm:$0xff]
    %v3255 = vld [vmem:[%s10 + $0xf8] sm:$0xf]
    %v3256 = vld [vmem:[%s10 + $0xfc] sm:$0xff]
    %v3257 = vld [vmem:[%s10 + $0x104] sm:$0xff]
    %v3258 = vld [vmem:[%s10 + $0x10c] sm:$0xff]
    %v3259 = vld [vmem:[%s10 + $0x114] sm:$0xf]
    %v3260 = vld [vmem:[%s10 + $0x118] sm:$0xff]
    %v3261 = vld [vmem:[%s10 + $0x120] sm:$0xff]
    %v3262 = vld [vmem:[%s10 + $0x128] sm:$0xff]
    %v3263 = vld [vmem:[%s10 + $0x130] sm:$0xf]
    %v3264 = vld [vmem:[%s10 + $0x134] sm:$0xff]
    %v3265 = vld [vmem:[%s10 + $0x13c] sm:$0xff]
    %v3266 = vld [vmem:[%s10 + $0x144] sm:$0xff]
    %v3267 = vld [vmem:[%s10 + $0x14c] sm:$0xf]
    %v3268 = vld [vmem:[%s10 + $0x150] sm:$0xff]
    %v3269 = vld [vmem:[%s10 + $0x158] sm:$0xff]
    %v3270 = vld [vmem:[%s10 + $0x160] sm:$0xff]
    %v3271 = vld [vmem:[%s10 + $0x168] sm:$0xf]
    %v3272 = vld [vmem:[%s10 + $0x16c] sm:$0xff]
    %v3273 = vld [vmem:[%s10 + $0x174] sm:$0xff]
    %v3274 = vld [vmem:[%s10 + $0x17c] sm:$0xff]
    %v3275 = vld [vmem:[%s10 + $0x184] sm:$0xf]
    %v3276 = vld [vmem:[%s10 + $0x188] sm:$0xff]
    %v3277 = vld [vmem:[%s10 + $0x190] sm:$0xff]
    %v3278 = vld [vmem:[%s10 + $0x198] sm:$0xff]
    %v3279 = vld [vmem:[%s10 + $0x1a0] sm:$0xf]
    %v3280 = vld [vmem:[%s10 + $0x1a4] sm:$0xff]
    %v3281 = vld [vmem:[%s10 + $0x1ac] sm:$0xff]
    %v3282 = vld [vmem:[%s10 + $0x1b4] sm:$0xff]
    %v3283 = vld [vmem:[%s10 + $0x1bc] sm:$0xf]
    %v3284 = vld [vmem:[%s10 + $0x1c0] sm:$0xff]
    %v3285 = vld [vmem:[%s10 + $0x1c8] sm:$0xff]
    %v3286 = vld [vmem:[%s10 + $0x1d0] sm:$0xff]
    %v3287 = vld [vmem:[%s10 + $0x1d8] sm:$0xf]
    %v3288 = vld [vmem:[%s10 + $0x1dc] sm:$0xff]
    %v3289 = vld [vmem:[%s10 + $0x1e4] sm:$0xff]
    %v3290 = vld [vmem:[%s10 + $0x1ec] sm:$0xff]
    %v3291 = vld [vmem:[%s10 + $0x1f4] sm:$0xf]
    %v3292 = vld [vmem:[%s10 + $0x1f8] sm:$0xff]
    %v3293 = vld [vmem:[%s10 + $0x200] sm:$0xff]
    %v3294 = vld [vmem:[%s10 + $0x208] sm:$0xff]
    %v3295 = vld [vmem:[%s10 + $0x210] sm:$0xf]
    %v3296 = vld [vmem:[%s10 + $0x214] sm:$0xff]
    %v3297 = vld [vmem:[%s10 + $0x21c] sm:$0xff]
    %v3298 = vld [vmem:[%s10 + $0x224] sm:$0xff]
    %v3299 = vld [vmem:[%s10 + $0x22c] sm:$0xf]
    %v3300 = vld [vmem:[%s10 + $0x230] sm:$0xff]
    %v3301 = vld [vmem:[%s10 + $0x238] sm:$0xff]
    %v3302 = vld [vmem:[%s10 + $0x240] sm:$0xff]
    %v3303 = vld [vmem:[%s10 + $0x248] sm:$0xf]
    %v3304 = vld [vmem:[%s10 + $0x24c] sm:$0xff]
    %v3305 = vld [vmem:[%s10 + $0x254] sm:$0xff]
    %v3306 = vld [vmem:[%s10 + $0x25c] sm:$0xff]
    %v3307 = vld [vmem:[%s10 + $0x264] sm:$0xf]
    %v3308 = vld [vmem:[%s10 + $0x268] sm:$0xff]
    %v3309 = vld [vmem:[%s10 + $0x270] sm:$0xff]
    %v3310 = vld [vmem:[%s10 + $0x278] sm:$0xff]
    %v3311 = vld [vmem:[%s10 + $0x280] sm:$0xf]
    %v3312 = vld [vmem:[%s10 + $0x284] sm:$0xff]
    %v3313 = vld [vmem:[%s10 + $0x28c] sm:$0xff]
    %v3314 = vld [vmem:[%s10 + $0x294] sm:$0xff]
    %v3315 = vld [vmem:[%s10 + $0x29c] sm:$0xf]
    %v3316 = vld [vmem:[%s10 + $0x2a0] sm:$0xff]
    %v3317 = vld [vmem:[%s10 + $0x2a8] sm:$0xff]
    %v3318 = vld [vmem:[%s10 + $0x2b0] sm:$0xff]
    %v3319 = vld [vmem:[%s10 + $0x2b8] sm:$0xf]
    %v3320 = vld [vmem:[%s10 + $0x2bc] sm:$0xff]
    %v3321 = vld [vmem:[%s10 + $0x2c4] sm:$0xff]
    %v3322 = vld [vmem:[%s10 + $0x2cc] sm:$0xff]
    %v3323 = vld [vmem:[%s10 + $0x2d4] sm:$0xf]
    %v3324 = vld [vmem:[%s10 + $0x2d8] sm:$0xff]
    %v3325 = vld [vmem:[%s10 + $0x2e0] sm:$0xff]
    %v3326 = vld [vmem:[%s10 + $0x2e8] sm:$0xff]
    %v3327 = vld [vmem:[%s10 + $0x2f0] sm:$0xf]
    %v3328 = vld [vmem:[%s10 + $0x2f4] sm:$0xff]
    %v3329 = vld [vmem:[%s10 + $0x2fc] sm:$0xff]
    %v3330 = vld [vmem:[%s10 + $0x304] sm:$0xff]
    %v3331 = vld [vmem:[%s10 + $0x30c] sm:$0xf]
    %v3332 = vld [vmem:[%s10 + $0x310] sm:$0xff]
    %v3333 = vld [vmem:[%s10 + $0x318] sm:$0xff]
    %v3334 = vld [vmem:[%s10 + $0x320] sm:$0xff]
    %v3335 = vld [vmem:[%s10 + $0x328] sm:$0xf]
    %v3336 = vld [vmem:[%s10 + $0x32c] sm:$0xff]
    %v3337 = vld [vmem:[%s10 + $0x334] sm:$0xff]
    %v3338 = vld [vmem:[%s10 + $0x33c] sm:$0xff]
    %v3339 = vld [vmem:[%s10 + $0x344] sm:$0xf]
    %v3340 = vld [vmem:[%s10 + $0x348] sm:$0xff]
    %v3341 = vld [vmem:[%s10 + $0x350] sm:$0xff]
    %v3342 = vld [vmem:[%s10 + $0x358] sm:$0xff]
    %v3343 = vld [vmem:[%s10 + $0x360] sm:$0xf]
    %v3344 = vld [vmem:[%s10 + $0x364] sm:$0xff]
    %v3345 = vld [vmem:[%s10 + $0x36c] sm:$0xff]
    %v3346 = vld [vmem:[%s10 + $0x374] sm:$0xff]
    %v3347 = vld [vmem:[%s10 + $0x37c] sm:$0xf]
    %v3348 = vld [vmem:[%s10 + $0x380] sm:$0xff]
    %v3349 = vld [vmem:[%s10 + $0x388] sm:$0xff]
    %v3350 = vld [vmem:[%s10 + $0x390] sm:$0xff]
    %v3351 = vld [vmem:[%s10 + $0x398] sm:$0xf]
    %v3352 = vld [vmem:[%s10 + $0x39c] sm:$0xff]
    %v3353 = vld [vmem:[%s10 + $0x3a4] sm:$0xff]
    %v3354 = vld [vmem:[%s10 + $0x3ac] sm:$0xff]
    %v3355 = vld [vmem:[%s10 + $0x3b4] sm:$0xf]
    %v3356 = vld [vmem:[%s10 + $0x3b8] sm:$0xff]
    %v3357 = vld [vmem:[%s10 + $0x3c0] sm:$0xff]
    %v3358 = vld [vmem:[%s10 + $0x3c8] sm:$0xff]
    %v3359 = vld [vmem:[%s10 + $0x3d0] sm:$0xf]
    %v3360 = vld [vmem:[%s10 + $0x3d4] sm:$0xff]
    %v3361 = vld [vmem:[%s10 + $0x3dc] sm:$0xff]
    %v3362 = vld [vmem:[%s10 + $0x3e4] sm:$0xff]
    %v3363 = vld [vmem:[%s10 + $0x3ec] sm:$0xf]
    %v3364 = vld [vmem:[%s10 + $0x3f0] sm:$0xff]
    %v3365 = vld [vmem:[%s10 + $0x3f8] sm:$0xff]
    %v3366 = vld [vmem:[%s10 + $0x400] sm:$0xff]
    %v3367 = vld [vmem:[%s10 + $0x408] sm:$0xf]
    %v3368 = vld [vmem:[%s10 + $0x40c] sm:$0xff]
    %v3369 = vld [vmem:[%s10 + $0x414] sm:$0xff]
    %v3370 = vld [vmem:[%s10 + $0x41c] sm:$0xff]
    %v3371 = vld [vmem:[%s10 + $0x424] sm:$0xf]
    %v3372 = vld [vmem:[%s10 + $0x428] sm:$0xff]
    %v3373 = vld [vmem:[%s10 + $0x430] sm:$0xff]
    %v3374 = vld [vmem:[%s10 + $0x438] sm:$0xff]
    %v3375 = vld [vmem:[%s10 + $0x440] sm:$0xf]
    %v3376 = vld [vmem:[%s10 + $0x444] sm:$0xff]
    %v3377 = vld [vmem:[%s10 + $0x44c] sm:$0xff]
    %v3378 = vld [vmem:[%s10 + $0x454] sm:$0xff]
    %v3379 = vld [vmem:[%s10 + $0x45c] sm:$0xf]
    %v3380 = vld [vmem:[%s10 + $0x460] sm:$0xff]
    %v3381 = vld [vmem:[%s10 + $0x468] sm:$0xff]
    %v3382 = vld [vmem:[%s10 + $0x470] sm:$0xff]
    %v3383 = vld [vmem:[%s10 + $0x478] sm:$0xf]
    %v3384 = vld [vmem:[%s10 + $0x47c] sm:$0xff]
    %v3385 = vld [vmem:[%s10 + $0x484] sm:$0xff]
    %v3386 = vld [vmem:[%s10 + $0x48c] sm:$0xff]
    %v3387 = vld [vmem:[%s10 + $0x494] sm:$0xf]
    %v3388 = vld [vmem:[%s10 + $0x498] sm:$0xff]
    %v3389 = vld [vmem:[%s10 + $0x4a0] sm:$0xff]
    %v3390 = vld [vmem:[%s10 + $0x4a8] sm:$0xff]
    %v3391 = vld [vmem:[%s10 + $0x4b0] sm:$0xf]
    %v3392 = vld [vmem:[%s10 + $0x4b4] sm:$0xff]
    %v3393 = vld [vmem:[%s10 + $0x4bc] sm:$0xff]
    %v3394 = vld [vmem:[%s10 + $0x4c4] sm:$0xff]
    %v3395 = vld [vmem:[%s10 + $0x4cc] sm:$0xf]
    %v3396 = vld [vmem:[%s10 + $0x4d0] sm:$0xff]
    %v3397 = vld [vmem:[%s10 + $0x4d8] sm:$0xff]
    %v3398 = vld [vmem:[%s10 + $0x4e0] sm:$0xff]
    %v3399 = vld [vmem:[%s10 + $0x4e8] sm:$0xf]
    %v3400 = vld [vmem:[%s10 + $0x4ec] sm:$0xff]
    %v3401 = vld [vmem:[%s10 + $0x4f4] sm:$0xff]
    %v3402 = vld [vmem:[%s10 + $0x4fc] sm:$0xff]
    %v3403 = vld [vmem:[%s10 + $0x504] sm:$0xf]
    %v3404 = vld [vmem:[%s10 + $0x508] sm:$0xff]
    %v3405 = vld [vmem:[%s10 + $0x510] sm:$0xff]
    %v3406 = vld [vmem:[%s10 + $0x518] sm:$0xff]
    %v3407 = vld [vmem:[%s10 + $0x520] sm:$0xf]
    %v3408 = vld [vmem:[%s10 + $0x524] sm:$0xff]
    %v3409 = vld [vmem:[%s10 + $0x52c] sm:$0xff]
    %v3410 = vld [vmem:[%s10 + $0x534] sm:$0xff]
    %v3411 = vld [vmem:[%s10 + $0x53c] sm:$0xf]
    %v3412 = vld [vmem:[%s10 + $0x540] sm:$0xff]
    %v3413 = vld [vmem:[%s10 + $0x548] sm:$0xff]
    %v3414 = vld [vmem:[%s10 + $0x550] sm:$0xff]
    %v3415 = vld [vmem:[%s10 + $0x558] sm:$0xf]
    %v3416 = vld [vmem:[%s10 + $0x55c] sm:$0xff]
    %v3417 = vld [vmem:[%s10 + $0x564] sm:$0xff]
    %v3418 = vld [vmem:[%s10 + $0x56c] sm:$0xff]
    %v3419 = vld [vmem:[%s10 + $0x574] sm:$0xf]
    %v3420 = vld [vmem:[%s10 + $0x578] sm:$0xff]
    %v3421 = vld [vmem:[%s10 + $0x580] sm:$0xff]
    %v3422 = vld [vmem:[%s10 + $0x588] sm:$0xff]
    %v3423 = vld [vmem:[%s10 + $0x590] sm:$0xf]
    %v3424 = vld [vmem:[%s10 + $0x594] sm:$0xff]
    %v3425 = vld [vmem:[%s10 + $0x59c] sm:$0xff]
    %v3426 = vld [vmem:[%s10 + $0x5a4] sm:$0xff]
    %v3427 = vld [vmem:[%s10 + $0x5ac] sm:$0xf]
    %v3428 = vld [vmem:[%s10 + $0x5b0] sm:$0xff]
    %v3429 = vld [vmem:[%s10 + $0x5b8] sm:$0xff]
    %v3430 = vld [vmem:[%s10 + $0x5c0] sm:$0xff]
    %v3431 = vld [vmem:[%s10 + $0x5c8] sm:$0xf]
    %v3432 = vld [vmem:[%s10 + $0x5cc] sm:$0xff]
    %v3433 = vld [vmem:[%s10 + $0x5d4] sm:$0xff]
    %v3434 = vld [vmem:[%s10 + $0x5dc] sm:$0xff]
    %v3435 = vld [vmem:[%s10 + $0x5e4] sm:$0xf]
    %v3436 = vld [vmem:[%s10 + $0x5e8] sm:$0xff]
    %v3437 = vld [vmem:[%s10 + $0x5f0] sm:$0xff]
    %v3438 = vld [vmem:[%s10 + $0x5f8] sm:$0xff]
    %v3439 = vld [vmem:[%s10 + $0x600] sm:$0xf]
    %v3440 = vld [vmem:[%s10 + $0x604] sm:$0xff]
    %v3441 = vld [vmem:[%s10 + $0x60c] sm:$0xff]
    %v3442 = vld [vmem:[%s10 + $0x614] sm:$0xff]
    %v3443 = vld [vmem:[%s10 + $0x61c] sm:$0xf]
    %v3444 = vld [vmem:[%s10 + $0x620] sm:$0xff]
    %v3445 = vld [vmem:[%s10 + $0x628] sm:$0xff]
    %v3446 = vld [vmem:[%s10 + $0x630] sm:$0xff]
    %v3447 = vld [vmem:[%s10 + $0x638] sm:$0xf]
    %v3448 = vld [vmem:[%s10 + $0x63c] sm:$0xff]
    %v3449 = vld [vmem:[%s10 + $0x644] sm:$0xff]
    %v3450 = vld [vmem:[%s10 + $0x64c] sm:$0xff]
    %v3451 = vld [vmem:[%s10 + $0x654] sm:$0xf]
    %v3452 = vld [vmem:[%s10 + $0x658] sm:$0xff]
    %v3453 = vld [vmem:[%s10 + $0x660] sm:$0xff]
    %v3454 = vld [vmem:[%s10 + $0x668] sm:$0xff]
    %v3455 = vld [vmem:[%s10 + $0x670] sm:$0xf]
    %v3456 = vld [vmem:[%s10 + $0x674] sm:$0xff]
    %v3457 = vld [vmem:[%s10 + $0x67c] sm:$0xff]
    %v3458 = vld [vmem:[%s10 + $0x684] sm:$0xff]
    %v3459 = vld [vmem:[%s10 + $0x68c] sm:$0xf]
    %v3460 = vld [vmem:[%s10 + $0x690] sm:$0xff]
    %v3461 = vld [vmem:[%s10 + $0x698] sm:$0xff]
    %v3462 = vld [vmem:[%s10 + $0x6a0] sm:$0xff]
    %v3463 = vld [vmem:[%s10 + $0x6a8] sm:$0xf]
    %v3464 = vld [vmem:[%s10 + $0x6ac] sm:$0xff]
    %v3465 = vld [vmem:[%s10 + $0x6b4] sm:$0xff]
    %v3466 = vld [vmem:[%s10 + $0x6bc] sm:$0xff]
    %v3467 = vld [vmem:[%s10 + $0x6c4] sm:$0xf]
    %v3468 = vld [vmem:[%s10 + $0x6c8] sm:$0xff]
    %v3469 = vld [vmem:[%s10 + $0x6d0] sm:$0xff]
    %v3470 = vld [vmem:[%s10 + $0x6d8] sm:$0xff]
    %v3471 = vld [vmem:[%s10 + $0x6e0] sm:$0xf]
    %v3472 = vld [vmem:[%s10 + $0x6e4] sm:$0xff]
    %v3473 = vld [vmem:[%s10 + $0x6ec] sm:$0xff]
    %v3474 = vld [vmem:[%s10 + $0x6f4] sm:$0xff]
    %v3475 = vld [vmem:[%s10 + $0x6fc] sm:$0xf]
    %v3476 = vld [vmem:[%s11 + $0x11] sm:$0x7f]
    %v3478 = vlaneseq
    %v3479 = vshrl.u32 %v3478, 7
    %v3480 = vsub.s32 0, %v3479
    %v3481 = vrot.slane %v3476, %v3480
    %v3482 = vlaneseq
    %v3483 = vshrl.u32 %v3482, 7
    %v3484 = vsub.s32 1, %v3483
    %v3485 = vrot.slane %v3476, %v3484
    %v3486 = vlaneseq
    %v3487 = vshrl.u32 %v3486, 7
    %v3488 = vsub.s32 2, %v3487
    %v3489 = vrot.slane %v3476, %v3488
    %v3490 = vlaneseq
    %v3491 = vshrl.u32 %v3490, 7
    %v3492 = vsub.s32 3, %v3491
    %v3493 = vrot.slane %v3476, %v3492
    %v3494 = vlaneseq
    %v3495 = vshrl.u32 %v3494, 7
    %v3496 = vsub.s32 4, %v3495
    %v3497 = vrot.slane %v3476, %v3496
    %v3498 = vlaneseq
    %v3499 = vshrl.u32 %v3498, 7
    %v3500 = vsub.s32 5, %v3499
    %v3501 = vrot.slane %v3476, %v3500
    %v3502 = vlaneseq
    %v3503 = vshrl.u32 %v3502, 7
    %v3504 = vsub.s32 6, %v3503
    %v3505 = vrot.slane %v3476, %v3504
    %v3769 = vunpack.c.l.b16 %v3220
    %v3770 = vunpack.c.h.b16 %v3220
    %v3771 = vunpack.c.l.b16 %v3221
    %v3772 = vunpack.c.h.b16 %v3221
    %v3773 = vunpack.c.l.b16 %v3222
    %v3774 = vunpack.c.h.b16 %v3222
    %v3775 = vunpack.c.l.b16 %v3223
    %v3776 = vunpack.c.l.b16 %v3224
    %v3777 = vunpack.c.h.b16 %v3224
    %v3778 = vunpack.c.l.b16 %v3225
    %v3779 = vunpack.c.h.b16 %v3225
    %v3780 = vunpack.c.l.b16 %v3226
    %v3781 = vunpack.c.h.b16 %v3226
    %v3782 = vunpack.c.l.b16 %v3227
    %v3783 = vunpack.c.l.b16 %v3228
    %v3784 = vunpack.c.h.b16 %v3228
    %v3785 = vunpack.c.l.b16 %v3229
    %v3786 = vunpack.c.h.b16 %v3229
    %v3787 = vunpack.c.l.b16 %v3230
    %v3788 = vunpack.c.h.b16 %v3230
    %v3789 = vunpack.c.l.b16 %v3231
    %v3790 = vunpack.c.l.b16 %v3232
    %v3791 = vunpack.c.h.b16 %v3232
    %v3792 = vunpack.c.l.b16 %v3233
    %v3793 = vunpack.c.h.b16 %v3233
    %v3794 = vunpack.c.l.b16 %v3234
    %v3795 = vunpack.c.h.b16 %v3234
    %v3796 = vunpack.c.l.b16 %v3235
    %v3797 = vunpack.c.l.b16 %v3236
    %v3798 = vunpack.c.h.b16 %v3236
    %v3799 = vunpack.c.l.b16 %v3237
    %v3800 = vunpack.c.h.b16 %v3237
    %v3801 = vunpack.c.l.b16 %v3238
    %v3802 = vunpack.c.h.b16 %v3238
    %v3803 = vunpack.c.l.b16 %v3239
    %v3804 = vunpack.c.l.b16 %v3240
    %v3805 = vunpack.c.h.b16 %v3240
    %v3806 = vunpack.c.l.b16 %v3241
    %v3807 = vunpack.c.h.b16 %v3241
    %v3808 = vunpack.c.l.b16 %v3242
    %v3809 = vunpack.c.h.b16 %v3242
    %v3810 = vunpack.c.l.b16 %v3243
    %v3811 = vunpack.c.l.b16 %v3244
    %v3812 = vunpack.c.h.b16 %v3244
    %v3813 = vunpack.c.l.b16 %v3245
    %v3814 = vunpack.c.h.b16 %v3245
    %v3815 = vunpack.c.l.b16 %v3246
    %v3816 = vunpack.c.h.b16 %v3246
    %v3817 = vunpack.c.l.b16 %v3247
    %v3818 = vunpack.c.l.b16 %v3248
    %v3819 = vunpack.c.h.b16 %v3248
    %v3820 = vunpack.c.l.b16 %v3249
    %v3821 = vunpack.c.h.b16 %v3249
    %v3822 = vunpack.c.l.b16 %v3250
    %v3823 = vunpack.c.h.b16 %v3250
    %v3824 = vunpack.c.l.b16 %v3251
    %v3825 = vunpack.c.l.b16 %v3252
    %v3826 = vunpack.c.h.b16 %v3252
    %v3827 = vunpack.c.l.b16 %v3253
    %v3828 = vunpack.c.h.b16 %v3253
    %v3829 = vunpack.c.l.b16 %v3254
    %v3830 = vunpack.c.h.b16 %v3254
    %v3831 = vunpack.c.l.b16 %v3255
    %v3832 = vunpack.c.l.b16 %v3256
    %v3833 = vunpack.c.h.b16 %v3256
    %v3834 = vunpack.c.l.b16 %v3257
    %v3835 = vunpack.c.h.b16 %v3257
    %v3836 = vunpack.c.l.b16 %v3258
    %v3837 = vunpack.c.h.b16 %v3258
    %v3838 = vunpack.c.l.b16 %v3259
    %v3839 = vunpack.c.l.b16 %v3260
    %v3840 = vunpack.c.h.b16 %v3260
    %v3841 = vunpack.c.l.b16 %v3261
    %v3842 = vunpack.c.h.b16 %v3261
    %v3843 = vunpack.c.l.b16 %v3262
    %v3844 = vunpack.c.h.b16 %v3262
    %v3845 = vunpack.c.l.b16 %v3263
    %v3846 = vunpack.c.l.b16 %v3264
    %v3847 = vunpack.c.h.b16 %v3264
    %v3848 = vunpack.c.l.b16 %v3265
    %v3849 = vunpack.c.h.b16 %v3265
    %v3850 = vunpack.c.l.b16 %v3266
    %v3851 = vunpack.c.h.b16 %v3266
    %v3852 = vunpack.c.l.b16 %v3267
    %v3853 = vunpack.c.l.b16 %v3268
    %v3854 = vunpack.c.h.b16 %v3268
    %v3855 = vunpack.c.l.b16 %v3269
    %v3856 = vunpack.c.h.b16 %v3269
    %v3857 = vunpack.c.l.b16 %v3270
    %v3858 = vunpack.c.h.b16 %v3270
    %v3859 = vunpack.c.l.b16 %v3271
    %v3860 = vunpack.c.l.b16 %v3272
    %v3861 = vunpack.c.h.b16 %v3272
    %v3862 = vunpack.c.l.b16 %v3273
    %v3863 = vunpack.c.h.b16 %v3273
    %v3864 = vunpack.c.l.b16 %v3274
    %v3865 = vunpack.c.h.b16 %v3274
    %v3866 = vunpack.c.l.b16 %v3275
    %v3867 = vunpack.c.l.b16 %v3276
    %v3868 = vunpack.c.h.b16 %v3276
    %v3869 = vunpack.c.l.b16 %v3277
    %v3870 = vunpack.c.h.b16 %v3277
    %v3871 = vunpack.c.l.b16 %v3278
    %v3872 = vunpack.c.h.b16 %v3278
    %v3873 = vunpack.c.l.b16 %v3279
    %v3874 = vunpack.c.l.b16 %v3280
    %v3875 = vunpack.c.h.b16 %v3280
    %v3876 = vunpack.c.l.b16 %v3281
    %v3877 = vunpack.c.h.b16 %v3281
    %v3878 = vunpack.c.l.b16 %v3282
    %v3879 = vunpack.c.h.b16 %v3282
    %v3880 = vunpack.c.l.b16 %v3283
    %v3881 = vunpack.c.l.b16 %v3284
    %v3882 = vunpack.c.h.b16 %v3284
    %v3883 = vunpack.c.l.b16 %v3285
    %v3884 = vunpack.c.h.b16 %v3285
    %v3885 = vunpack.c.l.b16 %v3286
    %v3886 = vunpack.c.h.b16 %v3286
    %v3887 = vunpack.c.l.b16 %v3287
    %v3888 = vunpack.c.l.b16 %v3288
    %v3889 = vunpack.c.h.b16 %v3288
    %v3890 = vunpack.c.l.b16 %v3289
    %v3891 = vunpack.c.h.b16 %v3289
    %v3892 = vunpack.c.l.b16 %v3290
    %v3893 = vunpack.c.h.b16 %v3290
    %v3894 = vunpack.c.l.b16 %v3291
    %v3895 = vunpack.c.l.b16 %v3292
    %v3896 = vunpack.c.h.b16 %v3292
    %v3897 = vunpack.c.l.b16 %v3293
    %v3898 = vunpack.c.h.b16 %v3293
    %v3899 = vunpack.c.l.b16 %v3294
    %v3900 = vunpack.c.h.b16 %v3294
    %v3901 = vunpack.c.l.b16 %v3295
    %v3902 = vunpack.c.l.b16 %v3296
    %v3903 = vunpack.c.h.b16 %v3296
    %v3904 = vunpack.c.l.b16 %v3297
    %v3905 = vunpack.c.h.b16 %v3297
    %v3906 = vunpack.c.l.b16 %v3298
    %v3907 = vunpack.c.h.b16 %v3298
    %v3908 = vunpack.c.l.b16 %v3299
    %v3909 = vunpack.c.l.b16 %v3300
    %v3910 = vunpack.c.h.b16 %v3300
    %v3911 = vunpack.c.l.b16 %v3301
    %v3912 = vunpack.c.h.b16 %v3301
    %v3913 = vunpack.c.l.b16 %v3302
    %v3914 = vunpack.c.h.b16 %v3302
    %v3915 = vunpack.c.l.b16 %v3303
    %v3916 = vunpack.c.l.b16 %v3304
    %v3917 = vunpack.c.h.b16 %v3304
    %v3918 = vunpack.c.l.b16 %v3305
    %v3919 = vunpack.c.h.b16 %v3305
    %v3920 = vunpack.c.l.b16 %v3306
    %v3921 = vunpack.c.h.b16 %v3306
    %v3922 = vunpack.c.l.b16 %v3307
    %v3923 = vunpack.c.l.b16 %v3308
    %v3924 = vunpack.c.h.b16 %v3308
    %v3925 = vunpack.c.l.b16 %v3309
    %v3926 = vunpack.c.h.b16 %v3309
    %v3927 = vunpack.c.l.b16 %v3310
    %v3928 = vunpack.c.h.b16 %v3310
    %v3929 = vunpack.c.l.b16 %v3311
    %v3930 = vunpack.c.l.b16 %v3312
    %v3931 = vunpack.c.h.b16 %v3312
    %v3932 = vunpack.c.l.b16 %v3313
    %v3933 = vunpack.c.h.b16 %v3313
    %v3934 = vunpack.c.l.b16 %v3314
    %v3935 = vunpack.c.h.b16 %v3314
    %v3936 = vunpack.c.l.b16 %v3315
    %v3937 = vunpack.c.l.b16 %v3316
    %v3938 = vunpack.c.h.b16 %v3316
    %v3939 = vunpack.c.l.b16 %v3317
    %v3940 = vunpack.c.h.b16 %v3317
    %v3941 = vunpack.c.l.b16 %v3318
    %v3942 = vunpack.c.h.b16 %v3318
    %v3943 = vunpack.c.l.b16 %v3319
    %v3944 = vunpack.c.l.b16 %v3320
    %v3945 = vunpack.c.h.b16 %v3320
    %v3946 = vunpack.c.l.b16 %v3321
    %v3947 = vunpack.c.h.b16 %v3321
    %v3948 = vunpack.c.l.b16 %v3322
    %v3949 = vunpack.c.h.b16 %v3322
    %v3950 = vunpack.c.l.b16 %v3323
    %v3951 = vunpack.c.l.b16 %v3324
    %v3952 = vunpack.c.h.b16 %v3324
    %v3953 = vunpack.c.l.b16 %v3325
    %v3954 = vunpack.c.h.b16 %v3325
    %v3955 = vunpack.c.l.b16 %v3326
    %v3956 = vunpack.c.h.b16 %v3326
    %v3957 = vunpack.c.l.b16 %v3327
    %v3958 = vunpack.c.l.b16 %v3328
    %v3959 = vunpack.c.h.b16 %v3328
    %v3960 = vunpack.c.l.b16 %v3329
    %v3961 = vunpack.c.h.b16 %v3329
    %v3962 = vunpack.c.l.b16 %v3330
    %v3963 = vunpack.c.h.b16 %v3330
    %v3964 = vunpack.c.l.b16 %v3331
    %v3965 = vunpack.c.l.b16 %v3332
    %v3966 = vunpack.c.h.b16 %v3332
    %v3967 = vunpack.c.l.b16 %v3333
    %v3968 = vunpack.c.h.b16 %v3333
    %v3969 = vunpack.c.l.b16 %v3334
    %v3970 = vunpack.c.h.b16 %v3334
    %v3971 = vunpack.c.l.b16 %v3335
    %v3972 = vunpack.c.l.b16 %v3336
    %v3973 = vunpack.c.h.b16 %v3336
    %v3974 = vunpack.c.l.b16 %v3337
    %v3975 = vunpack.c.h.b16 %v3337
    %v3976 = vunpack.c.l.b16 %v3338
    %v3977 = vunpack.c.h.b16 %v3338
    %v3978 = vunpack.c.l.b16 %v3339
    %v3979 = vunpack.c.l.b16 %v3340
    %v3980 = vunpack.c.h.b16 %v3340
    %v3981 = vunpack.c.l.b16 %v3341
    %v3982 = vunpack.c.h.b16 %v3341
    %v3983 = vunpack.c.l.b16 %v3342
    %v3984 = vunpack.c.h.b16 %v3342
    %v3985 = vunpack.c.l.b16 %v3343
    %v3986 = vunpack.c.l.b16 %v3344
    %v3987 = vunpack.c.h.b16 %v3344
    %v3988 = vunpack.c.l.b16 %v3345
    %v3989 = vunpack.c.h.b16 %v3345
    %v3990 = vunpack.c.l.b16 %v3346
    %v3991 = vunpack.c.h.b16 %v3346
    %v3992 = vunpack.c.l.b16 %v3347
    %v3993 = vunpack.c.l.b16 %v3348
    %v3994 = vunpack.c.h.b16 %v3348
    %v3995 = vunpack.c.l.b16 %v3349
    %v3996 = vunpack.c.h.b16 %v3349
    %v3997 = vunpack.c.l.b16 %v3350
    %v3998 = vunpack.c.h.b16 %v3350
    %v3999 = vunpack.c.l.b16 %v3351
    %v4000 = vunpack.c.l.b16 %v3352
    %v4001 = vunpack.c.h.b16 %v3352
    %v4002 = vunpack.c.l.b16 %v3353
    %v4003 = vunpack.c.h.b16 %v3353
    %v4004 = vunpack.c.l.b16 %v3354
    %v4005 = vunpack.c.h.b16 %v3354
    %v4006 = vunpack.c.l.b16 %v3355
    %v4007 = vunpack.c.l.b16 %v3356
    %v4008 = vunpack.c.h.b16 %v3356
    %v4009 = vunpack.c.l.b16 %v3357
    %v4010 = vunpack.c.h.b16 %v3357
    %v4011 = vunpack.c.l.b16 %v3358
    %v4012 = vunpack.c.h.b16 %v3358
    %v4013 = vunpack.c.l.b16 %v3359
    %v4014 = vunpack.c.l.b16 %v3360
    %v4015 = vunpack.c.h.b16 %v3360
    %v4016 = vunpack.c.l.b16 %v3361
    %v4017 = vunpack.c.h.b16 %v3361
    %v4018 = vunpack.c.l.b16 %v3362
    %v4019 = vunpack.c.h.b16 %v3362
    %v4020 = vunpack.c.l.b16 %v3363
    %v4021 = vunpack.c.l.b16 %v3364
    %v4022 = vunpack.c.h.b16 %v3364
    %v4023 = vunpack.c.l.b16 %v3365
    %v4024 = vunpack.c.h.b16 %v3365
    %v4025 = vunpack.c.l.b16 %v3366
    %v4026 = vunpack.c.h.b16 %v3366
    %v4027 = vunpack.c.l.b16 %v3367
    %v4028 = vunpack.c.l.b16 %v3368
    %v4029 = vunpack.c.h.b16 %v3368
    %v4030 = vunpack.c.l.b16 %v3369
    %v4031 = vunpack.c.h.b16 %v3369
    %v4032 = vunpack.c.l.b16 %v3370
    %v4033 = vunpack.c.h.b16 %v3370
    %v4034 = vunpack.c.l.b16 %v3371
    %v4035 = vunpack.c.l.b16 %v3372
    %v4036 = vunpack.c.h.b16 %v3372
    %v4037 = vunpack.c.l.b16 %v3373
    %v4038 = vunpack.c.h.b16 %v3373
    %v4039 = vunpack.c.l.b16 %v3374
    %v4040 = vunpack.c.h.b16 %v3374
    %v4041 = vunpack.c.l.b16 %v3375
    %v4042 = vunpack.c.l.b16 %v3376
    %v4043 = vunpack.c.h.b16 %v3376
    %v4044 = vunpack.c.l.b16 %v3377
    %v4045 = vunpack.c.h.b16 %v3377
    %v4046 = vunpack.c.l.b16 %v3378
    %v4047 = vunpack.c.h.b16 %v3378
    %v4048 = vunpack.c.l.b16 %v3379
    %v4049 = vunpack.c.l.b16 %v3380
    %v4050 = vunpack.c.h.b16 %v3380
    %v4051 = vunpack.c.l.b16 %v3381
    %v4052 = vunpack.c.h.b16 %v3381
    %v4053 = vunpack.c.l.b16 %v3382
    %v4054 = vunpack.c.h.b16 %v3382
    %v4055 = vunpack.c.l.b16 %v3383
    %v4056 = vunpack.c.l.b16 %v3384
    %v4057 = vunpack.c.h.b16 %v3384
    %v4058 = vunpack.c.l.b16 %v3385
    %v4059 = vunpack.c.h.b16 %v3385
    %v4060 = vunpack.c.l.b16 %v3386
    %v4061 = vunpack.c.h.b16 %v3386
    %v4062 = vunpack.c.l.b16 %v3387
    %v4063 = vunpack.c.l.b16 %v3388
    %v4064 = vunpack.c.h.b16 %v3388
    %v4065 = vunpack.c.l.b16 %v3389
    %v4066 = vunpack.c.h.b16 %v3389
    %v4067 = vunpack.c.l.b16 %v3390
    %v4068 = vunpack.c.h.b16 %v3390
    %v4069 = vunpack.c.l.b16 %v3391
    %v4070 = vunpack.c.l.b16 %v3392
    %v4071 = vunpack.c.h.b16 %v3392
    %v4072 = vunpack.c.l.b16 %v3393
    %v4073 = vunpack.c.h.b16 %v3393
    %v4074 = vunpack.c.l.b16 %v3394
    %v4075 = vunpack.c.h.b16 %v3394
    %v4076 = vunpack.c.l.b16 %v3395
    %v4077 = vunpack.c.l.b16 %v3396
    %v4078 = vunpack.c.h.b16 %v3396
    %v4079 = vunpack.c.l.b16 %v3397
    %v4080 = vunpack.c.h.b16 %v3397
    %v4081 = vunpack.c.l.b16 %v3398
    %v4082 = vunpack.c.h.b16 %v3398
    %v4083 = vunpack.c.l.b16 %v3399
    %v4084 = vunpack.c.l.b16 %v3400
    %v4085 = vunpack.c.h.b16 %v3400
    %v4086 = vunpack.c.l.b16 %v3401
    %v4087 = vunpack.c.h.b16 %v3401
    %v4088 = vunpack.c.l.b16 %v3402
    %v4089 = vunpack.c.h.b16 %v3402
    %v4090 = vunpack.c.l.b16 %v3403
    %v4091 = vunpack.c.l.b16 %v3404
    %v4092 = vunpack.c.h.b16 %v3404
    %v4093 = vunpack.c.l.b16 %v3405
    %v4094 = vunpack.c.h.b16 %v3405
    %v4095 = vunpack.c.l.b16 %v3406
    %v4096 = vunpack.c.h.b16 %v3406
    %v4097 = vunpack.c.l.b16 %v3407
    %v4098 = vunpack.c.l.b16 %v3408
    %v4099 = vunpack.c.h.b16 %v3408
    %v4100 = vunpack.c.l.b16 %v3409
    %v4101 = vunpack.c.h.b16 %v3409
    %v4102 = vunpack.c.l.b16 %v3410
    %v4103 = vunpack.c.h.b16 %v3410
    %v4104 = vunpack.c.l.b16 %v3411
    %v4105 = vunpack.c.l.b16 %v3412
    %v4106 = vunpack.c.h.b16 %v3412
    %v4107 = vunpack.c.l.b16 %v3413
    %v4108 = vunpack.c.h.b16 %v3413
    %v4109 = vunpack.c.l.b16 %v3414
    %v4110 = vunpack.c.h.b16 %v3414
    %v4111 = vunpack.c.l.b16 %v3415
    %v4112 = vunpack.c.l.b16 %v3416
    %v4113 = vunpack.c.h.b16 %v3416
    %v4114 = vunpack.c.l.b16 %v3417
    %v4115 = vunpack.c.h.b16 %v3417
    %v4116 = vunpack.c.l.b16 %v3418
    %v4117 = vunpack.c.h.b16 %v3418
    %v4118 = vunpack.c.l.b16 %v3419
    %v4119 = vunpack.c.l.b16 %v3420
    %v4120 = vunpack.c.h.b16 %v3420
    %v4121 = vunpack.c.l.b16 %v3421
    %v4122 = vunpack.c.h.b16 %v3421
    %v4123 = vunpack.c.l.b16 %v3422
    %v4124 = vunpack.c.h.b16 %v3422
    %v4125 = vunpack.c.l.b16 %v3423
    %v4126 = vunpack.c.l.b16 %v3424
    %v4127 = vunpack.c.h.b16 %v3424
    %v4128 = vunpack.c.l.b16 %v3425
    %v4129 = vunpack.c.h.b16 %v3425
    %v4130 = vunpack.c.l.b16 %v3426
    %v4131 = vunpack.c.h.b16 %v3426
    %v4132 = vunpack.c.l.b16 %v3427
    %v4133 = vunpack.c.l.b16 %v3428
    %v4134 = vunpack.c.h.b16 %v3428
    %v4135 = vunpack.c.l.b16 %v3429
    %v4136 = vunpack.c.h.b16 %v3429
    %v4137 = vunpack.c.l.b16 %v3430
    %v4138 = vunpack.c.h.b16 %v3430
    %v4139 = vunpack.c.l.b16 %v3431
    %v4140 = vunpack.c.l.b16 %v3432
    %v4141 = vunpack.c.h.b16 %v3432
    %v4142 = vunpack.c.l.b16 %v3433
    %v4143 = vunpack.c.h.b16 %v3433
    %v4144 = vunpack.c.l.b16 %v3434
    %v4145 = vunpack.c.h.b16 %v3434
    %v4146 = vunpack.c.l.b16 %v3435
    %v4147 = vunpack.c.l.b16 %v3436
    %v4148 = vunpack.c.h.b16 %v3436
    %v4149 = vunpack.c.l.b16 %v3437
    %v4150 = vunpack.c.h.b16 %v3437
    %v4151 = vunpack.c.l.b16 %v3438
    %v4152 = vunpack.c.h.b16 %v3438
    %v4153 = vunpack.c.l.b16 %v3439
    %v4154 = vunpack.c.l.b16 %v3440
    %v4155 = vunpack.c.h.b16 %v3440
    %v4156 = vunpack.c.l.b16 %v3441
    %v4157 = vunpack.c.h.b16 %v3441
    %v4158 = vunpack.c.l.b16 %v3442
    %v4159 = vunpack.c.h.b16 %v3442
    %v4160 = vunpack.c.l.b16 %v3443
    %v4161 = vunpack.c.l.b16 %v3444
    %v4162 = vunpack.c.h.b16 %v3444
    %v4163 = vunpack.c.l.b16 %v3445
    %v4164 = vunpack.c.h.b16 %v3445
    %v4165 = vunpack.c.l.b16 %v3446
    %v4166 = vunpack.c.h.b16 %v3446
    %v4167 = vunpack.c.l.b16 %v3447
    %v4168 = vunpack.c.l.b16 %v3448
    %v4169 = vunpack.c.h.b16 %v3448
    %v4170 = vunpack.c.l.b16 %v3449
    %v4171 = vunpack.c.h.b16 %v3449
    %v4172 = vunpack.c.l.b16 %v3450
    %v4173 = vunpack.c.h.b16 %v3450
    %v4174 = vunpack.c.l.b16 %v3451
    %v4175 = vunpack.c.l.b16 %v3452
    %v4176 = vunpack.c.h.b16 %v3452
    %v4177 = vunpack.c.l.b16 %v3453
    %v4178 = vunpack.c.h.b16 %v3453
    %v4179 = vunpack.c.l.b16 %v3454
    %v4180 = vunpack.c.h.b16 %v3454
    %v4181 = vunpack.c.l.b16 %v3455
    %v4182 = vunpack.c.l.b16 %v3456
    %v4183 = vunpack.c.h.b16 %v3456
    %v4184 = vunpack.c.l.b16 %v3457
    %v4185 = vunpack.c.h.b16 %v3457
    %v4186 = vunpack.c.l.b16 %v3458
    %v4187 = vunpack.c.h.b16 %v3458
    %v4188 = vunpack.c.l.b16 %v3459
    %v4189 = vunpack.c.l.b16 %v3460
    %v4190 = vunpack.c.h.b16 %v3460
    %v4191 = vunpack.c.l.b16 %v3461
    %v4192 = vunpack.c.h.b16 %v3461
    %v4193 = vunpack.c.l.b16 %v3462
    %v4194 = vunpack.c.h.b16 %v3462
    %v4195 = vunpack.c.l.b16 %v3463
    %v4196 = vunpack.c.l.b16 %v3464
    %v4197 = vunpack.c.h.b16 %v3464
    %v4198 = vunpack.c.l.b16 %v3465
    %v4199 = vunpack.c.h.b16 %v3465
    %v4200 = vunpack.c.l.b16 %v3466
    %v4201 = vunpack.c.h.b16 %v3466
    %v4202 = vunpack.c.l.b16 %v3467
    %v4203 = vunpack.c.l.b16 %v3468
    %v4204 = vunpack.c.h.b16 %v3468
    %v4205 = vunpack.c.l.b16 %v3469
    %v4206 = vunpack.c.h.b16 %v3469
    %v4207 = vunpack.c.l.b16 %v3470
    %v4208 = vunpack.c.h.b16 %v3470
    %v4209 = vunpack.c.l.b16 %v3471
    %v4210 = vunpack.c.l.b16 %v3472
    %v4211 = vunpack.c.h.b16 %v3472
    %v4212 = vunpack.c.l.b16 %v3473
    %v4213 = vunpack.c.h.b16 %v3473
    %v4214 = vunpack.c.l.b16 %v3474
    %v4215 = vunpack.c.h.b16 %v3474
    %v4216 = vunpack.c.l.b16 %v3475
    %v4217 = vpack.c.b16 %v3776, %v3769
    %v4218 = vpack.c.b16 %v3777, %v3770
    %v4219 = vpack.c.b16 %v3778, %v3771
    %v4220 = vpack.c.b16 %v3779, %v3772
    %v4221 = vpack.c.b16 %v3780, %v3773
    %v4222 = vpack.c.b16 %v3781, %v3774
    %v4223 = vpack.c.b16 %v3782, %v3775
    %v4224 = vpack.c.b16 %v3790, %v3783
    %v4225 = vpack.c.b16 %v3791, %v3784
    %v4226 = vpack.c.b16 %v3792, %v3785
    %v4227 = vpack.c.b16 %v3793, %v3786
    %v4228 = vpack.c.b16 %v3794, %v3787
    %v4229 = vpack.c.b16 %v3795, %v3788
    %v4230 = vpack.c.b16 %v3796, %v3789
    %v4231 = vpack.c.b16 %v3804, %v3797
    %v4232 = vpack.c.b16 %v3805, %v3798
    %v4233 = vpack.c.b16 %v3806, %v3799
    %v4234 = vpack.c.b16 %v3807, %v3800
    %v4235 = vpack.c.b16 %v3808, %v3801
    %v4236 = vpack.c.b16 %v3809, %v3802
    %v4237 = vpack.c.b16 %v3810, %v3803
    %v4238 = vpack.c.b16 %v3818, %v3811
    %v4239 = vpack.c.b16 %v3819, %v3812
    %v4240 = vpack.c.b16 %v3820, %v3813
    %v4241 = vpack.c.b16 %v3821, %v3814
    %v4242 = vpack.c.b16 %v3822, %v3815
    %v4243 = vpack.c.b16 %v3823, %v3816
    %v4244 = vpack.c.b16 %v3824, %v3817
    %v4245 = vpack.c.b16 %v3832, %v3825
    %v4246 = vpack.c.b16 %v3833, %v3826
    %v4247 = vpack.c.b16 %v3834, %v3827
    %v4248 = vpack.c.b16 %v3835, %v3828
    %v4249 = vpack.c.b16 %v3836, %v3829
    %v4250 = vpack.c.b16 %v3837, %v3830
    %v4251 = vpack.c.b16 %v3838, %v3831
    %v4252 = vpack.c.b16 %v3846, %v3839
    %v4253 = vpack.c.b16 %v3847, %v3840
    %v4254 = vpack.c.b16 %v3848, %v3841
    %v4255 = vpack.c.b16 %v3849, %v3842
    %v4256 = vpack.c.b16 %v3850, %v3843
    %v4257 = vpack.c.b16 %v3851, %v3844
    %v4258 = vpack.c.b16 %v3852, %v3845
    %v4259 = vpack.c.b16 %v3860, %v3853
    %v4260 = vpack.c.b16 %v3861, %v3854
    %v4261 = vpack.c.b16 %v3862, %v3855
    %v4262 = vpack.c.b16 %v3863, %v3856
    %v4263 = vpack.c.b16 %v3864, %v3857
    %v4264 = vpack.c.b16 %v3865, %v3858
    %v4265 = vpack.c.b16 %v3866, %v3859
    %v4266 = vpack.c.b16 %v3874, %v3867
    %v4267 = vpack.c.b16 %v3875, %v3868
    %v4268 = vpack.c.b16 %v3876, %v3869
    %v4269 = vpack.c.b16 %v3877, %v3870
    %v4270 = vpack.c.b16 %v3878, %v3871
    %v4271 = vpack.c.b16 %v3879, %v3872
    %v4272 = vpack.c.b16 %v3880, %v3873
    %v4273 = vpack.c.b16 %v3888, %v3881
    %v4274 = vpack.c.b16 %v3889, %v3882
    %v4275 = vpack.c.b16 %v3890, %v3883
    %v4276 = vpack.c.b16 %v3891, %v3884
    %v4277 = vpack.c.b16 %v3892, %v3885
    %v4278 = vpack.c.b16 %v3893, %v3886
    %v4279 = vpack.c.b16 %v3894, %v3887
    %v4280 = vpack.c.b16 %v3902, %v3895
    %v4281 = vpack.c.b16 %v3903, %v3896
    %v4282 = vpack.c.b16 %v3904, %v3897
    %v4283 = vpack.c.b16 %v3905, %v3898
    %v4284 = vpack.c.b16 %v3906, %v3899
    %v4285 = vpack.c.b16 %v3907, %v3900
    %v4286 = vpack.c.b16 %v3908, %v3901
    %v4287 = vpack.c.b16 %v3916, %v3909
    %v4288 = vpack.c.b16 %v3917, %v3910
    %v4289 = vpack.c.b16 %v3918, %v3911
    %v4290 = vpack.c.b16 %v3919, %v3912
    %v4291 = vpack.c.b16 %v3920, %v3913
    %v4292 = vpack.c.b16 %v3921, %v3914
    %v4293 = vpack.c.b16 %v3922, %v3915
    %v4294 = vpack.c.b16 %v3930, %v3923
    %v4295 = vpack.c.b16 %v3931, %v3924
    %v4296 = vpack.c.b16 %v3932, %v3925
    %v4297 = vpack.c.b16 %v3933, %v3926
    %v4298 = vpack.c.b16 %v3934, %v3927
    %v4299 = vpack.c.b16 %v3935, %v3928
    %v4300 = vpack.c.b16 %v3936, %v3929
    %v4301 = vpack.c.b16 %v3944, %v3937
    %v4302 = vpack.c.b16 %v3945, %v3938
    %v4303 = vpack.c.b16 %v3946, %v3939
    %v4304 = vpack.c.b16 %v3947, %v3940
    %v4305 = vpack.c.b16 %v3948, %v3941
    %v4306 = vpack.c.b16 %v3949, %v3942
    %v4307 = vpack.c.b16 %v3950, %v3943
    %v4308 = vpack.c.b16 %v3958, %v3951
    %v4309 = vpack.c.b16 %v3959, %v3952
    %v4310 = vpack.c.b16 %v3960, %v3953
    %v4311 = vpack.c.b16 %v3961, %v3954
    %v4312 = vpack.c.b16 %v3962, %v3955
    %v4313 = vpack.c.b16 %v3963, %v3956
    %v4314 = vpack.c.b16 %v3964, %v3957
    %v4315 = vpack.c.b16 %v3972, %v3965
    %v4316 = vpack.c.b16 %v3973, %v3966
    %v4317 = vpack.c.b16 %v3974, %v3967
    %v4318 = vpack.c.b16 %v3975, %v3968
    %v4319 = vpack.c.b16 %v3976, %v3969
    %v4320 = vpack.c.b16 %v3977, %v3970
    %v4321 = vpack.c.b16 %v3978, %v3971
    %v4322 = vpack.c.b16 %v3986, %v3979
    %v4323 = vpack.c.b16 %v3987, %v3980
    %v4324 = vpack.c.b16 %v3988, %v3981
    %v4325 = vpack.c.b16 %v3989, %v3982
    %v4326 = vpack.c.b16 %v3990, %v3983
    %v4327 = vpack.c.b16 %v3991, %v3984
    %v4328 = vpack.c.b16 %v3992, %v3985
    %v4329 = vpack.c.b16 %v4000, %v3993
    %v4330 = vpack.c.b16 %v4001, %v3994
    %v4331 = vpack.c.b16 %v4002, %v3995
    %v4332 = vpack.c.b16 %v4003, %v3996
    %v4333 = vpack.c.b16 %v4004, %v3997
    %v4334 = vpack.c.b16 %v4005, %v3998
    %v4335 = vpack.c.b16 %v4006, %v3999
    %v4336 = vpack.c.b16 %v4014, %v4007
    %v4337 = vpack.c.b16 %v4015, %v4008
    %v4338 = vpack.c.b16 %v4016, %v4009
    %v4339 = vpack.c.b16 %v4017, %v4010
    %v4340 = vpack.c.b16 %v4018, %v4011
    %v4341 = vpack.c.b16 %v4019, %v4012
    %v4342 = vpack.c.b16 %v4020, %v4013
    %v4343 = vpack.c.b16 %v4028, %v4021
    %v4344 = vpack.c.b16 %v4029, %v4022
    %v4345 = vpack.c.b16 %v4030, %v4023
    %v4346 = vpack.c.b16 %v4031, %v4024
    %v4347 = vpack.c.b16 %v4032, %v4025
    %v4348 = vpack.c.b16 %v4033, %v4026
    %v4349 = vpack.c.b16 %v4034, %v4027
    %v4350 = vpack.c.b16 %v4042, %v4035
    %v4351 = vpack.c.b16 %v4043, %v4036
    %v4352 = vpack.c.b16 %v4044, %v4037
    %v4353 = vpack.c.b16 %v4045, %v4038
    %v4354 = vpack.c.b16 %v4046, %v4039
    %v4355 = vpack.c.b16 %v4047, %v4040
    %v4356 = vpack.c.b16 %v4048, %v4041
    %v4357 = vpack.c.b16 %v4056, %v4049
    %v4358 = vpack.c.b16 %v4057, %v4050
    %v4359 = vpack.c.b16 %v4058, %v4051
    %v4360 = vpack.c.b16 %v4059, %v4052
    %v4361 = vpack.c.b16 %v4060, %v4053
    %v4362 = vpack.c.b16 %v4061, %v4054
    %v4363 = vpack.c.b16 %v4062, %v4055
    %v4364 = vpack.c.b16 %v4070, %v4063
    %v4365 = vpack.c.b16 %v4071, %v4064
    %v4366 = vpack.c.b16 %v4072, %v4065
    %v4367 = vpack.c.b16 %v4073, %v4066
    %v4368 = vpack.c.b16 %v4074, %v4067
    %v4369 = vpack.c.b16 %v4075, %v4068
    %v4370 = vpack.c.b16 %v4076, %v4069
    %v4371 = vpack.c.b16 %v4084, %v4077
    %v4372 = vpack.c.b16 %v4085, %v4078
    %v4373 = vpack.c.b16 %v4086, %v4079
    %v4374 = vpack.c.b16 %v4087, %v4080
    %v4375 = vpack.c.b16 %v4088, %v4081
    %v4376 = vpack.c.b16 %v4089, %v4082
    %v4377 = vpack.c.b16 %v4090, %v4083
    %v4378 = vpack.c.b16 %v4098, %v4091
    %v4379 = vpack.c.b16 %v4099, %v4092
    %v4380 = vpack.c.b16 %v4100, %v4093
    %v4381 = vpack.c.b16 %v4101, %v4094
    %v4382 = vpack.c.b16 %v4102, %v4095
    %v4383 = vpack.c.b16 %v4103, %v4096
    %v4384 = vpack.c.b16 %v4104, %v4097
    %v4385 = vpack.c.b16 %v4112, %v4105
    %v4386 = vpack.c.b16 %v4113, %v4106
    %v4387 = vpack.c.b16 %v4114, %v4107
    %v4388 = vpack.c.b16 %v4115, %v4108
    %v4389 = vpack.c.b16 %v4116, %v4109
    %v4390 = vpack.c.b16 %v4117, %v4110
    %v4391 = vpack.c.b16 %v4118, %v4111
    %v4392 = vpack.c.b16 %v4126, %v4119
    %v4393 = vpack.c.b16 %v4127, %v4120
    %v4394 = vpack.c.b16 %v4128, %v4121
    %v4395 = vpack.c.b16 %v4129, %v4122
    %v4396 = vpack.c.b16 %v4130, %v4123
    %v4397 = vpack.c.b16 %v4131, %v4124
    %v4398 = vpack.c.b16 %v4132, %v4125
    %v4399 = vpack.c.b16 %v4140, %v4133
    %v4400 = vpack.c.b16 %v4141, %v4134
    %v4401 = vpack.c.b16 %v4142, %v4135
    %v4402 = vpack.c.b16 %v4143, %v4136
    %v4403 = vpack.c.b16 %v4144, %v4137
    %v4404 = vpack.c.b16 %v4145, %v4138
    %v4405 = vpack.c.b16 %v4146, %v4139
    %v4406 = vpack.c.b16 %v4154, %v4147
    %v4407 = vpack.c.b16 %v4155, %v4148
    %v4408 = vpack.c.b16 %v4156, %v4149
    %v4409 = vpack.c.b16 %v4157, %v4150
    %v4410 = vpack.c.b16 %v4158, %v4151
    %v4411 = vpack.c.b16 %v4159, %v4152
    %v4412 = vpack.c.b16 %v4160, %v4153
    %v4413 = vpack.c.b16 %v4168, %v4161
    %v4414 = vpack.c.b16 %v4169, %v4162
    %v4415 = vpack.c.b16 %v4170, %v4163
    %v4416 = vpack.c.b16 %v4171, %v4164
    %v4417 = vpack.c.b16 %v4172, %v4165
    %v4418 = vpack.c.b16 %v4173, %v4166
    %v4419 = vpack.c.b16 %v4174, %v4167
    %v4420 = vpack.c.b16 %v4182, %v4175
    %v4421 = vpack.c.b16 %v4183, %v4176
    %v4422 = vpack.c.b16 %v4184, %v4177
    %v4423 = vpack.c.b16 %v4185, %v4178
    %v4424 = vpack.c.b16 %v4186, %v4179
    %v4425 = vpack.c.b16 %v4187, %v4180
    %v4426 = vpack.c.b16 %v4188, %v4181
    %v4427 = vpack.c.b16 %v4196, %v4189
    %v4428 = vpack.c.b16 %v4197, %v4190
    %v4429 = vpack.c.b16 %v4198, %v4191
    %v4430 = vpack.c.b16 %v4199, %v4192
    %v4431 = vpack.c.b16 %v4200, %v4193
    %v4432 = vpack.c.b16 %v4201, %v4194
    %v4433 = vpack.c.b16 %v4202, %v4195
    %v4434 = vpack.c.b16 %v4210, %v4203
    %v4435 = vpack.c.b16 %v4211, %v4204
    %v4436 = vpack.c.b16 %v4212, %v4205
    %v4437 = vpack.c.b16 %v4213, %v4206
    %v4438 = vpack.c.b16 %v4214, %v4207
    %v4439 = vpack.c.b16 %v4215, %v4208
    %v4440 = vpack.c.b16 %v4216, %v4209
    %4665 = vmatprep.subr.bf16.mxu0 %v4218
    %4666 = vmatpush1.bf16.msra.mxu0 %v4217
    %4667 = vmatprep.subr.bf16.mxu0 %v4225
    %4668 = vmatpush1.bf16.msra.mxu0 %v4224
    %4669 = vmatprep.subr.bf16.mxu0 %v4232
    %4670 = vmatpush1.bf16.msra.mxu0 %v4231
    %4671 = vmatprep.subr.bf16.mxu0 %v4239
    %4672 = vmatpush1.bf16.msra.mxu0 %v4238
    %4673 = vmatprep.subr.bf16.mxu0 %v4246
    %4674 = vmatpush1.bf16.msra.mxu0 %v4245
    %4675 = vmatprep.subr.bf16.mxu0 %v4253
    %4676 = vmatpush1.bf16.msra.mxu0 %v4252
    %4677 = vmatprep.subr.bf16.mxu0 %v4260
    %4678 = vmatpush1.bf16.msra.mxu0 %v4259
    %4679 = vmatprep.subr.bf16.mxu0 %v4267
    %4680 = vmatpush1.bf16.msra.mxu0 %v4266
    %4681 = vmatprep.subr.bf16.mxu0 %v4274
    %4682 = vmatpush1.bf16.msra.mxu0 %v4273
    %4683 = vmatprep.subr.bf16.mxu0 %v4281
    %4684 = vmatpush1.bf16.msra.mxu0 %v4280
    %4685 = vmatprep.subr.bf16.mxu0 %v4288
    %4686 = vmatpush1.bf16.msra.mxu0 %v4287
    %4687 = vmatprep.subr.bf16.mxu0 %v4295
    %4688 = vmatpush1.bf16.msra.mxu0 %v4294
    %4689 = vmatprep.subr.bf16.mxu0 %v4302
    %4690 = vmatpush1.bf16.msra.mxu0 %v4301
    %4691 = vmatprep.subr.bf16.mxu0 %v4309
    %4692 = vmatpush1.bf16.msra.mxu0 %v4308
    %4693 = vmatprep.subr.bf16.mxu0 %v4316
    %4694 = vmatpush1.bf16.msra.mxu0 %v4315
    %4695 = vmatprep.subr.bf16.mxu0 %v4323
    %4696 = vmatpush1.bf16.msra.mxu0 %v4322
    %4697 = vmatprep.mubr.bf16.mxu0 %v3217
    %4698 = vmatmul.mubr.bf16.gmra.mrb[0].mxu0 %v3216
    %v4699 = vpop.f32.mrb[0].mxu0
    %v4700 = vadd.f32 %v3481, %v4699
    %v4701 = vpop.f32.mrb[0].mxu0
    %v4702 = vadd.f32 %v3485, %v4701
    %v4703 = vpop.f32.mrb[0].mxu0
    %v4704 = vpop.f32.mrb[0].mxu0
    %4705 = vdwg.mxu0
    %4706 = vmatprep.subr.bf16.mxu0 %v4330
    %4707 = vmatpush1.bf16.msra.mxu0 %v4329
    %4708 = vmatprep.subr.bf16.mxu0 %v4337
    %4709 = vmatpush1.bf16.msra.mxu0 %v4336
    %4710 = vmatprep.subr.bf16.mxu0 %v4344
    %4711 = vmatpush1.bf16.msra.mxu0 %v4343
    %4712 = vmatprep.subr.bf16.mxu0 %v4351
    %4713 = vmatpush1.bf16.msra.mxu0 %v4350
    %4714 = vmatprep.subr.bf16.mxu0 %v4358
    %4715 = vmatpush1.bf16.msra.mxu0 %v4357
    %4716 = vmatprep.subr.bf16.mxu0 %v4365
    %4717 = vmatpush1.bf16.msra.mxu0 %v4364
    %4718 = vmatprep.subr.bf16.mxu0 %v4372
    %4719 = vmatpush1.bf16.msra.mxu0 %v4371
    %4720 = vmatprep.subr.bf16.mxu0 %v4379
    %4721 = vmatpush1.bf16.msra.mxu0 %v4378
    %4722 = vmatprep.subr.bf16.mxu0 %v4386
    %4723 = vmatpush1.bf16.msra.mxu0 %v4385
    %4724 = vmatprep.subr.bf16.mxu0 %v4393
    %4725 = vmatpush1.bf16.msra.mxu0 %v4392
    %4726 = vmatprep.subr.bf16.mxu0 %v4400
    %4727 = vmatpush1.bf16.msra.mxu0 %v4399
    %4728 = vmatprep.subr.bf16.mxu0 %v4407
    %4729 = vmatpush1.bf16.msra.mxu0 %v4406
    %4730 = vmatprep.subr.bf16.mxu0 %v4414
    %4731 = vmatpush1.bf16.msra.mxu0 %v4413
    %4732 = vmatprep.subr.bf16.mxu0 %v4421
    %4733 = vmatpush1.bf16.msra.mxu0 %v4420
    %4734 = vmatprep.subr.bf16.mxu0 %v4428
    %4735 = vmatpush1.bf16.msra.mxu0 %v4427
    %4736 = vmatprep.subr.bf16.mxu0 %v4435
    %4737 = vmatpush1.bf16.msra.mxu0 %v4434
    %4738 = vmatprep.mubr.bf16.mxu0 %v3219
    %4739 = vmatmul.mubr.bf16.gmra.mrb[0].mxu0 %v3218
    %v4740 = vpop.f32.mrb[0].mxu0
    %v4741 = vadd.f32 %v4700, %v4740
    %v4742 = vpop.f32.mrb[0].mxu0
    %v4743 = vadd.f32 %v4702, %v4742
    %v4744 = vpop.f32.mrb[0].mxu0
    %v4745 = vpop.f32.mrb[0].mxu0
    %4746 = vdwg.mxu0
    %4747 = vmatprep.subr.bf16.mxu0 %v4220
    %4748 = vmatpush1.bf16.msra.mxu0 %v4219
    %4749 = vmatprep.subr.bf16.mxu0 %v4227
    %4750 = vmatpush1.bf16.msra.mxu0 %v4226
    %4751 = vmatprep.subr.bf16.mxu0 %v4234
    %4752 = vmatpush1.bf16.msra.mxu0 %v4233
    %4753 = vmatprep.subr.bf16.mxu0 %v4241
    %4754 = vmatpush1.bf16.msra.mxu0 %v4240
    %4755 = vmatprep.subr.bf16.mxu0 %v4248
    %4756 = vmatpush1.bf16.msra.mxu0 %v4247
    %4757 = vmatprep.subr.bf16.mxu0 %v4255
    %4758 = vmatpush1.bf16.msra.mxu0 %v4254
    %4759 = vmatprep.subr.bf16.mxu0 %v4262
    %4760 = vmatpush1.bf16.msra.mxu0 %v4261
    %4761 = vmatprep.subr.bf16.mxu0 %v4269
    %4762 = vmatpush1.bf16.msra.mxu0 %v4268
    %4763 = vmatprep.subr.bf16.mxu0 %v4276
    %4764 = vmatpush1.bf16.msra.mxu0 %v4275
    %4765 = vmatprep.subr.bf16.mxu0 %v4283
    %4766 = vmatpush1.bf16.msra.mxu0 %v4282
    %4767 = vmatprep.subr.bf16.mxu0 %v4290
    %4768 = vmatpush1.bf16.msra.mxu0 %v4289
    %4769 = vmatprep.subr.bf16.mxu0 %v4297
    %4770 = vmatpush1.bf16.msra.mxu0 %v4296
    %4771 = vmatprep.subr.bf16.mxu0 %v4304
    %4772 = vmatpush1.bf16.msra.mxu0 %v4303
    %4773 = vmatprep.subr.bf16.mxu0 %v4311
    %4774 = vmatpush1.bf16.msra.mxu0 %v4310
    %4775 = vmatprep.subr.bf16.mxu0 %v4318
    %4776 = vmatpush1.bf16.msra.mxu0 %v4317
    %4777 = vmatprep.subr.bf16.mxu0 %v4325
    %4778 = vmatpush1.bf16.msra.mxu0 %v4324
    %4779 = vmatprep.mubr.bf16.mxu0 %v3217
    %4780 = vmatmul.mubr.bf16.gmra.mrb[0].mxu0 %v3216
    %v4781 = vpop.f32.mrb[0].mxu0
    %v4782 = vadd.f32 %v3489, %v4781
    %v4783 = vpop.f32.mrb[0].mxu0
    %v4784 = vadd.f32 %v3493, %v4783
    %v4785 = vpop.f32.mrb[0].mxu0
    %v4786 = vpop.f32.mrb[0].mxu0
    %4787 = vdwg.mxu0
    %4788 = vmatprep.subr.bf16.mxu0 %v4332
    %4789 = vmatpush1.bf16.msra.mxu0 %v4331
    %4790 = vmatprep.subr.bf16.mxu0 %v4339
    %4791 = vmatpush1.bf16.msra.mxu0 %v4338
    %4792 = vmatprep.subr.bf16.mxu0 %v4346
    %4793 = vmatpush1.bf16.msra.mxu0 %v4345
    %4794 = vmatprep.subr.bf16.mxu0 %v4353
    %4795 = vmatpush1.bf16.msra.mxu0 %v4352
    %4796 = vmatprep.subr.bf16.mxu0 %v4360
    %4797 = vmatpush1.bf16.msra.mxu0 %v4359
    %4798 = vmatprep.subr.bf16.mxu0 %v4367
    %4799 = vmatpush1.bf16.msra.mxu0 %v4366
    %4800 = vmatprep.subr.bf16.mxu0 %v4374
    %4801 = vmatpush1.bf16.msra.mxu0 %v4373
    %4802 = vmatprep.subr.bf16.mxu0 %v4381
    %4803 = vmatpush1.bf16.msra.mxu0 %v4380
    %4804 = vmatprep.subr.bf16.mxu0 %v4388
    %4805 = vmatpush1.bf16.msra.mxu0 %v4387
    %4806 = vmatprep.subr.bf16.mxu0 %v4395
    %4807 = vmatpush1.bf16.msra.mxu0 %v4394
    %4808 = vmatprep.subr.bf16.mxu0 %v4402
    %4809 = vmatpush1.bf16.msra.mxu0 %v4401
    %4810 = vmatprep.subr.bf16.mxu0 %v4409
    %4811 = vmatpush1.bf16.msra.mxu0 %v4408
    %4812 = vmatprep.subr.bf16.mxu0 %v4416
    %4813 = vmatpush1.bf16.msra.mxu0 %v4415
    %4814 = vmatprep.subr.bf16.mxu0 %v4423
    %4815 = vmatpush1.bf16.msra.mxu0 %v4422
    %4816 = vmatprep.subr.bf16.mxu0 %v4430
    %4817 = vmatpush1.bf16.msra.mxu0 %v4429
    %4818 = vmatprep.subr.bf16.mxu0 %v4437
    %4819 = vmatpush1.bf16.msra.mxu0 %v4436
    %4820 = vmatprep.mubr.bf16.mxu0 %v3219
    %4821 = vmatmul.mubr.bf16.gmra.mrb[0].mxu0 %v3218
    %v4822 = vpop.f32.mrb[0].mxu0
    %v4823 = vadd.f32 %v4782, %v4822
    %v4824 = vpop.f32.mrb[0].mxu0
    %v4825 = vadd.f32 %v4784, %v4824
    %v4826 = vpop.f32.mrb[0].mxu0
    %v4827 = vpop.f32.mrb[0].mxu0
    %4828 = vdwg.mxu0
    %4829 = vmatprep.subr.bf16.mxu0 %v4222
    %4830 = vmatpush1.bf16.msra.mxu0 %v4221
    %4831 = vmatprep.subr.bf16.mxu0 %v4229
    %4832 = vmatpush1.bf16.msra.mxu0 %v4228
    %4833 = vmatprep.subr.bf16.mxu0 %v4236
    %4834 = vmatpush1.bf16.msra.mxu0 %v4235
    %4835 = vmatprep.subr.bf16.mxu0 %v4243
    %4836 = vmatpush1.bf16.msra.mxu0 %v4242
    %4837 = vmatprep.subr.bf16.mxu0 %v4250
    %4838 = vmatpush1.bf16.msra.mxu0 %v4249
    %4839 = vmatprep.subr.bf16.mxu0 %v4257
    %4840 = vmatpush1.bf16.msra.mxu0 %v4256
    %4841 = vmatprep.subr.bf16.mxu0 %v4264
    %4842 = vmatpush1.bf16.msra.mxu0 %v4263
    %4843 = vmatprep.subr.bf16.mxu0 %v4271
    %4844 = vmatpush1.bf16.msra.mxu0 %v4270
    %4845 = vmatprep.subr.bf16.mxu0 %v4278
    %4846 = vmatpush1.bf16.msra.mxu0 %v4277
    %4847 = vmatprep.subr.bf16.mxu0 %v4285
    %4848 = vmatpush1.bf16.msra.mxu0 %v4284
    %4849 = vmatprep.subr.bf16.mxu0 %v4292
    %4850 = vmatpush1.bf16.msra.mxu0 %v4291
    %4851 = vmatprep.subr.bf16.mxu0 %v4299
    %4852 = vmatpush1.bf16.msra.mxu0 %v4298
    %4853 = vmatprep.subr.bf16.mxu0 %v4306
    %4854 = vmatpush1.bf16.msra.mxu0 %v4305
    %4855 = vmatprep.subr.bf16.mxu0 %v4313
    %4856 = vmatpush1.bf16.msra.mxu0 %v4312
    %4857 = vmatprep.subr.bf16.mxu0 %v4320
    %4858 = vmatpush1.bf16.msra.mxu0 %v4319
    %4859 = vmatprep.subr.bf16.mxu0 %v4327
    %4860 = vmatpush1.bf16.msra.mxu0 %v4326
    %4861 = vmatprep.mubr.bf16.mxu0 %v3217
    %4862 = vmatmul.mubr.bf16.gmra.mrb[0].mxu0 %v3216
    %v4863 = vpop.f32.mrb[0].mxu0
    %v4864 = vadd.f32 %v3497, %v4863
    %v4865 = vpop.f32.mrb[0].mxu0
    %v4866 = vadd.f32 %v3501, %v4865
    %v4867 = vpop.f32.mrb[0].mxu0
    %v4868 = vpop.f32.mrb[0].mxu0
    %4869 = vdwg.mxu0
    %4870 = vmatprep.subr.bf16.mxu0 %v4334
    %4871 = vmatpush1.bf16.msra.mxu0 %v4333
    %4872 = vmatprep.subr.bf16.mxu0 %v4341
    %4873 = vmatpush1.bf16.msra.mxu0 %v4340
    %4874 = vmatprep.subr.bf16.mxu0 %v4348
    %4875 = vmatpush1.bf16.msra.mxu0 %v4347
    %4876 = vmatprep.subr.bf16.mxu0 %v4355
    %4877 = vmatpush1.bf16.msra.mxu0 %v4354
    %4878 = vmatprep.subr.bf16.mxu0 %v4362
    %4879 = vmatpush1.bf16.msra.mxu0 %v4361
    %4880 = vmatprep.subr.bf16.mxu0 %v4369
    %4881 = vmatpush1.bf16.msra.mxu0 %v4368
    %4882 = vmatprep.subr.bf16.mxu0 %v4376
    %4883 = vmatpush1.bf16.msra.mxu0 %v4375
    %4884 = vmatprep.subr.bf16.mxu0 %v4383
    %4885 = vmatpush1.bf16.msra.mxu0 %v4382
    %4886 = vmatprep.subr.bf16.mxu0 %v4390
    %4887 = vmatpush1.bf16.msra.mxu0 %v4389
    %4888 = vmatprep.subr.bf16.mxu0 %v4397
    %4889 = vmatpush1.bf16.msra.mxu0 %v4396
    %4890 = vmatprep.subr.bf16.mxu0 %v4404
    %4891 = vmatpush1.bf16.msra.mxu0 %v4403
    %4892 = vmatprep.subr.bf16.mxu0 %v4411
    %4893 = vmatpush1.bf16.msra.mxu0 %v4410
    %4894 = vmatprep.subr.bf16.mxu0 %v4418
    %4895 = vmatpush1.bf16.msra.mxu0 %v4417
    %4896 = vmatprep.subr.bf16.mxu0 %v4425
    %4897 = vmatpush1.bf16.msra.mxu0 %v4424
    %4898 = vmatprep.subr.bf16.mxu0 %v4432
    %4899 = vmatpush1.bf16.msra.mxu0 %v4431
    %4900 = vmatprep.subr.bf16.mxu0 %v4439
    %4901 = vmatpush1.bf16.msra.mxu0 %v4438
    %4902 = vmatprep.mubr.bf16.mxu0 %v3219
    %4903 = vmatmul.mubr.bf16.gmra.mrb[0].mxu0 %v3218
    %v4904 = vpop.f32.mrb[0].mxu0
    %v4905 = vadd.f32 %v4864, %v4904
    %v4906 = vpop.f32.mrb[0].mxu0
    %v4907 = vadd.f32 %v4866, %v4906
    %v4908 = vpop.f32.mrb[0].mxu0
    %v4909 = vpop.f32.mrb[0].mxu0
    %4910 = vdwg.mxu0
    %4911 = vmatprep.subr.bf16.mxu0 0
    %4912 = vmatpush1.bf16.msra.mxu0 %v4223
    %4913 = vmatprep.subr.bf16.mxu0 0
    %4914 = vmatpush1.bf16.msra.mxu0 %v4230
    %4915 = vmatprep.subr.bf16.mxu0 0
    %4916 = vmatpush1.bf16.msra.mxu0 %v4237
    %4917 = vmatprep.subr.bf16.mxu0 0
    %4918 = vmatpush1.bf16.msra.mxu0 %v4244
    %4919 = vmatprep.subr.bf16.mxu0 0
    %4920 = vmatpush1.bf16.msra.mxu0 %v4251
    %4921 = vmatprep.subr.bf16.mxu0 0
    %4922 = vmatpush1.bf16.msra.mxu0 %v4258
    %4923 = vmatprep.subr.bf16.mxu0 0
    %4924 = vmatpush1.bf16.msra.mxu0 %v4265
    %4925 = vmatprep.subr.bf16.mxu0 0
    %4926 = vmatpush1.bf16.msra.mxu0 %v4272
    %4927 = vmatprep.subr.bf16.mxu0 0
    %4928 = vmatpush1.bf16.msra.mxu0 %v4279
    %4929 = vmatprep.subr.bf16.mxu0 0
    %4930 = vmatpush1.bf16.msra.mxu0 %v4286
    %4931 = vmatprep.subr.bf16.mxu0 0
    %4932 = vmatpush1.bf16.msra.mxu0 %v4293
    %4933 = vmatprep.subr.bf16.mxu0 0
    %4934 = vmatpush1.bf16.msra.mxu0 %v4300
    %4935 = vmatprep.subr.bf16.mxu0 0
    %4936 = vmatpush1.bf16.msra.mxu0 %v4307
    %4937 = vmatprep.subr.bf16.mxu0 0
    %4938 = vmatpush1.bf16.msra.mxu0 %v4314
    %4939 = vmatprep.subr.bf16.mxu0 0
    %4940 = vmatpush1.bf16.msra.mxu0 %v4321
    %4941 = vmatprep.subr.bf16.mxu0 0
    %4942 = vmatpush1.bf16.msra.mxu0 %v4328
    %4943 = vmatprep.mubr.bf16.mxu0 %v3217
    %4944 = vmatmul.mubr.bf16.gmra.mrb[0].mxu0 %v3216
    %v4945 = vpop.f32.mrb[0].mxu0
    %v4946 = vadd.f32 %v3505, %v4945
    %v4947 = vpop.f32.mrb[0].mxu0
    %v4948 = vpop.f32.mrb[0].mxu0
    %v4949 = vpop.f32.mrb[0].mxu0
    %4950 = vdwg.mxu0
    %4951 = vmatprep.subr.bf16.mxu0 0
    %4952 = vmatpush1.bf16.msra.mxu0 %v4335
    %4953 = vmatprep.subr.bf16.mxu0 0
    %4954 = vmatpush1.bf16.msra.mxu0 %v4342
    %4955 = vmatprep.subr.bf16.mxu0 0
    %4956 = vmatpush1.bf16.msra.mxu0 %v4349
    %4957 = vmatprep.subr.bf16.mxu0 0
    %4958 = vmatpush1.bf16.msra.mxu0 %v4356
    %4959 = vmatprep.subr.bf16.mxu0 0
    %4960 = vmatpush1.bf16.msra.mxu0 %v4363
    %4961 = vmatprep.subr.bf16.mxu0 0
    %4962 = vmatpush1.bf16.msra.mxu0 %v4370
    %4963 = vmatprep.subr.bf16.mxu0 0
    %4964 = vmatpush1.bf16.msra.mxu0 %v4377
    %4965 = vmatprep.subr.bf16.mxu0 0
    %4966 = vmatpush1.bf16.msra.mxu0 %v4384
    %4967 = vmatprep.subr.bf16.mxu0 0
    %4968 = vmatpush1.bf16.msra.mxu0 %v4391
    %4969 = vmatprep.subr.bf16.mxu0 0
    %4970 = vmatpush1.bf16.msra.mxu0 %v4398
    %4971 = vmatprep.subr.bf16.mxu0 0
    %4972 = vmatpush1.bf16.msra.mxu0 %v4405
    %4973 = vmatprep.subr.bf16.mxu0 0
    %4974 = vmatpush1.bf16.msra.mxu0 %v4412
    %4975 = vmatprep.subr.bf16.mxu0 0
    %4976 = vmatpush1.bf16.msra.mxu0 %v4419
    %4977 = vmatprep.subr.bf16.mxu0 0
    %4978 = vmatpush1.bf16.msra.mxu0 %v4426
    %4979 = vmatprep.subr.bf16.mxu0 0
    %4980 = vmatpush1.bf16.msra.mxu0 %v4433
    %4981 = vmatprep.subr.bf16.mxu0 0
    %4982 = vmatpush1.bf16.msra.mxu0 %v4440
    %4983 = vmatprep.mubr.bf16.mxu0 %v3219
    %4984 = vmatmul.mubr.bf16.gmra.mrb[0].mxu0 %v3218
    %v4985 = vpop.f32.mrb[0].mxu0
    %v4986 = vadd.f32 %v4946, %v4985
    %v4987 = vpop.f32.mrb[0].mxu0
    %v4988 = vpop.f32.mrb[0].mxu0
    %v4989 = vpop.f32.mrb[0].mxu0
    %4990 = vdwg.mxu0
    %v4991 = vmul.f32 %v4741, 0.5
    %v4992 = vmul.f32 %v4743, 0.5
    %v4993 = vmul.f32 %v4823, 0.5
    %v4994 = vmul.f32 %v4825, 0.5
    %v4995 = vmul.f32 %v4905, 0.5
    %v4996 = vmul.f32 %v4907, 0.5
    %v4997 = vmul.f32 %v4986, 0.5
    %v4998 = vtanh.pop %v4991
    %v4999 = vtanh.pop %v4992
    %v5000 = vtanh.pop %v4993
    %v5001 = vtanh.pop %v4994
    %v5002 = vtanh.pop %v4995
    %v5003 = vtanh.pop %v4996
    %v5004 = vtanh.pop %v4997
    %v5005 = vadd.f32 %v4998, 1.0
    %v5006 = vadd.f32 %v4999, 1.0
    %v5007 = vadd.f32 %v5000, 1.0
    %v5008 = vadd.f32 %v5001, 1.0
    %v5009 = vadd.f32 %v5002, 1.0
    %v5010 = vadd.f32 %v5003, 1.0
    %v5011 = vadd.f32 %v5004, 1.0
    %v5012 = vmul.f32 %v5005, 0.5
    %v5013 = vmul.f32 %v5006, 0.5
    %v5014 = vmul.f32 %v5007, 0.5
    %v5015 = vmul.f32 %v5008, 0.5
    %v5016 = vmul.f32 %v5009, 0.5
    %v5017 = vmul.f32 %v5010, 0.5
    %v5018 = vmul.f32 %v5011, 0.5
    %5019 = vst [vmem:[#allocation2] sm:$0xff] %v5012
    %5020 = vst [vmem:[#allocation2 + $0x8] sm:$0xff] %v5013
    %5021 = vst [vmem:[#allocation2 + $0x10] sm:$0xff] %v5014
    %5022 = vst [vmem:[#allocation2 + $0x18] sm:$0xff] %v5015
    %5023 = vst [vmem:[#allocation2 + $0x20] sm:$0xff] %v5016
    %5024 = vst [vmem:[#allocation2 + $0x28] sm:$0xff] %v5017
    %5025 = vst.msk [vmem:[#allocation2 + $0x30] sm:$0xff] %vm1271, %v5018
    // Predicated region
    $region50: #{my_autoencoder.1} parent=1 // pred_check
      _
    $region51: #{my_autoencoder.1} parent=1 // pred_check_branch
      %5027 = sbr.rel (0) target = $region53
    $region52: #{my_autoencoder.1} parent=1 // pred_region
      _
    $region53: #{my_autoencoder.1} parent=1 // pred_fallthru
      _
    // Predicated region
    $region54: #{my_autoencoder.1} parent=1 // pred_check
      _
    $region55: #{my_autoencoder.1} parent=1 // pred_check_branch
      %5029 = sbr.rel (0) target = $region57
    $region56: #{my_autoencoder.1} parent=1 // pred_region
      %s5031 = ssub.s32 896, 896
      %5032 = vsyncadd [#allocation3], %s5031
      %s5034 = sshll.u32 [#allocation2], 4
      %s5035 = int_to_ptr.vmem [resolvable:$true] %s5034
      %5037 = dma.vmem_to_hbm [thread:$0]  %s5035, 896, %s13, [#allocation3]
    $region57: #{my_autoencoder.1} parent=1 // pred_fallthru
      _
    // Predicated region
    $region58: #{my_autoencoder.1} parent=1 // pred_check
      _
    $region59: #{my_autoencoder.1} parent=1 // pred_check_branch
      %5039 = sbr.rel (0) target = $region61
    $region60: #{my_autoencoder.1} parent=1 // pred_region
      _
    $region61: #{my_autoencoder.1} parent=1 // pred_fallthru
      _
    // Predicated region
    $region62: #{my_autoencoder.1} parent=1 // pred_check
      _
    $region63: #{my_autoencoder.1} parent=1 // pred_check_branch
      %5041 = sbr.rel (0) target = $region65
    $region64: #{my_autoencoder.1} parent=1 // pred_region
      %5042 = dma.done [#allocation3], 896
    $region65: #{my_autoencoder.1} parent=1 // pred_fallthru
      _
    %5043 = vsyncpa [#allocation3], 1

</llo_original>
